<compile_context>
chip_gen: v6e
topology: v6e:2x2x1
jax: 0.10.0
libtpu: 0.0.40
codegen_flags: <defaults>
</compile_context>

<pallas_src>
import numpy as np
import jax
import jax.numpy as jnp
from jax.experimental import pallas as pl
from jax.experimental.pallas import tpu as pltpu


# ----------------------------- activations ----------------------------------

def _relu(x):
    return jnp.maximum(x, 0.0)


def _leaky_relu(x):
    # The original module constructs nn.LeakyReLU(0.2) explicitly.
    return jnp.where(x > 0, x, 0.2 * x)


def _tanh(x):
    return jnp.tanh(x)


def _sigmoid(x):
    return jax.nn.sigmoid(x)


def acfnc_chose(name):
    if name == 'ReLU':
        return _relu
    elif name == 'LeakyReLU':
        return _leaky_relu
    elif name == 'Tanh':
        return _tanh
    else:
        return _sigmoid


# ------------------- fold AvgPool(2,2) into conv weights ---------------------
# (one-time, at parameter-preparation, exact math)

def _fuse_enc_conv_pool(w_oihw):
    """Conv2d(k=3,s=1,p=1) + AvgPool2d(2,2)  ==  Conv2d(k=4,s=2,p=1) with this
    derived HWIO weight (the 1/4 pooling factor is folded in)."""
    w = jnp.transpose(w_oihw, (2, 3, 1, 0))               # (3,3,Cin,Cout)
    g = jnp.zeros((4, 4) + w.shape[2:], w.dtype)
    for a in (0, 1):
        for b in (0, 1):
            g = g.at[a:a + 3, b:b + 3].add(w)
    return g * 0.25                                        # (4,4,Cin,Cout)


def _fuse_dec_convt_pool(w_iohw):
    """ConvTranspose2d(k=4,s=2,p=1) + AvgPool2d(2,2)  ==  Conv2d(k=3,s=1,p=1)
    with this derived HWIO weight (1/4 folded in)."""
    w = jnp.transpose(w_iohw, (2, 3, 0, 1))                # (4,4,Cin,Cout)
    rows = jnp.stack([w[3], w[1] + w[2], w[0]], axis=0)    # (3,4,Cin,Cout)
    g = jnp.stack([rows[:, 3], rows[:, 1] + rows[:, 2], rows[:, 0]], axis=1)
    return g * 0.25                                        # (3,3,Cin,Cout)


# ----------------------------- parameters ------------------------------------

def init_params(key, para):
    S = para['Structure']
    L = len(S)
    enc, dec = [], []
    for i in range(L - 1):
        k = para['Kernel size'][i]
        key, k1, k2 = jax.random.split(key, 3)
        bound = 1.0 / np.sqrt(S[i] * k * k)
        w = jax.random.uniform(k1, (S[i + 1], S[i], k, k), jnp.float32, -bound, bound)
        b = jax.random.uniform(k2, (S[i + 1],), jnp.float32, -bound, bound)
        enc.append((w, b))
    for i in range(L - 1):
        k = para['Kernel size'][L - 1 + i]
        cin, cout = S[L - i - 1], S[L - i - 2]
        key, k1, k2 = jax.random.split(key, 3)
        bound = 1.0 / np.sqrt(cin * k * k)
        w = jax.random.uniform(k1, (cin, cout, k, k), jnp.float32, -bound, bound)
        b = jax.random.uniform(k2, (cout,), jnp.float32, -bound, bound)
        dec.append((w, b))
    # BottleNeck is an int -> 1x1 Conv2d(S[L-1] -> S[L-1])
    key, k1, k2 = jax.random.split(key, 3)
    bound = 1.0 / np.sqrt(S[L - 1])
    wbn = jax.random.uniform(k1, (S[L - 1], S[L - 1], 1, 1), jnp.float32, -bound, bound)
    bbn = jax.random.uniform(k2, (S[L - 1],), jnp.float32, -bound, bound)
    return {'enc': enc, 'dec': dec, 'bottleneck': (wbn, bbn)}


def prepare_params(params, para):
    """One-time prep (outside the forward hot path): fold AvgPool into the conv
    weights and reshape everything into the (K, Cout) im2col matrices / (1,Cout)
    bias rows consumed by the kernel."""
    S = para['Structure']
    L = len(S)
    enc, dec = [], []
    for i in range(L - 1):
        w, b = params['enc'][i]
        g = _fuse_enc_conv_pool(w).astype(jnp.float32)            # (4,4,Cin,Cout)
        enc.append((g.reshape(16 * S[i], S[i + 1]),
                    b.reshape(1, -1).astype(jnp.float32)))
    wbn, bbn = params['bottleneck']
    bn = (jnp.transpose(wbn[:, :, 0, 0], (1, 0)).astype(jnp.float32),   # (Cin,Cout)
          bbn.reshape(1, -1).astype(jnp.float32))
    for i in range(L - 1):
        w, b = params['dec'][i]
        g = _fuse_dec_convt_pool(w).astype(jnp.float32)           # (3,3,Cin,Cout)
        cin = S[L - 1 - i]
        dec.append((g.reshape(9 * cin, S[L - 2 - i]),
                    b.reshape(1, -1).astype(jnp.float32)))
    return {'enc': enc, 'bn': bn, 'dec': dec}


# ----------------------------- fused forward ----------------------------------

def cnna_forward(x_nchw, prep, para):
    S = para['Structure']
    L = len(S)
    num = L - 1
    assert para['Pooling'][0] == 'Average' and tuple(para['Pooling'][1]) == (2, 2, 0)
    assert isinstance(para['BottleNeck'], int)
    for i in range(num):
        assert (para['Kernel size'][i], para['Stride'][i], para['Padding'][i]) == (3, 1, 1)
        assert (para['Kernel size'][L - 1 + i], para['Stride'][L - 1 + i],
                para['Padding'][L - 1 + i]) == (4, 2, 1)
    # TODO(synk): MaxPool / other (kernel,stride,padding) configs and list-valued
    # BottleNeck (Linear stack) have no fused-kernel path here.

    en_act = acfnc_chose(para['Encode acfnc'])
    de_act = acfnc_chose(para['Decode acfnc'])

    x = jnp.transpose(x_nchw, (0, 2, 3, 1)).astype(jnp.float32)    # NCHW -> NHWC
    N, H0, W0, C0 = x.shape
    assert C0 == S[0]

    # static stage geometry
    enc_shapes = []
    h, w_sp = H0, W0
    for i in range(num):
        assert h % 2 == 0 and w_sp % 2 == 0
        enc_shapes.append((h, w_sp, S[i]))
        h, w_sp = h // 2, w_sp // 2
    dec_shapes = [(h, w_sp, S[L - 1 - i]) for i in range(num)]     # convT+pool keeps H,W

    inputs = [x]
    for wgt, b in prep['enc']:
        inputs += [wgt, b]
    inputs += list(prep['bn'])
    for wgt, b in prep['dec']:
        inputs += [wgt, b]

    # One zero-halo padded VMEM buffer per conv stage; intermediates never touch HBM.
    scratch = [pltpu.VMEM((N, hh + 2, ww + 2, cc), jnp.float32)
               for hh, ww, cc in enc_shapes + dec_shapes]

    out_shape = jax.ShapeDtypeStruct((N, h, w_sp, S[0]), jnp.float32)

    def kernel(*refs):
        it = iter(refs)
        x_ref = next(it)
        enc_wb = [(next(it), next(it)) for _ in range(num)]
        wbn_ref, bbn_ref = next(it), next(it)
        dec_wb = [(next(it), next(it)) for _ in range(num)]
        o_ref = next(it)
        pads = [next(it) for _ in range(2 * num)]
        enc_pad, dec_pad = pads[:num], pads[num:]

        def conv_stage(xv, pad_ref, w_ref, b_ref, kk, stride, act):
            # Conv (pool already folded into w) + bias + activation, via im2col
            # and ONE MXU contraction over K = kk*kk*Cin.
            n, hh, ww, cc = xv.shape
            cout = w_ref.shape[-1]
            ho, wo = hh // stride, ww // stride
            hp, wp = hh + 2, ww + 2

            # ---- halo-only zeroing + single interior write (no full memset) ----
            zrow = jnp.zeros((n, 1, wp, cc), jnp.float32)
            zcol = jnp.zeros((n, hp, 1, cc), jnp.float32)
            pad_ref[:, 0:1, :, :] = zrow
            pad_ref[:, hp - 1:hp, :, :] = zrow
            pad_ref[:, :, 0:1, :] = zcol
            pad_ref[:, :, wp - 1:wp, :] = zcol
            pad_ref[:, 1:1 + hh, 1:1 + ww, :] = xv

            # ---- im2col tap gather (order: kh-major, kw, then channels) ----
            taps = []
            if stride == 1:
                for kh in range(kk):
                    for kw in range(kk):
                        taps.append(pad_ref[:, kh:kh + ho, kw:kw + wo, :])
            else:
                # Per kw: one sublane-strided ref read + one even/odd row split;
                # each tap is then a contiguous major-dim slice (no per-tap
                # reshape/decimation copies).
                cols = []
                for kw in range(kk):
                    ck = pad_ref[:, :, pl.ds(kw, wo, stride), :]     # (n, hp, wo, cc)
                    ck = ck.reshape(n, hp // 2, 2, wo, cc)
                    cols.append((ck[:, :, 0], ck[:, :, 1]))          # even / odd rows
                for kh in range(kk):
                    par, base = kh % 2, kh // 2
                    for kw in range(kk):
                        taps.append(cols[kw][par][:, base:base + ho])

            patches = jnp.concatenate(taps, axis=-1)                 # (n, ho, wo, K)
            patches = patches.reshape(n * ho * wo, kk * kk * cc)     # (M, K)
            y = jnp.dot(patches, w_ref[...], preferred_element_type=jnp.float32)
            return act(y + b_ref[...]).reshape(n, ho, wo, cout)

        out = x_ref[...]
        for i in range(num):                          # encoder: conv+pool+act fused
            wr, br = enc_wb[i]
            out = conv_stage(out, enc_pad[i], wr, br, 4, 2, en_act)
        n, hh, ww, cc = out.shape                     # 1x1 bottleneck conv (no act)
        out = (jnp.dot(out.reshape(n * hh * ww, cc), wbn_ref[...],
                       preferred_element_type=jnp.float32)
               + bbn_ref[...]).reshape(n, hh, ww, -1)
        for i in range(num):                          # decoder: convT+pool+act fused
            wr, br = dec_wb[i]
            out = conv_stage(out, dec_pad[i], wr, br, 3, 1, de_act)
        o_ref[...] = out

    out_nhwc = pl.pallas_call(
        kernel,
        out_shape=out_shape,
        scratch_shapes=scratch,
    )(*inputs)
    return jnp.transpose(out_nhwc, (0, 3, 1, 2))                    # NHWC -> NCHW


# ----------------------------- pure-JAX reference -----------------------------
# Implements the ORIGINAL (unfused) formulation at HIGHEST precision, so it also
# validates the pool-folding algebra used by the Pallas kernel.

def _ref_pool(x):
    N, H, W, C = x.shape
    return x.reshape(N, H // 2, 2, W // 2, 2, C).mean(axis=(2, 4))


def ref_forward(x_nchw, params, para):
    en_act = acfnc_chose(para['Encode acfnc'])
    de_act = acfnc_chose(para['Decode acfnc'])
    L = len(para['Structure'])
    dn = ('NHWC', 'HWIO', 'NHWC')
    hi = jax.lax.Precision.HIGHEST

    out = jnp.transpose(x_nchw, (0, 2, 3, 1)).astype(jnp.float32)
    for i in range(L - 1):
        w, b = params['enc'][i]
        p = para['Padding'][i]
        out = jax.lax.conv_general_dilated(
            out, jnp.transpose(w, (2, 3, 1, 0)), (1, 1), [(p, p), (p, p)],
            dimension_numbers=dn, precision=hi) + b
        out = en_act(_ref_pool(out))
    wbn, bbn = params['bottleneck']
    out = jax.lax.conv_general_dilated(
        out, jnp.transpose(wbn, (2, 3, 1, 0)), (1, 1), [(0, 0), (0, 0)],
        dimension_numbers=dn, precision=hi) + bbn
    for i in range(L - 1):
        w, b = params['dec'][i]
        K = w.shape[2]
        s = para['Stride'][L - 1 + i]
        p = para['Padding'][L - 1 + i]
        w_hwio = jnp.transpose(w[:, :, ::-1, ::-1], (2, 3, 0, 1))
        out = jax.lax.conv_general_dilated(
            out, w_hwio, (1, 1), [(K - 1 - p, K - 1 - p), (K - 1 - p, K - 1 - p)],
            lhs_dilation=(s, s), dimension_numbers=dn, precision=hi) + b
        out = de_act(_ref_pool(out))
    return jnp.transpose(out, (0, 3, 1, 2))


# ----------------------------- main -------------------------------------------

if __name__ == "__main__":
    para = {
        'BottleNeck': 1,                       # int -> 1x1 Conv2d bottleneck
        'Structure': [4, 8, 16],
        'Encode acfnc': 'ReLU',
        'Decode acfnc': 'Tanh',
        'Kernel size': [3, 3, 4, 4],
        'Stride': [1, 1, 2, 2],
        'Padding': [1, 1, 1, 1],
        'Pooling': ['Average', (2, 2, 0)],
    }

    key = jax.random.PRNGKey(0)
    kx, kp = jax.random.split(key)
    x = jax.random.normal(kx, (2, 4, 16, 16), dtype=jnp.float32)   # NCHW input
    params = init_params(kp, para)
    prep = prepare_params(params, para)        # one-time weight prep (hoisted out)

    fwd = jax.jit(lambda xx, pp: cnna_forward(xx, pp, para))
    out = jax.block_until_ready(fwd(x, prep))

    ref = jax.block_until_ready(ref_forward(x, params, para))
    assert out.shape == ref.shape == (2, 4, 4, 4), (out.shape, ref.shape)
    max_err = float(jnp.max(jnp.abs(out - ref)))
    assert max_err < 2e-3, f"max abs error vs reference = {max_err}"

    print("KERNEL_OK")
</pallas_src>

<mosaic_0001>
module attributes {stable_mosaic.version = 11 : i64} {
  func.func @kernel(%arg0: memref<2x16x16x4xf32, #tpu.memory_space<vmem>>, %arg1: memref<64x8xf32, #tpu.memory_space<vmem>>, %arg2: memref<1x8xf32, #tpu.memory_space<vmem>>, %arg3: memref<128x16xf32, #tpu.memory_space<vmem>>, %arg4: memref<1x16xf32, #tpu.memory_space<vmem>>, %arg5: memref<16x16xf32, #tpu.memory_space<vmem>>, %arg6: memref<1x16xf32, #tpu.memory_space<vmem>>, %arg7: memref<144x8xf32, #tpu.memory_space<vmem>>, %arg8: memref<1x8xf32, #tpu.memory_space<vmem>>, %arg9: memref<72x4xf32, #tpu.memory_space<vmem>>, %arg10: memref<1x4xf32, #tpu.memory_space<vmem>>, %arg11: memref<2x4x4x4xf32, #tpu.memory_space<vmem>>, %arg12: memref<2x18x18x4xf32, #tpu.memory_space<vmem>>, %arg13: memref<2x10x10x8xf32, #tpu.memory_space<vmem>>, %arg14: memref<2x6x6x16xf32, #tpu.memory_space<vmem>>, %arg15: memref<2x6x6x8xf32, #tpu.memory_space<vmem>>) attributes {dimension_semantics = [], scalar_prefetch = 0 : i64, scratch_operands = 4 : i64, tpu.core_type = #tpu.core_type<tc>} {
    %c0 = arith.constant 0 : index
    %c0_0 = arith.constant 0 : index
    %c0_1 = arith.constant 0 : index
    %c0_2 = arith.constant 0 : index
    %0 = vector.load %arg0[%c0, %c0_0, %c0_1, %c0_2] : memref<2x16x16x4xf32, #tpu.memory_space<vmem>>, vector<2x16x16x4xf32>
    %cst = arith.constant 0.000000e+00 : f32
    %1 = vector.broadcast %cst : f32 to vector<2x1x18x4xf32>
    %cst_3 = arith.constant 0.000000e+00 : f32
    %2 = vector.broadcast %cst_3 : f32 to vector<2x18x1x4xf32>
    %c0_4 = arith.constant 0 : index
    %c0_5 = arith.constant 0 : index
    %c0_6 = arith.constant 0 : index
    %c0_7 = arith.constant 0 : index
    %3 = vector.load %arg12[%c0_4, %c0_5, %c0_6, %c0_7] : memref<2x18x18x4xf32, #tpu.memory_space<vmem>>, vector<2x1x18x4xf32>
    tpu.vector_store %arg12[%c0_4, %c0_5, %c0_6, %c0_7], %1 {strides = array<i32>} : memref<2x18x18x4xf32, #tpu.memory_space<vmem>>, vector<2x1x18x4xf32>,
    %c0_8 = arith.constant 0 : index
    %c17 = arith.constant 17 : index
    %c0_9 = arith.constant 0 : index
    %c0_10 = arith.constant 0 : index
    %4 = vector.load %arg12[%c0_8, %c17, %c0_9, %c0_10] : memref<2x18x18x4xf32, #tpu.memory_space<vmem>>, vector<2x1x18x4xf32>
    tpu.vector_store %arg12[%c0_8, %c17, %c0_9, %c0_10], %1 {strides = array<i32>} : memref<2x18x18x4xf32, #tpu.memory_space<vmem>>, vector<2x1x18x4xf32>,
    %c0_11 = arith.constant 0 : index
    %c0_12 = arith.constant 0 : index
    %c0_13 = arith.constant 0 : index
    %c0_14 = arith.constant 0 : index
    %5 = vector.load %arg12[%c0_11, %c0_12, %c0_13, %c0_14] : memref<2x18x18x4xf32, #tpu.memory_space<vmem>>, vector<2x18x1x4xf32>
    tpu.vector_store %arg12[%c0_11, %c0_12, %c0_13, %c0_14], %2 {strides = array<i32>} : memref<2x18x18x4xf32, #tpu.memory_space<vmem>>, vector<2x18x1x4xf32>,
    %c0_15 = arith.constant 0 : index
    %c0_16 = arith.constant 0 : index
    %c17_17 = arith.constant 17 : index
    %c0_18 = arith.constant 0 : index
    %6 = vector.load %arg12[%c0_15, %c0_16, %c17_17, %c0_18] : memref<2x18x18x4xf32, #tpu.memory_space<vmem>>, vector<2x18x1x4xf32>
    tpu.vector_store %arg12[%c0_15, %c0_16, %c17_17, %c0_18], %2 {strides = array<i32>} : memref<2x18x18x4xf32, #tpu.memory_space<vmem>>, vector<2x18x1x4xf32>,
    %c0_19 = arith.constant 0 : index
    %c1 = arith.constant 1 : index
    %c1_20 = arith.constant 1 : index
    %c0_21 = arith.constant 0 : index
    %7 = vector.load %arg12[%c0_19, %c1, %c1_20, %c0_21] : memref<2x18x18x4xf32, #tpu.memory_space<vmem>>, vector<2x16x16x4xf32>
    tpu.vector_store %arg12[%c0_19, %c1, %c1_20, %c0_21], %0 {strides = array<i32>} : memref<2x18x18x4xf32, #tpu.memory_space<vmem>>, vector<2x16x16x4xf32>,
    %c0_22 = arith.constant 0 : index
    %c0_23 = arith.constant 0 : index
    %c0_24 = arith.constant 0 : index
    %c0_25 = arith.constant 0 : index
    %8 = tpu.strided_load %arg12[%c0_22, %c0_23, %c0_24, %c0_25] {strides = array<i32: 1, 1, 2, 1>} : memref<2x18x18x4xf32, #tpu.memory_space<vmem>>, vector<2x18x8x4xf32>
    %9 = vector.shape_cast %8 : vector<2x18x8x4xf32> to vector<2x9x2x8x4xf32>
    %10 = vector.extract_strided_slice %9 {offsets = [0, 0, 0, 0, 0], sizes = [2, 9, 1, 8, 4], strides = [1, 1, 1, 1, 1]} : vector<2x9x2x8x4xf32> to vector<2x9x1x8x4xf32>
    %11 = vector.shape_cast %10 : vector<2x9x1x8x4xf32> to vector<2x9x8x4xf32>
    %12 = vector.extract_strided_slice %9 {offsets = [0, 0, 1, 0, 0], sizes = [2, 9, 1, 8, 4], strides = [1, 1, 1, 1, 1]} : vector<2x9x2x8x4xf32> to vector<2x9x1x8x4xf32>
    %13 = vector.shape_cast %12 : vector<2x9x1x8x4xf32> to vector<2x9x8x4xf32>
    %c0_26 = arith.constant 0 : index
    %c0_27 = arith.constant 0 : index
    %c1_28 = arith.constant 1 : index
    %c0_29 = arith.constant 0 : index
    %14 = tpu.strided_load %arg12[%c0_26, %c0_27, %c1_28, %c0_29] {strides = array<i32: 1, 1, 2, 1>} : memref<2x18x18x4xf32, #tpu.memory_space<vmem>>, vector<2x18x8x4xf32>
    %15 = vector.shape_cast %14 : vector<2x18x8x4xf32> to vector<2x9x2x8x4xf32>
    %16 = vector.extract_strided_slice %15 {offsets = [0, 0, 0, 0, 0], sizes = [2, 9, 1, 8, 4], strides = [1, 1, 1, 1, 1]} : vector<2x9x2x8x4xf32> to vector<2x9x1x8x4xf32>
    %17 = vector.shape_cast %16 : vector<2x9x1x8x4xf32> to vector<2x9x8x4xf32>
    %18 = vector.extract_strided_slice %15 {offsets = [0, 0, 1, 0, 0], sizes = [2, 9, 1, 8, 4], strides = [1, 1, 1, 1, 1]} : vector<2x9x2x8x4xf32> to vector<2x9x1x8x4xf32>
    %19 = vector.shape_cast %18 : vector<2x9x1x8x4xf32> to vector<2x9x8x4xf32>
    %c0_30 = arith.constant 0 : index
    %c0_31 = arith.constant 0 : index
    %c2 = arith.constant 2 : index
    %c0_32 = arith.constant 0 : index
    %20 = tpu.strided_load %arg12[%c0_30, %c0_31, %c2, %c0_32] {strides = array<i32: 1, 1, 2, 1>} : memref<2x18x18x4xf32, #tpu.memory_space<vmem>>, vector<2x18x8x4xf32>
    %21 = vector.shape_cast %20 : vector<2x18x8x4xf32> to vector<2x9x2x8x4xf32>
    %22 = vector.extract_strided_slice %21 {offsets = [0, 0, 0, 0, 0], sizes = [2, 9, 1, 8, 4], strides = [1, 1, 1, 1, 1]} : vector<2x9x2x8x4xf32> to vector<2x9x1x8x4xf32>
    %23 = vector.shape_cast %22 : vector<2x9x1x8x4xf32> to vector<2x9x8x4xf32>
    %24 = vector.extract_strided_slice %21 {offsets = [0, 0, 1, 0, 0], sizes = [2, 9, 1, 8, 4], strides = [1, 1, 1, 1, 1]} : vector<2x9x2x8x4xf32> to vector<2x9x1x8x4xf32>
    %25 = vector.shape_cast %24 : vector<2x9x1x8x4xf32> to vector<2x9x8x4xf32>
    %c0_33 = arith.constant 0 : index
    %c0_34 = arith.constant 0 : index
    %c3 = arith.constant 3 : index
    %c0_35 = arith.constant 0 : index
    %26 = tpu.strided_load %arg12[%c0_33, %c0_34, %c3, %c0_35] {strides = array<i32: 1, 1, 2, 1>} : memref<2x18x18x4xf32, #tpu.memory_space<vmem>>, vector<2x18x8x4xf32>
    %27 = vector.shape_cast %26 : vector<2x18x8x4xf32> to vector<2x9x2x8x4xf32>
    %28 = vector.extract_strided_slice %27 {offsets = [0, 0, 0, 0, 0], sizes = [2, 9, 1, 8, 4], strides = [1, 1, 1, 1, 1]} : vector<2x9x2x8x4xf32> to vector<2x9x1x8x4xf32>
    %29 = vector.shape_cast %28 : vector<2x9x1x8x4xf32> to vector<2x9x8x4xf32>
    %30 = vector.extract_strided_slice %27 {offsets = [0, 0, 1, 0, 0], sizes = [2, 9, 1, 8, 4], strides = [1, 1, 1, 1, 1]} : vector<2x9x2x8x4xf32> to vector<2x9x1x8x4xf32>
    %31 = vector.shape_cast %30 : vector<2x9x1x8x4xf32> to vector<2x9x8x4xf32>
    %32 = vector.extract_strided_slice %11 {offsets = [0, 0, 0, 0], sizes = [2, 8, 8, 4], strides = [1, 1, 1, 1]} : vector<2x9x8x4xf32> to vector<2x8x8x4xf32>
    %33 = vector.extract_strided_slice %17 {offsets = [0, 0, 0, 0], sizes = [2, 8, 8, 4], strides = [1, 1, 1, 1]} : vector<2x9x8x4xf32> to vector<2x8x8x4xf32>
    %34 = vector.extract_strided_slice %23 {offsets = [0, 0, 0, 0], sizes = [2, 8, 8, 4], strides = [1, 1, 1, 1]} : vector<2x9x8x4xf32> to vector<2x8x8x4xf32>
    %35 = vector.extract_strided_slice %29 {offsets = [0, 0, 0, 0], sizes = [2, 8, 8, 4], strides = [1, 1, 1, 1]} : vector<2x9x8x4xf32> to vector<2x8x8x4xf32>
    %36 = vector.extract_strided_slice %13 {offsets = [0, 0, 0, 0], sizes = [2, 8, 8, 4], strides = [1, 1, 1, 1]} : vector<2x9x8x4xf32> to vector<2x8x8x4xf32>
    %37 = vector.extract_strided_slice %19 {offsets = [0, 0, 0, 0], sizes = [2, 8, 8, 4], strides = [1, 1, 1, 1]} : vector<2x9x8x4xf32> to vector<2x8x8x4xf32>
    %38 = vector.extract_strided_slice %25 {offsets = [0, 0, 0, 0], sizes = [2, 8, 8, 4], strides = [1, 1, 1, 1]} : vector<2x9x8x4xf32> to vector<2x8x8x4xf32>
    %39 = vector.extract_strided_slice %31 {offsets = [0, 0, 0, 0], sizes = [2, 8, 8, 4], strides = [1, 1, 1, 1]} : vector<2x9x8x4xf32> to vector<2x8x8x4xf32>
    %40 = vector.extract_strided_slice %11 {offsets = [0, 1, 0, 0], sizes = [2, 8, 8, 4], strides = [1, 1, 1, 1]} : vector<2x9x8x4xf32> to vector<2x8x8x4xf32>
    %41 = vector.extract_strided_slice %17 {offsets = [0, 1, 0, 0], sizes = [2, 8, 8, 4], strides = [1, 1, 1, 1]} : vector<2x9x8x4xf32> to vector<2x8x8x4xf32>
    %42 = vector.extract_strided_slice %23 {offsets = [0, 1, 0, 0], sizes = [2, 8, 8, 4], strides = [1, 1, 1, 1]} : vector<2x9x8x4xf32> to vector<2x8x8x4xf32>
    %43 = vector.extract_strided_slice %29 {offsets = [0, 1, 0, 0], sizes = [2, 8, 8, 4], strides = [1, 1, 1, 1]} : vector<2x9x8x4xf32> to vector<2x8x8x4xf32>
    %44 = vector.extract_strided_slice %13 {offsets = [0, 1, 0, 0], sizes = [2, 8, 8, 4], strides = [1, 1, 1, 1]} : vector<2x9x8x4xf32> to vector<2x8x8x4xf32>
    %45 = vector.extract_strided_slice %19 {offsets = [0, 1, 0, 0], sizes = [2, 8, 8, 4], strides = [1, 1, 1, 1]} : vector<2x9x8x4xf32> to vector<2x8x8x4xf32>
    %46 = vector.extract_strided_slice %25 {offsets = [0, 1, 0, 0], sizes = [2, 8, 8, 4], strides = [1, 1, 1, 1]} : vector<2x9x8x4xf32> to vector<2x8x8x4xf32>
    %47 = vector.extract_strided_slice %31 {offsets = [0, 1, 0, 0], sizes = [2, 8, 8, 4], strides = [1, 1, 1, 1]} : vector<2x9x8x4xf32> to vector<2x8x8x4xf32>
    %48 = tpu.concatenate %32, %33, %34, %35, %36, %37, %38, %39, %40, %41, %42, %43, %44, %45, %46, %47 in 3 : vector<2x8x8x4xf32>, vector<2x8x8x4xf32>, vector<2x8x8x4xf32>, vector<2x8x8x4xf32>, vector<2x8x8x4xf32>, vector<2x8x8x4xf32>, vector<2x8x8x4xf32>, vector<2x8x8x4xf32>, vector<2x8x8x4xf32>, vector<2x8x8x4xf32>, vector<2x8x8x4xf32>, vector<2x8x8x4xf32>, vector<2x8x8x4xf32>, vector<2x8x8x4xf32>, vector<2x8x8x4xf32>, vector<2x8x8x4xf32> -> vector<2x8x8x64xf32>
    %49 = vector.shape_cast %48 : vector<2x8x8x64xf32> to vector<128x64xf32>
    %c0_36 = arith.constant 0 : index
    %c0_37 = arith.constant 0 : index
    %50 = vector.load %arg1[%c0_36, %c0_37] : memref<64x8xf32, #tpu.memory_space<vmem>>, vector<64x8xf32>
    %cst_38 = arith.constant dense<0.000000e+00> : vector<128x8xf32>
    %51 = tpu.matmul %49, %50, %cst_38 {dimension_numbers = #tpu.dot_dimension_numbers<[1], [0], [0], [1], [0, 0, 1, 1], [], []>} : vector<128x64xf32>, vector<64x8xf32>, vector<128x8xf32> -> vector<128x8xf32>
    %c0_39 = arith.constant 0 : index
    %c0_40 = arith.constant 0 : index
    %52 = vector.load %arg2[%c0_39, %c0_40] : memref<1x8xf32, #tpu.memory_space<vmem>>, vector<1x8xf32>
    %53 = vector.broadcast %52 : vector<1x8xf32> to vector<128x8xf32>
    %54 = arith.addf %51, %53 : vector<128x8xf32>
    %cst_41 = arith.constant 0.000000e+00 : f32
    %55 = vector.broadcast %cst_41 : f32 to vector<128x8xf32>
    %56 = arith.maximumf %54, %55 : vector<128x8xf32>
    %57 = vector.shape_cast %56 : vector<128x8xf32> to vector<2x8x8x8xf32>
    %cst_42 = arith.constant 0.000000e+00 : f32
    %58 = vector.broadcast %cst_42 : f32 to vector<2x1x10x8xf32>
    %cst_43 = arith.constant 0.000000e+00 : f32
    %59 = vector.broadcast %cst_43 : f32 to vector<2x10x1x8xf32>
    %c0_44 = arith.constant 0 : index
    %c0_45 = arith.constant 0 : index
    %c0_46 = arith.constant 0 : index
    %c0_47 = arith.constant 0 : index
    %60 = vector.load %arg13[%c0_44, %c0_45, %c0_46, %c0_47] : memref<2x10x10x8xf32, #tpu.memory_space<vmem>>, vector<2x1x10x8xf32>
    tpu.vector_store %arg13[%c0_44, %c0_45, %c0_46, %c0_47], %58 {strides = array<i32>} : memref<2x10x10x8xf32, #tpu.memory_space<vmem>>, vector<2x1x10x8xf32>,
    %c0_48 = arith.constant 0 : index
    %c9 = arith.constant 9 : index
    %c0_49 = arith.constant 0 : index
    %c0_50 = arith.constant 0 : index
    %61 = vector.load %arg13[%c0_48, %c9, %c0_49, %c0_50] : memref<2x10x10x8xf32, #tpu.memory_space<vmem>>, vector<2x1x10x8xf32>
    tpu.vector_store %arg13[%c0_48, %c9, %c0_49, %c0_50], %58 {strides = array<i32>} : memref<2x10x10x8xf32, #tpu.memory_space<vmem>>, vector<2x1x10x8xf32>,
    %c0_51 = arith.constant 0 : index
    %c0_52 = arith.constant 0 : index
    %c0_53 = arith.constant 0 : index
    %c0_54 = arith.constant 0 : index
    %62 = vector.load %arg13[%c0_51, %c0_52, %c0_53, %c0_54] : memref<2x10x10x8xf32, #tpu.memory_space<vmem>>, vector<2x10x1x8xf32>
    tpu.vector_store %arg13[%c0_51, %c0_52, %c0_53, %c0_54], %59 {strides = array<i32>} : memref<2x10x10x8xf32, #tpu.memory_space<vmem>>, vector<2x10x1x8xf32>,
    %c0_55 = arith.constant 0 : index
    %c0_56 = arith.constant 0 : index
    %c9_57 = arith.constant 9 : index
    %c0_58 = arith.constant 0 : index
    %63 = vector.load %arg13[%c0_55, %c0_56, %c9_57, %c0_58] : memref<2x10x10x8xf32, #tpu.memory_space<vmem>>, vector<2x10x1x8xf32>
    tpu.vector_store %arg13[%c0_55, %c0_56, %c9_57, %c0_58], %59 {strides = array<i32>} : memref<2x10x10x8xf32, #tpu.memory_space<vmem>>, vector<2x10x1x8xf32>,
    %c0_59 = arith.constant 0 : index
    %c1_60 = arith.constant 1 : index
    %c1_61 = arith.constant 1 : index
    %c0_62 = arith.constant 0 : index
    %64 = vector.load %arg13[%c0_59, %c1_60, %c1_61, %c0_62] : memref<2x10x10x8xf32, #tpu.memory_space<vmem>>, vector<2x8x8x8xf32>
    tpu.vector_store %arg13[%c0_59, %c1_60, %c1_61, %c0_62], %57 {strides = array<i32>} : memref<2x10x10x8xf32, #tpu.memory_space<vmem>>, vector<2x8x8x8xf32>,
    %c0_63 = arith.constant 0 : index
    %c0_64 = arith.constant 0 : index
    %c0_65 = arith.constant 0 : index
    %c0_66 = arith.constant 0 : index
    %65 = tpu.strided_load %arg13[%c0_63, %c0_64, %c0_65, %c0_66] {strides = array<i32: 1, 1, 2, 1>} : memref<2x10x10x8xf32, #tpu.memory_space<vmem>>, vector<2x10x4x8xf32>
    %66 = vector.shape_cast %65 : vector<2x10x4x8xf32> to vector<2x5x2x4x8xf32>
    %67 = vector.extract_strided_slice %66 {offsets = [0, 0, 0, 0, 0], sizes = [2, 5, 1, 4, 8], strides = [1, 1, 1, 1, 1]} : vector<2x5x2x4x8xf32> to vector<2x5x1x4x8xf32>
    %68 = vector.shape_cast %67 : vector<2x5x1x4x8xf32> to vector<2x5x4x8xf32>
    %69 = vector.extract_strided_slice %66 {offsets = [0, 0, 1, 0, 0], sizes = [2, 5, 1, 4, 8], strides = [1, 1, 1, 1, 1]} : vector<2x5x2x4x8xf32> to vector<2x5x1x4x8xf32>
    %70 = vector.shape_cast %69 : vector<2x5x1x4x8xf32> to vector<2x5x4x8xf32>
    %c0_67 = arith.constant 0 : index
    %c0_68 = arith.constant 0 : index
    %c1_69 = arith.constant 1 : index
    %c0_70 = arith.constant 0 : index
    %71 = tpu.strided_load %arg13[%c0_67, %c0_68, %c1_69, %c0_70] {strides = array<i32: 1, 1, 2, 1>} : memref<2x10x10x8xf32, #tpu.memory_space<vmem>>, vector<2x10x4x8xf32>
    %72 = vector.shape_cast %71 : vector<2x10x4x8xf32> to vector<2x5x2x4x8xf32>
    %73 = vector.extract_strided_slice %72 {offsets = [0, 0, 0, 0, 0], sizes = [2, 5, 1, 4, 8], strides = [1, 1, 1, 1, 1]} : vector<2x5x2x4x8xf32> to vector<2x5x1x4x8xf32>
    %74 = vector.shape_cast %73 : vector<2x5x1x4x8xf32> to vector<2x5x4x8xf32>
    %75 = vector.extract_strided_slice %72 {offsets = [0, 0, 1, 0, 0], sizes = [2, 5, 1, 4, 8], strides = [1, 1, 1, 1, 1]} : vector<2x5x2x4x8xf32> to vector<2x5x1x4x8xf32>
    %76 = vector.shape_cast %75 : vector<2x5x1x4x8xf32> to vector<2x5x4x8xf32>
    %c0_71 = arith.constant 0 : index
    %c0_72 = arith.constant 0 : index
    %c2_73 = arith.constant 2 : index
    %c0_74 = arith.constant 0 : index
    %77 = tpu.strided_load %arg13[%c0_71, %c0_72, %c2_73, %c0_74] {strides = array<i32: 1, 1, 2, 1>} : memref<2x10x10x8xf32, #tpu.memory_space<vmem>>, vector<2x10x4x8xf32>
    %78 = vector.shape_cast %77 : vector<2x10x4x8xf32> to vector<2x5x2x4x8xf32>
    %79 = vector.extract_strided_slice %78 {offsets = [0, 0, 0, 0, 0], sizes = [2, 5, 1, 4, 8], strides = [1, 1, 1, 1, 1]} : vector<2x5x2x4x8xf32> to vector<2x5x1x4x8xf32>
    %80 = vector.shape_cast %79 : vector<2x5x1x4x8xf32> to vector<2x5x4x8xf32>
    %81 = vector.extract_strided_slice %78 {offsets = [0, 0, 1, 0, 0], sizes = [2, 5, 1, 4, 8], strides = [1, 1, 1, 1, 1]} : vector<2x5x2x4x8xf32> to vector<2x5x1x4x8xf32>
    %82 = vector.shape_cast %81 : vector<2x5x1x4x8xf32> to vector<2x5x4x8xf32>
    %c0_75 = arith.constant 0 : index
    %c0_76 = arith.constant 0 : index
    %c3_77 = arith.constant 3 : index
    %c0_78 = arith.constant 0 : index
    %83 = tpu.strided_load %arg13[%c0_75, %c0_76, %c3_77, %c0_78] {strides = array<i32: 1, 1, 2, 1>} : memref<2x10x10x8xf32, #tpu.memory_space<vmem>>, vector<2x10x4x8xf32>
    %84 = vector.shape_cast %83 : vector<2x10x4x8xf32> to vector<2x5x2x4x8xf32>
    %85 = vector.extract_strided_slice %84 {offsets = [0, 0, 0, 0, 0], sizes = [2, 5, 1, 4, 8], strides = [1, 1, 1, 1, 1]} : vector<2x5x2x4x8xf32> to vector<2x5x1x4x8xf32>
    %86 = vector.shape_cast %85 : vector<2x5x1x4x8xf32> to vector<2x5x4x8xf32>
    %87 = vector.extract_strided_slice %84 {offsets = [0, 0, 1, 0, 0], sizes = [2, 5, 1, 4, 8], strides = [1, 1, 1, 1, 1]} : vector<2x5x2x4x8xf32> to vector<2x5x1x4x8xf32>
    %88 = vector.shape_cast %87 : vector<2x5x1x4x8xf32> to vector<2x5x4x8xf32>
    %89 = vector.extract_strided_slice %68 {offsets = [0, 0, 0, 0], sizes = [2, 4, 4, 8], strides = [1, 1, 1, 1]} : vector<2x5x4x8xf32> to vector<2x4x4x8xf32>
    %90 = vector.extract_strided_slice %74 {offsets = [0, 0, 0, 0], sizes = [2, 4, 4, 8], strides = [1, 1, 1, 1]} : vector<2x5x4x8xf32> to vector<2x4x4x8xf32>
    %91 = vector.extract_strided_slice %80 {offsets = [0, 0, 0, 0], sizes = [2, 4, 4, 8], strides = [1, 1, 1, 1]} : vector<2x5x4x8xf32> to vector<2x4x4x8xf32>
    %92 = vector.extract_strided_slice %86 {offsets = [0, 0, 0, 0], sizes = [2, 4, 4, 8], strides = [1, 1, 1, 1]} : vector<2x5x4x8xf32> to vector<2x4x4x8xf32>
    %93 = vector.extract_strided_slice %70 {offsets = [0, 0, 0, 0], sizes = [2, 4, 4, 8], strides = [1, 1, 1, 1]} : vector<2x5x4x8xf32> to vector<2x4x4x8xf32>
    %94 = vector.extract_strided_slice %76 {offsets = [0, 0, 0, 0], sizes = [2, 4, 4, 8], strides = [1, 1, 1, 1]} : vector<2x5x4x8xf32> to vector<2x4x4x8xf32>
    %95 = vector.extract_strided_slice %82 {offsets = [0, 0, 0, 0], sizes = [2, 4, 4, 8], strides = [1, 1, 1, 1]} : vector<2x5x4x8xf32> to vector<2x4x4x8xf32>
    %96 = vector.extract_strided_slice %88 {offsets = [0, 0, 0, 0], sizes = [2, 4, 4, 8], strides = [1, 1, 1, 1]} : vector<2x5x4x8xf32> to vector<2x4x4x8xf32>
    %97 = vector.extract_strided_slice %68 {offsets = [0, 1, 0, 0], sizes = [2, 4, 4, 8], strides = [1, 1, 1, 1]} : vector<2x5x4x8xf32> to vector<2x4x4x8xf32>
    %98 = vector.extract_strided_slice %74 {offsets = [0, 1, 0, 0], sizes = [2, 4, 4, 8], strides = [1, 1, 1, 1]} : vector<2x5x4x8xf32> to vector<2x4x4x8xf32>
    %99 = vector.extract_strided_slice %80 {offsets = [0, 1, 0, 0], sizes = [2, 4, 4, 8], strides = [1, 1, 1, 1]} : vector<2x5x4x8xf32> to vector<2x4x4x8xf32>
    %100 = vector.extract_strided_slice %86 {offsets = [0, 1, 0, 0], sizes = [2, 4, 4, 8], strides = [1, 1, 1, 1]} : vector<2x5x4x8xf32> to vector<2x4x4x8xf32>
    %101 = vector.extract_strided_slice %70 {offsets = [0, 1, 0, 0], sizes = [2, 4, 4, 8], strides = [1, 1, 1, 1]} : vector<2x5x4x8xf32> to vector<2x4x4x8xf32>
    %102 = vector.extract_strided_slice %76 {offsets = [0, 1, 0, 0], sizes = [2, 4, 4, 8], strides = [1, 1, 1, 1]} : vector<2x5x4x8xf32> to vector<2x4x4x8xf32>
    %103 = vector.extract_strided_slice %82 {offsets = [0, 1, 0, 0], sizes = [2, 4, 4, 8], strides = [1, 1, 1, 1]} : vector<2x5x4x8xf32> to vector<2x4x4x8xf32>
    %104 = vector.extract_strided_slice %88 {offsets = [0, 1, 0, 0], sizes = [2, 4, 4, 8], strides = [1, 1, 1, 1]} : vector<2x5x4x8xf32> to vector<2x4x4x8xf32>
    %105 = tpu.concatenate %89, %90, %91, %92, %93, %94, %95, %96, %97, %98, %99, %100, %101, %102, %103, %104 in 3 : vector<2x4x4x8xf32>, vector<2x4x4x8xf32>, vector<2x4x4x8xf32>, vector<2x4x4x8xf32>, vector<2x4x4x8xf32>, vector<2x4x4x8xf32>, vector<2x4x4x8xf32>, vector<2x4x4x8xf32>, vector<2x4x4x8xf32>, vector<2x4x4x8xf32>, vector<2x4x4x8xf32>, vector<2x4x4x8xf32>, vector<2x4x4x8xf32>, vector<2x4x4x8xf32>, vector<2x4x4x8xf32>, vector<2x4x4x8xf32> -> vector<2x4x4x128xf32>
    %106 = vector.shape_cast %105 : vector<2x4x4x128xf32> to vector<32x128xf32>
    %c0_79 = arith.constant 0 : index
    %c0_80 = arith.constant 0 : index
    %107 = vector.load %arg3[%c0_79, %c0_80] : memref<128x16xf32, #tpu.memory_space<vmem>>, vector<128x16xf32>
    %cst_81 = arith.constant dense<0.000000e+00> : vector<32x16xf32>
    %108 = tpu.matmul %106, %107, %cst_81 {dimension_numbers = #tpu.dot_dimension_numbers<[1], [0], [0], [1], [0, 0, 1, 1], [], []>} : vector<32x128xf32>, vector<128x16xf32>, vector<32x16xf32> -> vector<32x16xf32>
    %c0_82 = arith.constant 0 : index
    %c0_83 = arith.constant 0 : index
    %109 = vector.load %arg4[%c0_82, %c0_83] : memref<1x16xf32, #tpu.memory_space<vmem>>, vector<1x16xf32>
    %110 = vector.broadcast %109 : vector<1x16xf32> to vector<32x16xf32>
    %111 = arith.addf %108, %110 : vector<32x16xf32>
    %cst_84 = arith.constant 0.000000e+00 : f32
    %112 = vector.broadcast %cst_84 : f32 to vector<32x16xf32>
    %113 = arith.maximumf %111, %112 : vector<32x16xf32>
    %114 = vector.shape_cast %113 : vector<32x16xf32> to vector<2x4x4x16xf32>
    %115 = vector.shape_cast %114 : vector<2x4x4x16xf32> to vector<32x16xf32>
    %c0_85 = arith.constant 0 : index
    %c0_86 = arith.constant 0 : index
    %116 = vector.load %arg5[%c0_85, %c0_86] : memref<16x16xf32, #tpu.memory_space<vmem>>, vector<16x16xf32>
    %cst_87 = arith.constant dense<0.000000e+00> : vector<32x16xf32>
    %117 = tpu.matmul %115, %116, %cst_87 {dimension_numbers = #tpu.dot_dimension_numbers<[1], [0], [0], [1], [0, 0, 1, 1], [], []>} : vector<32x16xf32>, vector<16x16xf32>, vector<32x16xf32> -> vector<32x16xf32>
    %c0_88 = arith.constant 0 : index
    %c0_89 = arith.constant 0 : index
    %118 = vector.load %arg6[%c0_88, %c0_89] : memref<1x16xf32, #tpu.memory_space<vmem>>, vector<1x16xf32>
    %119 = vector.broadcast %118 : vector<1x16xf32> to vector<32x16xf32>
    %120 = arith.addf %117, %119 : vector<32x16xf32>
    %121 = vector.shape_cast %120 : vector<32x16xf32> to vector<2x4x4x16xf32>
    %cst_90 = arith.constant 0.000000e+00 : f32
    %122 = vector.broadcast %cst_90 : f32 to vector<2x1x6x16xf32>
    %cst_91 = arith.constant 0.000000e+00 : f32
    %123 = vector.broadcast %cst_91 : f32 to vector<2x6x1x16xf32>
    %c0_92 = arith.constant 0 : index
    %c0_93 = arith.constant 0 : index
    %c0_94 = arith.constant 0 : index
    %c0_95 = arith.constant 0 : index
    %124 = vector.load %arg14[%c0_92, %c0_93, %c0_94, %c0_95] : memref<2x6x6x16xf32, #tpu.memory_space<vmem>>, vector<2x1x6x16xf32>
    tpu.vector_store %arg14[%c0_92, %c0_93, %c0_94, %c0_95], %122 {strides = array<i32>} : memref<2x6x6x16xf32, #tpu.memory_space<vmem>>, vector<2x1x6x16xf32>,
    %c0_96 = arith.constant 0 : index
    %c5 = arith.constant 5 : index
    %c0_97 = arith.constant 0 : index
    %c0_98 = arith.constant 0 : index
    %125 = vector.load %arg14[%c0_96, %c5, %c0_97, %c0_98] : memref<2x6x6x16xf32, #tpu.memory_space<vmem>>, vector<2x1x6x16xf32>
    tpu.vector_store %arg14[%c0_96, %c5, %c0_97, %c0_98], %122 {strides = array<i32>} : memref<2x6x6x16xf32, #tpu.memory_space<vmem>>, vector<2x1x6x16xf32>,
    %c0_99 = arith.constant 0 : index
    %c0_100 = arith.constant 0 : index
    %c0_101 = arith.constant 0 : index
    %c0_102 = arith.constant 0 : index
    %126 = vector.load %arg14[%c0_99, %c0_100, %c0_101, %c0_102] : memref<2x6x6x16xf32, #tpu.memory_space<vmem>>, vector<2x6x1x16xf32>
    tpu.vector_store %arg14[%c0_99, %c0_100, %c0_101, %c0_102], %123 {strides = array<i32>} : memref<2x6x6x16xf32, #tpu.memory_space<vmem>>, vector<2x6x1x16xf32>,
    %c0_103 = arith.constant 0 : index
    %c0_104 = arith.constant 0 : index
    %c5_105 = arith.constant 5 : index
    %c0_106 = arith.constant 0 : index
    %127 = vector.load %arg14[%c0_103, %c0_104, %c5_105, %c0_106] : memref<2x6x6x16xf32, #tpu.memory_space<vmem>>, vector<2x6x1x16xf32>
    tpu.vector_store %arg14[%c0_103, %c0_104, %c5_105, %c0_106], %123 {strides = array<i32>} : memref<2x6x6x16xf32, #tpu.memory_space<vmem>>, vector<2x6x1x16xf32>,
    %c0_107 = arith.constant 0 : index
    %c1_108 = arith.constant 1 : index
    %c1_109 = arith.constant 1 : index
    %c0_110 = arith.constant 0 : index
    %128 = vector.load %arg14[%c0_107, %c1_108, %c1_109, %c0_110] : memref<2x6x6x16xf32, #tpu.memory_space<vmem>>, vector<2x4x4x16xf32>
    tpu.vector_store %arg14[%c0_107, %c1_108, %c1_109, %c0_110], %121 {strides = array<i32>} : memref<2x6x6x16xf32, #tpu.memory_space<vmem>>, vector<2x4x4x16xf32>,
    %c0_111 = arith.constant 0 : index
    %c0_112 = arith.constant 0 : index
    %c0_113 = arith.constant 0 : index
    %c0_114 = arith.constant 0 : index
    %129 = vector.load %arg14[%c0_111, %c0_112, %c0_113, %c0_114] : memref<2x6x6x16xf32, #tpu.memory_space<vmem>>, vector<2x4x4x16xf32>
    %c0_115 = arith.constant 0 : index
    %c0_116 = arith.constant 0 : index
    %c1_117 = arith.constant 1 : index
    %c0_118 = arith.constant 0 : index
    %130 = vector.load %arg14[%c0_115, %c0_116, %c1_117, %c0_118] : memref<2x6x6x16xf32, #tpu.memory_space<vmem>>, vector<2x4x4x16xf32>
    %c0_119 = arith.constant 0 : index
    %c0_120 = arith.constant 0 : index
    %c2_121 = arith.constant 2 : index
    %c0_122 = arith.constant 0 : index
    %131 = vector.load %arg14[%c0_119, %c0_120, %c2_121, %c0_122] : memref<2x6x6x16xf32, #tpu.memory_space<vmem>>, vector<2x4x4x16xf32>
    %c0_123 = arith.constant 0 : index
    %c1_124 = arith.constant 1 : index
    %c0_125 = arith.constant 0 : index
    %c0_126 = arith.constant 0 : index
    %132 = vector.load %arg14[%c0_123, %c1_124, %c0_125, %c0_126] : memref<2x6x6x16xf32, #tpu.memory_space<vmem>>, vector<2x4x4x16xf32>
    %c0_127 = arith.constant 0 : index
    %c1_128 = arith.constant 1 : index
    %c1_129 = arith.constant 1 : index
    %c0_130 = arith.constant 0 : index
    %133 = vector.load %arg14[%c0_127, %c1_128, %c1_129, %c0_130] : memref<2x6x6x16xf32, #tpu.memory_space<vmem>>, vector<2x4x4x16xf32>
    %c0_131 = arith.constant 0 : index
    %c1_132 = arith.constant 1 : index
    %c2_133 = arith.constant 2 : index
    %c0_134 = arith.constant 0 : index
    %134 = vector.load %arg14[%c0_131, %c1_132, %c2_133, %c0_134] : memref<2x6x6x16xf32, #tpu.memory_space<vmem>>, vector<2x4x4x16xf32>
    %c0_135 = arith.constant 0 : index
    %c2_136 = arith.constant 2 : index
    %c0_137 = arith.constant 0 : index
    %c0_138 = arith.constant 0 : index
    %135 = vector.load %arg14[%c0_135, %c2_136, %c0_137, %c0_138] : memref<2x6x6x16xf32, #tpu.memory_space<vmem>>, vector<2x4x4x16xf32>
    %c0_139 = arith.constant 0 : index
    %c2_140 = arith.constant 2 : index
    %c1_141 = arith.constant 1 : index
    %c0_142 = arith.constant 0 : index
    %136 = vector.load %arg14[%c0_139, %c2_140, %c1_141, %c0_142] : memref<2x6x6x16xf32, #tpu.memory_space<vmem>>, vector<2x4x4x16xf32>
    %c0_143 = arith.constant 0 : index
    %c2_144 = arith.constant 2 : index
    %c2_145 = arith.constant 2 : index
    %c0_146 = arith.constant 0 : index
    %137 = vector.load %arg14[%c0_143, %c2_144, %c2_145, %c0_146] : memref<2x6x6x16xf32, #tpu.memory_space<vmem>>, vector<2x4x4x16xf32>
    %138 = tpu.concatenate %129, %130, %131, %132, %133, %134, %135, %136, %137 in 3 : vector<2x4x4x16xf32>, vector<2x4x4x16xf32>, vector<2x4x4x16xf32>, vector<2x4x4x16xf32>, vector<2x4x4x16xf32>, vector<2x4x4x16xf32>, vector<2x4x4x16xf32>, vector<2x4x4x16xf32>, vector<2x4x4x16xf32> -> vector<2x4x4x144xf32>
    %139 = vector.shape_cast %138 : vector<2x4x4x144xf32> to vector<32x144xf32>
    %c0_147 = arith.constant 0 : index
    %c0_148 = arith.constant 0 : index
    %140 = vector.load %arg7[%c0_147, %c0_148] : memref<144x8xf32, #tpu.memory_space<vmem>>, vector<144x8xf32>
    %cst_149 = arith.constant dense<0.000000e+00> : vector<32x8xf32>
    %141 = tpu.matmul %139, %140, %cst_149 {dimension_numbers = #tpu.dot_dimension_numbers<[1], [0], [0], [1], [0, 0, 1, 1], [], []>} : vector<32x144xf32>, vector<144x8xf32>, vector<32x8xf32> -> vector<32x8xf32>
    %c0_150 = arith.constant 0 : index
    %c0_151 = arith.constant 0 : index
    %142 = vector.load %arg8[%c0_150, %c0_151] : memref<1x8xf32, #tpu.memory_space<vmem>>, vector<1x8xf32>
    %143 = vector.broadcast %142 : vector<1x8xf32> to vector<32x8xf32>
    %144 = arith.addf %141, %143 : vector<32x8xf32>
    %145 = math.tanh %144 : vector<32x8xf32>
    %146 = vector.shape_cast %145 : vector<32x8xf32> to vector<2x4x4x8xf32>
    %cst_152 = arith.constant 0.000000e+00 : f32
    %147 = vector.broadcast %cst_152 : f32 to vector<2x1x6x8xf32>
    %cst_153 = arith.constant 0.000000e+00 : f32
    %148 = vector.broadcast %cst_153 : f32 to vector<2x6x1x8xf32>
    %c0_154 = arith.constant 0 : index
    %c0_155 = arith.constant 0 : index
    %c0_156 = arith.constant 0 : index
    %c0_157 = arith.constant 0 : index
    %149 = vector.load %arg15[%c0_154, %c0_155, %c0_156, %c0_157] : memref<2x6x6x8xf32, #tpu.memory_space<vmem>>, vector<2x1x6x8xf32>
    tpu.vector_store %arg15[%c0_154, %c0_155, %c0_156, %c0_157], %147 {strides = array<i32>} : memref<2x6x6x8xf32, #tpu.memory_space<vmem>>, vector<2x1x6x8xf32>,
    %c0_158 = arith.constant 0 : index
    %c5_159 = arith.constant 5 : index
    %c0_160 = arith.constant 0 : index
    %c0_161 = arith.constant 0 : index
    %150 = vector.load %arg15[%c0_158, %c5_159, %c0_160, %c0_161] : memref<2x6x6x8xf32, #tpu.memory_space<vmem>>, vector<2x1x6x8xf32>
    tpu.vector_store %arg15[%c0_158, %c5_159, %c0_160, %c0_161], %147 {strides = array<i32>} : memref<2x6x6x8xf32, #tpu.memory_space<vmem>>, vector<2x1x6x8xf32>,
    %c0_162 = arith.constant 0 : index
    %c0_163 = arith.constant 0 : index
    %c0_164 = arith.constant 0 : index
    %c0_165 = arith.constant 0 : index
    %151 = vector.load %arg15[%c0_162, %c0_163, %c0_164, %c0_165] : memref<2x6x6x8xf32, #tpu.memory_space<vmem>>, vector<2x6x1x8xf32>
    tpu.vector_store %arg15[%c0_162, %c0_163, %c0_164, %c0_165], %148 {strides = array<i32>} : memref<2x6x6x8xf32, #tpu.memory_space<vmem>>, vector<2x6x1x8xf32>,
    %c0_166 = arith.constant 0 : index
    %c0_167 = arith.constant 0 : index
    %c5_168 = arith.constant 5 : index
    %c0_169 = arith.constant 0 : index
    %152 = vector.load %arg15[%c0_166, %c0_167, %c5_168, %c0_169] : memref<2x6x6x8xf32, #tpu.memory_space<vmem>>, vector<2x6x1x8xf32>
    tpu.vector_store %arg15[%c0_166, %c0_167, %c5_168, %c0_169], %148 {strides = array<i32>} : memref<2x6x6x8xf32, #tpu.memory_space<vmem>>, vector<2x6x1x8xf32>,
    %c0_170 = arith.constant 0 : index
    %c1_171 = arith.constant 1 : index
    %c1_172 = arith.constant 1 : index
    %c0_173 = arith.constant 0 : index
    %153 = vector.load %arg15[%c0_170, %c1_171, %c1_172, %c0_173] : memref<2x6x6x8xf32, #tpu.memory_space<vmem>>, vector<2x4x4x8xf32>
    tpu.vector_store %arg15[%c0_170, %c1_171, %c1_172, %c0_173], %146 {strides = array<i32>} : memref<2x6x6x8xf32, #tpu.memory_space<vmem>>, vector<2x4x4x8xf32>,
    %c0_174 = arith.constant 0 : index
    %c0_175 = arith.constant 0 : index
    %c0_176 = arith.constant 0 : index
    %c0_177 = arith.constant 0 : index
    %154 = vector.load %arg15[%c0_174, %c0_175, %c0_176, %c0_177] : memref<2x6x6x8xf32, #tpu.memory_space<vmem>>, vector<2x4x4x8xf32>
    %c0_178 = arith.constant 0 : index
    %c0_179 = arith.constant 0 : index
    %c1_180 = arith.constant 1 : index
    %c0_181 = arith.constant 0 : index
    %155 = vector.load %arg15[%c0_178, %c0_179, %c1_180, %c0_181] : memref<2x6x6x8xf32, #tpu.memory_space<vmem>>, vector<2x4x4x8xf32>
    %c0_182 = arith.constant 0 : index
    %c0_183 = arith.constant 0 : index
    %c2_184 = arith.constant 2 : index
    %c0_185 = arith.constant 0 : index
    %156 = vector.load %arg15[%c0_182, %c0_183, %c2_184, %c0_185] : memref<2x6x6x8xf32, #tpu.memory_space<vmem>>, vector<2x4x4x8xf32>
    %c0_186 = arith.constant 0 : index
    %c1_187 = arith.constant 1 : index
    %c0_188 = arith.constant 0 : index
    %c0_189 = arith.constant 0 : index
    %157 = vector.load %arg15[%c0_186, %c1_187, %c0_188, %c0_189] : memref<2x6x6x8xf32, #tpu.memory_space<vmem>>, vector<2x4x4x8xf32>
    %c0_190 = arith.constant 0 : index
    %c1_191 = arith.constant 1 : index
    %c1_192 = arith.constant 1 : index
    %c0_193 = arith.constant 0 : index
    %158 = vector.load %arg15[%c0_190, %c1_191, %c1_192, %c0_193] : memref<2x6x6x8xf32, #tpu.memory_space<vmem>>, vector<2x4x4x8xf32>
    %c0_194 = arith.constant 0 : index
    %c1_195 = arith.constant 1 : index
    %c2_196 = arith.constant 2 : index
    %c0_197 = arith.constant 0 : index
    %159 = vector.load %arg15[%c0_194, %c1_195, %c2_196, %c0_197] : memref<2x6x6x8xf32, #tpu.memory_space<vmem>>, vector<2x4x4x8xf32>
    %c0_198 = arith.constant 0 : index
    %c2_199 = arith.constant 2 : index
    %c0_200 = arith.constant 0 : index
    %c0_201 = arith.constant 0 : index
    %160 = vector.load %arg15[%c0_198, %c2_199, %c0_200, %c0_201] : memref<2x6x6x8xf32, #tpu.memory_space<vmem>>, vector<2x4x4x8xf32>
    %c0_202 = arith.constant 0 : index
    %c2_203 = arith.constant 2 : index
    %c1_204 = arith.constant 1 : index
    %c0_205 = arith.constant 0 : index
    %161 = vector.load %arg15[%c0_202, %c2_203, %c1_204, %c0_205] : memref<2x6x6x8xf32, #tpu.memory_space<vmem>>, vector<2x4x4x8xf32>
    %c0_206 = arith.constant 0 : index
    %c2_207 = arith.constant 2 : index
    %c2_208 = arith.constant 2 : index
    %c0_209 = arith.constant 0 : index
    %162 = vector.load %arg15[%c0_206, %c2_207, %c2_208, %c0_209] : memref<2x6x6x8xf32, #tpu.memory_space<vmem>>, vector<2x4x4x8xf32>
    %163 = tpu.concatenate %154, %155, %156, %157, %158, %159, %160, %161, %162 in 3 : vector<2x4x4x8xf32>, vector<2x4x4x8xf32>, vector<2x4x4x8xf32>, vector<2x4x4x8xf32>, vector<2x4x4x8xf32>, vector<2x4x4x8xf32>, vector<2x4x4x8xf32>, vector<2x4x4x8xf32>, vector<2x4x4x8xf32> -> vector<2x4x4x72xf32>
    %164 = vector.shape_cast %163 : vector<2x4x4x72xf32> to vector<32x72xf32>
    %c0_210 = arith.constant 0 : index
    %c0_211 = arith.constant 0 : index
    %165 = vector.load %arg9[%c0_210, %c0_211] : memref<72x4xf32, #tpu.memory_space<vmem>>, vector<72x4xf32>
    %cst_212 = arith.constant dense<0.000000e+00> : vector<32x4xf32>
    %166 = tpu.matmul %164, %165, %cst_212 {dimension_numbers = #tpu.dot_dimension_numbers<[1], [0], [0], [1], [0, 0, 1, 1], [], []>} : vector<32x72xf32>, vector<72x4xf32>, vector<32x4xf32> -> vector<32x4xf32>
    %c0_213 = arith.constant 0 : index
    %c0_214 = arith.constant 0 : index
    %167 = vector.load %arg10[%c0_213, %c0_214] : memref<1x4xf32, #tpu.memory_space<vmem>>, vector<1x4xf32>
    %168 = vector.broadcast %167 : vector<1x4xf32> to vector<32x4xf32>
    %169 = arith.addf %166, %168 : vector<32x4xf32>
    %170 = math.tanh %169 : vector<32x4xf32>
    %171 = vector.shape_cast %170 : vector<32x4xf32> to vector<2x4x4x4xf32>
    %c0_215 = arith.constant 0 : index
    %c0_216 = arith.constant 0 : index
    %c0_217 = arith.constant 0 : index
    %c0_218 = arith.constant 0 : index
    %172 = vector.load %arg11[%c0_215, %c0_216, %c0_217, %c0_218] : memref<2x4x4x4xf32, #tpu.memory_space<vmem>>, vector<2x4x4x4xf32>
    tpu.vector_store %arg11[%c0_215, %c0_216, %c0_217, %c0_218], %171 {strides = array<i32>} : memref<2x4x4x4xf32, #tpu.memory_space<vmem>>, vector<2x4x4x4xf32>,
    return
  }
}

</mosaic_0001>

<llo_original>
// kernel: _lambda_.1
$region0: #{_lambda_.1}
  #allocation0 [shape = 'u32[]', space=smem, size = 0x4, offset = 0x4, fixed_abs, tag = 'smem constant byte address 0x4 - core index']
  #allocation1 [shape = 'u32[144,128]{1,0:T(1,128)}', space=vmem, size = 0x12000, scoped, tag = 'internal scratch']
  #allocation2 [shape = 'f32[2,18,18,4]{3,2,1,0:T(8,128)}', space=vmem, size = 0x6c000, scoped, tag = 'scratch operand']
  #allocation3 [shape = 'f32[2,10,10,8]{3,2,1,0:T(8,128)}', space=vmem, size = 0x28000, scoped, tag = 'scratch operand']
  #allocation4 [shape = 'f32[2,6,6,16]{3,2,1,0:T(8,128)}', space=vmem, size = 0xc000, scoped, tag = 'scratch operand']
  #allocation5 [shape = 'f32[2,6,6,8]{3,2,1,0:T(8,128)}', space=vmem, size = 0xc000, scoped, tag = 'scratch operand']
  %s0 = inlined_call_operand.vmem [shape: f32[2,16,16,4], index: 0, kind: input, shape index: {}]
  %s1 = inlined_call_operand.vmem [shape: f32[64,8], index: 1, kind: input, shape index: {}]
  %s2 = inlined_call_operand.vmem [shape: f32[1,8], index: 2, kind: input, shape index: {}]
  %s3 = inlined_call_operand.vmem [shape: f32[128,16], index: 3, kind: input, shape index: {}]
  %s4 = inlined_call_operand.vmem [shape: f32[1,16], index: 4, kind: input, shape index: {}]
  %s5 = inlined_call_operand.vmem [shape: f32[16,16], index: 5, kind: input, shape index: {}]
  %s6 = inlined_call_operand.vmem [shape: f32[1,16], index: 6, kind: input, shape index: {}]
  %s7 = inlined_call_operand.vmem [shape: f32[144,8], index: 7, kind: input, shape index: {}]
  %s8 = inlined_call_operand.vmem [shape: f32[1,8], index: 8, kind: input, shape index: {}]
  %s9 = inlined_call_operand.vmem [shape: f32[72,4], index: 9, kind: input, shape index: {}]
  %s10 = inlined_call_operand.vmem [shape: f32[1,4], index: 10, kind: input, shape index: {}]
  %s11 = inlined_call_operand.vmem [shape: f32[2,4,4,4], index: 11, kind: output, shape index: {}]
  %s12 = sld [smem:[#allocation0]]
  $region54: #{_lambda_.1} parent=0
    _
  %s14 = ssub.s32 1, %s12
  %s15 = scalar_select 0, %s14, %s12
  // Predicated region
  $region2: #{_lambda_.1} parent=0 // pred_check
    _
  $region3: #{_lambda_.1} parent=0 // pred_check_branch
    %17 = sbr.rel (0) target = $region5
  $region4: #{_lambda_.1} parent=0 // pred_region
    _
  $region5: #{_lambda_.1} parent=0 // pred_fallthru
    _
  // Predicated region
  $region6: #{_lambda_.1} parent=0 // pred_check
    _
  $region7: #{_lambda_.1} parent=0 // pred_check_branch
    %19 = sbr.rel (0) target = $region9
  $region8: #{_lambda_.1} parent=0 // pred_region
    _
  $region9: #{_lambda_.1} parent=0 // pred_fallthru
    _
  // Predicated region
  $region10: #{_lambda_.1} parent=0 // pred_check
    _
  $region11: #{_lambda_.1} parent=0 // pred_check_branch
    %21 = sbr.rel (0) target = $region13
  $region12: #{_lambda_.1} parent=0 // pred_region
    _
  $region13: #{_lambda_.1} parent=0 // pred_fallthru
    _
  // Predicated region
  $region14: #{_lambda_.1} parent=0 // pred_check
    _
  $region15: #{_lambda_.1} parent=0 // pred_check_branch
    %23 = sbr.rel (0) target = $region17
  $region16: #{_lambda_.1} parent=0 // pred_region
    _
  $region17: #{_lambda_.1} parent=0 // pred_fallthru
    _
  // Predicated region
  $region18: #{_lambda_.1} parent=0 // pred_check
    _
  $region19: #{_lambda_.1} parent=0 // pred_check_branch
    %25 = sbr.rel (0) target = $region21
  $region20: #{_lambda_.1} parent=0 // pred_region
    _
  $region21: #{_lambda_.1} parent=0 // pred_fallthru
    _
  // Predicated region
  $region22: #{_lambda_.1} parent=0 // pred_check
    _
  $region23: #{_lambda_.1} parent=0 // pred_check_branch
    %27 = sbr.rel (0) target = $region25
  $region24: #{_lambda_.1} parent=0 // pred_region
    _
  $region25: #{_lambda_.1} parent=0 // pred_fallthru
    _
  // Predicated region
  $region26: #{_lambda_.1} parent=0 // pred_check
    _
  $region27: #{_lambda_.1} parent=0 // pred_check_branch
    %29 = sbr.rel (0) target = $region29
  $region28: #{_lambda_.1} parent=0 // pred_region
    _
  $region29: #{_lambda_.1} parent=0 // pred_fallthru
    _
  // Predicated region
  $region30: #{_lambda_.1} parent=0 // pred_check
    _
  $region31: #{_lambda_.1} parent=0 // pred_check_branch
    %31 = sbr.rel (0) target = $region33
  $region32: #{_lambda_.1} parent=0 // pred_region
    _
  $region33: #{_lambda_.1} parent=0 // pred_fallthru
    _
  // Predicated region
  $region34: #{_lambda_.1} parent=0 // pred_check
    _
  $region35: #{_lambda_.1} parent=0 // pred_check_branch
    %33 = sbr.rel (0) target = $region37
  $region36: #{_lambda_.1} parent=0 // pred_region
    _
  $region37: #{_lambda_.1} parent=0 // pred_fallthru
    _
  // Predicated region
  $region38: #{_lambda_.1} parent=0 // pred_check
    _
  $region39: #{_lambda_.1} parent=0 // pred_check_branch
    %35 = sbr.rel (0) target = $region41
  $region40: #{_lambda_.1} parent=0 // pred_region
    _
  $region41: #{_lambda_.1} parent=0 // pred_fallthru
    _
  // Predicated region
  $region42: #{_lambda_.1} parent=0 // pred_check
    _
  $region43: #{_lambda_.1} parent=0 // pred_check_branch
    %37 = sbr.rel (0) target = $region45
  $region44: #{_lambda_.1} parent=0 // pred_region
    _
  $region45: #{_lambda_.1} parent=0 // pred_fallthru
    _
  %v38 = vld [vmem:[%s0] sm:$0xff]
  %v39 = vld [vmem:[%s0 + $0x8] sm:$0xff]
  %v40 = vld [vmem:[%s0 + $0x10] sm:$0xff]
  %v41 = vld [vmem:[%s0 + $0x18] sm:$0xff]
  %v42 = vld [vmem:[%s0 + $0x20] sm:$0xff]
  %v43 = vld [vmem:[%s0 + $0x28] sm:$0xff]
  %v44 = vld [vmem:[%s0 + $0x30] sm:$0xff]
  %v45 = vld [vmem:[%s0 + $0x38] sm:$0xff]
  %v46 = vld [vmem:[%s0 + $0x40] sm:$0xff]
  %v47 = vld [vmem:[%s0 + $0x48] sm:$0xff]
  %v48 = vld [vmem:[%s0 + $0x50] sm:$0xff]
  %v49 = vld [vmem:[%s0 + $0x58] sm:$0xff]
  %v50 = vld [vmem:[%s0 + $0x60] sm:$0xff]
  %v51 = vld [vmem:[%s0 + $0x68] sm:$0xff]
  %v52 = vld [vmem:[%s0 + $0x70] sm:$0xff]
  %v53 = vld [vmem:[%s0 + $0x78] sm:$0xff]
  %v54 = vld [vmem:[%s0 + $0x80] sm:$0xff]
  %v55 = vld [vmem:[%s0 + $0x88] sm:$0xff]
  %v56 = vld [vmem:[%s0 + $0x90] sm:$0xff]
  %v57 = vld [vmem:[%s0 + $0x98] sm:$0xff]
  %v58 = vld [vmem:[%s0 + $0xa0] sm:$0xff]
  %v59 = vld [vmem:[%s0 + $0xa8] sm:$0xff]
  %v60 = vld [vmem:[%s0 + $0xb0] sm:$0xff]
  %v61 = vld [vmem:[%s0 + $0xb8] sm:$0xff]
  %v62 = vld [vmem:[%s0 + $0xc0] sm:$0xff]
  %v63 = vld [vmem:[%s0 + $0xc8] sm:$0xff]
  %v64 = vld [vmem:[%s0 + $0xd0] sm:$0xff]
  %v65 = vld [vmem:[%s0 + $0xd8] sm:$0xff]
  %v66 = vld [vmem:[%s0 + $0xe0] sm:$0xff]
  %v67 = vld [vmem:[%s0 + $0xe8] sm:$0xff]
  %v68 = vld [vmem:[%s0 + $0xf0] sm:$0xff]
  %v69 = vld [vmem:[%s0 + $0xf8] sm:$0xff]
  %v70 = vld [vmem:[%s0 + $0x100] sm:$0xff]
  %v71 = vld [vmem:[%s0 + $0x108] sm:$0xff]
  %v72 = vld [vmem:[%s0 + $0x110] sm:$0xff]
  %v73 = vld [vmem:[%s0 + $0x118] sm:$0xff]
  %v74 = vld [vmem:[%s0 + $0x120] sm:$0xff]
  %v75 = vld [vmem:[%s0 + $0x128] sm:$0xff]
  %v76 = vld [vmem:[%s0 + $0x130] sm:$0xff]
  %v77 = vld [vmem:[%s0 + $0x138] sm:$0xff]
  %v78 = vld [vmem:[%s0 + $0x140] sm:$0xff]
  %v79 = vld [vmem:[%s0 + $0x148] sm:$0xff]
  %v80 = vld [vmem:[%s0 + $0x150] sm:$0xff]
  %v81 = vld [vmem:[%s0 + $0x158] sm:$0xff]
  %v82 = vld [vmem:[%s0 + $0x160] sm:$0xff]
  %v83 = vld [vmem:[%s0 + $0x168] sm:$0xff]
  %v84 = vld [vmem:[%s0 + $0x170] sm:$0xff]
  %v85 = vld [vmem:[%s0 + $0x178] sm:$0xff]
  %v86 = vld [vmem:[%s0 + $0x180] sm:$0xff]
  %v87 = vld [vmem:[%s0 + $0x188] sm:$0xff]
  %v88 = vld [vmem:[%s0 + $0x190] sm:$0xff]
  %v89 = vld [vmem:[%s0 + $0x198] sm:$0xff]
  %v90 = vld [vmem:[%s0 + $0x1a0] sm:$0xff]
  %v91 = vld [vmem:[%s0 + $0x1a8] sm:$0xff]
  %v92 = vld [vmem:[%s0 + $0x1b0] sm:$0xff]
  %v93 = vld [vmem:[%s0 + $0x1b8] sm:$0xff]
  %v94 = vld [vmem:[%s0 + $0x1c0] sm:$0xff]
  %v95 = vld [vmem:[%s0 + $0x1c8] sm:$0xff]
  %v96 = vld [vmem:[%s0 + $0x1d0] sm:$0xff]
  %v97 = vld [vmem:[%s0 + $0x1d8] sm:$0xff]
  %v98 = vld [vmem:[%s0 + $0x1e0] sm:$0xff]
  %v99 = vld [vmem:[%s0 + $0x1e8] sm:$0xff]
  %v100 = vld [vmem:[%s0 + $0x1f0] sm:$0xff]
  %v101 = vld [vmem:[%s0 + $0x1f8] sm:$0xff]
  %vm102 = vcmask 31744
  %103 = vst.msk [vmem:[#allocation2] sm:$0xff] %vm102, 0.0
  %104 = vst.msk [vmem:[#allocation2 + $0x8] sm:$0xff] %vm102, 0.0
  %vm105 = vcmask 25600
  %106 = vst.msk [vmem:[#allocation2 + $0x10] sm:$0x3] %vm105, 0.0
  %107 = vst.msk [vmem:[#allocation2 + $0x1b0] sm:$0xff] %vm102, 0.0
  %108 = vst.msk [vmem:[#allocation2 + $0x1b8] sm:$0xff] %vm102, 0.0
  %109 = vst.msk [vmem:[#allocation2 + $0x1c0] sm:$0x3] %vm105, 0.0
  %s110 = scalar_lea.vmem [#allocation2], 408
  %111 = vst.msk [vmem:[%s110] sm:$0xff] %vm102, 0.0
  %112 = vst.msk [vmem:[%s110 + $0x8] sm:$0xff] %vm102, 0.0
  %113 = vst.msk [vmem:[%s110 + $0x10] sm:$0x3] %vm105, 0.0
  %114 = vst.msk [vmem:[%s110 + $0x1b0] sm:$0xff] %vm102, 0.0
  %115 = vst.msk [vmem:[%s110 + $0x1b8] sm:$0xff] %vm102, 0.0
  %116 = vst.msk [vmem:[%s110 + $0x1c0] sm:$0x3] %vm105, 0.0
  %vm117 = vcmask 24576
  %118 = vst.msk [vmem:[#allocation2] sm:$0x1] %vm117, 0.0
  %119 = vst.msk [vmem:[#allocation2 + $0x18] sm:$0x1] %vm117, 0.0
  %120 = vst.msk [vmem:[#allocation2 + $0x30] sm:$0x1] %vm117, 0.0
  %121 = vst.msk [vmem:[#allocation2 + $0x48] sm:$0x1] %vm117, 0.0
  %122 = vst.msk [vmem:[#allocation2 + $0x60] sm:$0x1] %vm117, 0.0
  %123 = vst.msk [vmem:[#allocation2 + $0x78] sm:$0x1] %vm117, 0.0
  %124 = vst.msk [vmem:[#allocation2 + $0x90] sm:$0x1] %vm117, 0.0
  %125 = vst.msk [vmem:[#allocation2 + $0xa8] sm:$0x1] %vm117, 0.0
  %126 = vst.msk [vmem:[#allocation2 + $0xc0] sm:$0x1] %vm117, 0.0
  %127 = vst.msk [vmem:[#allocation2 + $0xd8] sm:$0x1] %vm117, 0.0
  %128 = vst.msk [vmem:[#allocation2 + $0xf0] sm:$0x1] %vm117, 0.0
  %129 = vst.msk [vmem:[#allocation2 + $0x108] sm:$0x1] %vm117, 0.0
  %130 = vst.msk [vmem:[#allocation2 + $0x120] sm:$0x1] %vm117, 0.0
  %131 = vst.msk [vmem:[#allocation2 + $0x138] sm:$0x1] %vm117, 0.0
  %132 = vst.msk [vmem:[#allocation2 + $0x150] sm:$0x1] %vm117, 0.0
  %133 = vst.msk [vmem:[#allocation2 + $0x168] sm:$0x1] %vm117, 0.0
  %134 = vst.msk [vmem:[#allocation2 + $0x180] sm:$0x1] %vm117, 0.0
  %135 = vst.msk [vmem:[#allocation2 + $0x198] sm:$0x1] %vm117, 0.0
  %136 = vst.msk [vmem:[#allocation2 + $0x1b0] sm:$0x1] %vm117, 0.0
  %137 = vst.msk [vmem:[#allocation2 + $0x1c8] sm:$0x1] %vm117, 0.0
  %138 = vst.msk [vmem:[#allocation2 + $0x1e0] sm:$0x1] %vm117, 0.0
  %139 = vst.msk [vmem:[#allocation2 + $0x1f8] sm:$0x1] %vm117, 0.0
  %140 = vst.msk [vmem:[#allocation2 + $0x210] sm:$0x1] %vm117, 0.0
  %141 = vst.msk [vmem:[#allocation2 + $0x228] sm:$0x1] %vm117, 0.0
  %142 = vst.msk [vmem:[#allocation2 + $0x240] sm:$0x1] %vm117, 0.0
  %143 = vst.msk [vmem:[#allocation2 + $0x258] sm:$0x1] %vm117, 0.0
  %144 = vst.msk [vmem:[#allocation2 + $0x270] sm:$0x1] %vm117, 0.0
  %145 = vst.msk [vmem:[#allocation2 + $0x288] sm:$0x1] %vm117, 0.0
  %146 = vst.msk [vmem:[#allocation2 + $0x2a0] sm:$0x1] %vm117, 0.0
  %147 = vst.msk [vmem:[#allocation2 + $0x2b8] sm:$0x1] %vm117, 0.0
  %148 = vst.msk [vmem:[#allocation2 + $0x2d0] sm:$0x1] %vm117, 0.0
  %149 = vst.msk [vmem:[#allocation2 + $0x2e8] sm:$0x1] %vm117, 0.0
  %150 = vst.msk [vmem:[#allocation2 + $0x300] sm:$0x1] %vm117, 0.0
  %151 = vst.msk [vmem:[#allocation2 + $0x318] sm:$0x1] %vm117, 0.0
  %152 = vst.msk [vmem:[#allocation2 + $0x330] sm:$0x1] %vm117, 0.0
  %153 = vst.msk [vmem:[#allocation2 + $0x348] sm:$0x1] %vm117, 0.0
  %154 = vst.msk [vmem:[#allocation2 + $0x11] sm:$0x1] %vm117, 0.0
  %155 = vst.msk [vmem:[#allocation2 + $0x29] sm:$0x1] %vm117, 0.0
  %156 = vst.msk [vmem:[#allocation2 + $0x41] sm:$0x1] %vm117, 0.0
  %157 = vst.msk [vmem:[#allocation2 + $0x59] sm:$0x1] %vm117, 0.0
  %158 = vst.msk [vmem:[#allocation2 + $0x71] sm:$0x1] %vm117, 0.0
  %159 = vst.msk [vmem:[#allocation2 + $0x89] sm:$0x1] %vm117, 0.0
  %160 = vst.msk [vmem:[#allocation2 + $0xa1] sm:$0x1] %vm117, 0.0
  %161 = vst.msk [vmem:[#allocation2 + $0xb9] sm:$0x1] %vm117, 0.0
  %162 = vst.msk [vmem:[#allocation2 + $0xd1] sm:$0x1] %vm117, 0.0
  %163 = vst.msk [vmem:[#allocation2 + $0xe9] sm:$0x1] %vm117, 0.0
  %164 = vst.msk [vmem:[#allocation2 + $0x101] sm:$0x1] %vm117, 0.0
  %165 = vst.msk [vmem:[#allocation2 + $0x119] sm:$0x1] %vm117, 0.0
  %166 = vst.msk [vmem:[#allocation2 + $0x131] sm:$0x1] %vm117, 0.0
  %167 = vst.msk [vmem:[#allocation2 + $0x149] sm:$0x1] %vm117, 0.0
  %168 = vst.msk [vmem:[#allocation2 + $0x161] sm:$0x1] %vm117, 0.0
  %169 = vst.msk [vmem:[#allocation2 + $0x179] sm:$0x1] %vm117, 0.0
  %170 = vst.msk [vmem:[#allocation2 + $0x191] sm:$0x1] %vm117, 0.0
  %171 = vst.msk [vmem:[#allocation2 + $0x1a9] sm:$0x1] %vm117, 0.0
  %172 = vst.msk [vmem:[#allocation2 + $0x1c1] sm:$0x1] %vm117, 0.0
  %173 = vst.msk [vmem:[#allocation2 + $0x1d9] sm:$0x1] %vm117, 0.0
  %174 = vst.msk [vmem:[#allocation2 + $0x1f1] sm:$0x1] %vm117, 0.0
  %175 = vst.msk [vmem:[#allocation2 + $0x209] sm:$0x1] %vm117, 0.0
  %176 = vst.msk [vmem:[#allocation2 + $0x221] sm:$0x1] %vm117, 0.0
  %177 = vst.msk [vmem:[#allocation2 + $0x239] sm:$0x1] %vm117, 0.0
  %178 = vst.msk [vmem:[#allocation2 + $0x251] sm:$0x1] %vm117, 0.0
  %179 = vst.msk [vmem:[#allocation2 + $0x269] sm:$0x1] %vm117, 0.0
  %180 = vst.msk [vmem:[#allocation2 + $0x281] sm:$0x1] %vm117, 0.0
  %181 = vst.msk [vmem:[#allocation2 + $0x299] sm:$0x1] %vm117, 0.0
  %182 = vst.msk [vmem:[#allocation2 + $0x2b1] sm:$0x1] %vm117, 0.0
  %183 = vst.msk [vmem:[#allocation2 + $0x2c9] sm:$0x1] %vm117, 0.0
  %184 = vst.msk [vmem:[#allocation2 + $0x2e1] sm:$0x1] %vm117, 0.0
  %185 = vst.msk [vmem:[#allocation2 + $0x2f9] sm:$0x1] %vm117, 0.0
  %186 = vst.msk [vmem:[#allocation2 + $0x311] sm:$0x1] %vm117, 0.0
  %187 = vst.msk [vmem:[#allocation2 + $0x329] sm:$0x1] %vm117, 0.0
  %188 = vst.msk [vmem:[#allocation2 + $0x341] sm:$0x1] %vm117, 0.0
  %189 = vst.msk [vmem:[#allocation2 + $0x359] sm:$0x1] %vm117, 0.0
  %s190 = scalar_lea.vmem [#allocation2], 24
  %191 = vst.msk [vmem:[%s190 + $0x1] sm:$0xff] %vm102, %v38
  %192 = vst.msk [vmem:[%s190 + $0x9] sm:$0xff] %vm102, %v39
  %193 = vst.msk [vmem:[%s190 + $0x19] sm:$0xff] %vm102, %v40
  %194 = vst.msk [vmem:[%s190 + $0x21] sm:$0xff] %vm102, %v41
  %195 = vst.msk [vmem:[%s190 + $0x31] sm:$0xff] %vm102, %v42
  %196 = vst.msk [vmem:[%s190 + $0x39] sm:$0xff] %vm102, %v43
  %197 = vst.msk [vmem:[%s190 + $0x49] sm:$0xff] %vm102, %v44
  %198 = vst.msk [vmem:[%s190 + $0x51] sm:$0xff] %vm102, %v45
  %199 = vst.msk [vmem:[%s190 + $0x61] sm:$0xff] %vm102, %v46
  %200 = vst.msk [vmem:[%s190 + $0x69] sm:$0xff] %vm102, %v47
  %201 = vst.msk [vmem:[%s190 + $0x79] sm:$0xff] %vm102, %v48
  %202 = vst.msk [vmem:[%s190 + $0x81] sm:$0xff] %vm102, %v49
  %203 = vst.msk [vmem:[%s190 + $0x91] sm:$0xff] %vm102, %v50
  %204 = vst.msk [vmem:[%s190 + $0x99] sm:$0xff] %vm102, %v51
  %205 = vst.msk [vmem:[%s190 + $0xa9] sm:$0xff] %vm102, %v52
  %206 = vst.msk [vmem:[%s190 + $0xb1] sm:$0xff] %vm102, %v53
  %207 = vst.msk [vmem:[%s190 + $0xc1] sm:$0xff] %vm102, %v54
  %208 = vst.msk [vmem:[%s190 + $0xc9] sm:$0xff] %vm102, %v55
  %209 = vst.msk [vmem:[%s190 + $0xd9] sm:$0xff] %vm102, %v56
  %210 = vst.msk [vmem:[%s190 + $0xe1] sm:$0xff] %vm102, %v57
  %211 = vst.msk [vmem:[%s190 + $0xf1] sm:$0xff] %vm102, %v58
  %212 = vst.msk [vmem:[%s190 + $0xf9] sm:$0xff] %vm102, %v59
  %213 = vst.msk [vmem:[%s190 + $0x109] sm:$0xff] %vm102, %v60
  %214 = vst.msk [vmem:[%s190 + $0x111] sm:$0xff] %vm102, %v61
  %215 = vst.msk [vmem:[%s190 + $0x121] sm:$0xff] %vm102, %v62
  %216 = vst.msk [vmem:[%s190 + $0x129] sm:$0xff] %vm102, %v63
  %217 = vst.msk [vmem:[%s190 + $0x139] sm:$0xff] %vm102, %v64
  %218 = vst.msk [vmem:[%s190 + $0x141] sm:$0xff] %vm102, %v65
  %219 = vst.msk [vmem:[%s190 + $0x151] sm:$0xff] %vm102, %v66
  %220 = vst.msk [vmem:[%s190 + $0x159] sm:$0xff] %vm102, %v67
  %221 = vst.msk [vmem:[%s190 + $0x169] sm:$0xff] %vm102, %v68
  %222 = vst.msk [vmem:[%s190 + $0x171] sm:$0xff] %vm102, %v69
  %223 = vst.msk [vmem:[%s190 + $0x1b1] sm:$0xff] %vm102, %v70
  %224 = vst.msk [vmem:[%s190 + $0x1b9] sm:$0xff] %vm102, %v71
  %225 = vst.msk [vmem:[%s190 + $0x1c9] sm:$0xff] %vm102, %v72
  %226 = vst.msk [vmem:[%s190 + $0x1d1] sm:$0xff] %vm102, %v73
  %227 = vst.msk [vmem:[%s190 + $0x1e1] sm:$0xff] %vm102, %v74
  %228 = vst.msk [vmem:[%s190 + $0x1e9] sm:$0xff] %vm102, %v75
  %229 = vst.msk [vmem:[%s190 + $0x1f9] sm:$0xff] %vm102, %v76
  %230 = vst.msk [vmem:[%s190 + $0x201] sm:$0xff] %vm102, %v77
  %231 = vst.msk [vmem:[%s190 + $0x211] sm:$0xff] %vm102, %v78
  %232 = vst.msk [vmem:[%s190 + $0x219] sm:$0xff] %vm102, %v79
  %233 = vst.msk [vmem:[%s190 + $0x229] sm:$0xff] %vm102, %v80
  %234 = vst.msk [vmem:[%s190 + $0x231] sm:$0xff] %vm102, %v81
  %235 = vst.msk [vmem:[%s190 + $0x241] sm:$0xff] %vm102, %v82
  %236 = vst.msk [vmem:[%s190 + $0x249] sm:$0xff] %vm102, %v83
  %237 = vst.msk [vmem:[%s190 + $0x259] sm:$0xff] %vm102, %v84
  %238 = vst.msk [vmem:[%s190 + $0x261] sm:$0xff] %vm102, %v85
  %239 = vst.msk [vmem:[%s190 + $0x271] sm:$0xff] %vm102, %v86
  %240 = vst.msk [vmem:[%s190 + $0x279] sm:$0xff] %vm102, %v87
  %241 = vst.msk [vmem:[%s190 + $0x289] sm:$0xff] %vm102, %v88
  %242 = vst.msk [vmem:[%s190 + $0x291] sm:$0xff] %vm102, %v89
  %243 = vst.msk [vmem:[%s190 + $0x2a1] sm:$0xff] %vm102, %v90
  %244 = vst.msk [vmem:[%s190 + $0x2a9] sm:$0xff] %vm102, %v91
  %245 = vst.msk [vmem:[%s190 + $0x2b9] sm:$0xff] %vm102, %v92
  %246 = vst.msk [vmem:[%s190 + $0x2c1] sm:$0xff] %vm102, %v93
  %247 = vst.msk [vmem:[%s190 + $0x2d1] sm:$0xff] %vm102, %v94
  %248 = vst.msk [vmem:[%s190 + $0x2d9] sm:$0xff] %vm102, %v95
  %249 = vst.msk [vmem:[%s190 + $0x2e9] sm:$0xff] %vm102, %v96
  %250 = vst.msk [vmem:[%s190 + $0x2f1] sm:$0xff] %vm102, %v97
  %251 = vst.msk [vmem:[%s190 + $0x301] sm:$0xff] %vm102, %v98
  %252 = vst.msk [vmem:[%s190 + $0x309] sm:$0xff] %vm102, %v99
  %253 = vst.msk [vmem:[%s190 + $0x319] sm:$0xff] %vm102, %v100
  %254 = vst.msk [vmem:[%s190 + $0x321] sm:$0xff] %vm102, %v101
  %v255 = vld [vmem:[#allocation2] ss:$2 sm:$0xff]
  %s256 = scalar_lea.vmem [#allocation2], 24
  %v257 = vld [vmem:[%s256] ss:$2 sm:$0xff]
  %s258 = scalar_lea.vmem [#allocation2], 48
  %v259 = vld [vmem:[%s258] ss:$2 sm:$0xff]
  %s260 = scalar_lea.vmem [#allocation2], 72
  %v261 = vld [vmem:[%s260] ss:$2 sm:$0xff]
  %s262 = scalar_lea.vmem [#allocation2], 96
  %v263 = vld [vmem:[%s262] ss:$2 sm:$0xff]
  %s264 = scalar_lea.vmem [#allocation2], 120
  %v265 = vld [vmem:[%s264] ss:$2 sm:$0xff]
  %s266 = scalar_lea.vmem [#allocation2], 144
  %v267 = vld [vmem:[%s266] ss:$2 sm:$0xff]
  %s268 = scalar_lea.vmem [#allocation2], 168
  %v269 = vld [vmem:[%s268] ss:$2 sm:$0xff]
  %s270 = scalar_lea.vmem [#allocation2], 192
  %v271 = vld [vmem:[%s270] ss:$2 sm:$0xff]
  %s272 = scalar_lea.vmem [#allocation2], 216
  %v273 = vld [vmem:[%s272] ss:$2 sm:$0xff]
  %s274 = scalar_lea.vmem [#allocation2], 240
  %v275 = vld [vmem:[%s274] ss:$2 sm:$0xff]
  %s276 = scalar_lea.vmem [#allocation2], 264
  %v277 = vld [vmem:[%s276] ss:$2 sm:$0xff]
  %s278 = scalar_lea.vmem [#allocation2], 288
  %v279 = vld [vmem:[%s278] ss:$2 sm:$0xff]
  %s280 = scalar_lea.vmem [#allocation2], 312
  %v281 = vld [vmem:[%s280] ss:$2 sm:$0xff]
  %s282 = scalar_lea.vmem [#allocation2], 336
  %v283 = vld [vmem:[%s282] ss:$2 sm:$0xff]
  %s284 = scalar_lea.vmem [#allocation2], 360
  %v285 = vld [vmem:[%s284] ss:$2 sm:$0xff]
  %s286 = scalar_lea.vmem [#allocation2], 384
  %v287 = vld [vmem:[%s286] ss:$2 sm:$0xff]
  %s288 = scalar_lea.vmem [#allocation2], 408
  %v289 = vld [vmem:[%s288] ss:$2 sm:$0xff]
  %s290 = scalar_lea.vmem [#allocation2], 432
  %v291 = vld [vmem:[%s290] ss:$2 sm:$0xff]
  %s292 = scalar_lea.vmem [#allocation2], 456
  %v293 = vld [vmem:[%s292] ss:$2 sm:$0xff]
  %s294 = scalar_lea.vmem [#allocation2], 480
  %v295 = vld [vmem:[%s294] ss:$2 sm:$0xff]
  %s296 = scalar_lea.vmem [#allocation2], 504
  %v297 = vld [vmem:[%s296] ss:$2 sm:$0xff]
  %s298 = scalar_lea.vmem [#allocation2], 528
  %v299 = vld [vmem:[%s298] ss:$2 sm:$0xff]
  %s300 = scalar_lea.vmem [#allocation2], 552
  %v301 = vld [vmem:[%s300] ss:$2 sm:$0xff]
  %s302 = scalar_lea.vmem [#allocation2], 576
  %v303 = vld [vmem:[%s302] ss:$2 sm:$0xff]
  %s304 = scalar_lea.vmem [#allocation2], 600
  %v305 = vld [vmem:[%s304] ss:$2 sm:$0xff]
  %s306 = scalar_lea.vmem [#allocation2], 624
  %v307 = vld [vmem:[%s306] ss:$2 sm:$0xff]
  %s308 = scalar_lea.vmem [#allocation2], 648
  %v309 = vld [vmem:[%s308] ss:$2 sm:$0xff]
  %s310 = scalar_lea.vmem [#allocation2], 672
  %v311 = vld [vmem:[%s310] ss:$2 sm:$0xff]
  %s312 = scalar_lea.vmem [#allocation2], 696
  %v313 = vld [vmem:[%s312] ss:$2 sm:$0xff]
  %s314 = scalar_lea.vmem [#allocation2], 720
  %v315 = vld [vmem:[%s314] ss:$2 sm:$0xff]
  %s316 = scalar_lea.vmem [#allocation2], 744
  %v317 = vld [vmem:[%s316] ss:$2 sm:$0xff]
  %s318 = scalar_lea.vmem [#allocation2], 768
  %v319 = vld [vmem:[%s318] ss:$2 sm:$0xff]
  %s320 = scalar_lea.vmem [#allocation2], 792
  %v321 = vld [vmem:[%s320] ss:$2 sm:$0xff]
  %s322 = scalar_lea.vmem [#allocation2], 816
  %v323 = vld [vmem:[%s322] ss:$2 sm:$0xff]
  %s324 = scalar_lea.vmem [#allocation2], 840
  %v325 = vld [vmem:[%s324] ss:$2 sm:$0xff]
  %s326 = scalar_lea.vmem [#allocation2], 1
  %v327 = vld [vmem:[%s326] ss:$2 sm:$0xff]
  %s328 = scalar_lea.vmem [#allocation2], 25
  %v329 = vld [vmem:[%s328] ss:$2 sm:$0xff]
  %s330 = scalar_lea.vmem [#allocation2], 49
  %v331 = vld [vmem:[%s330] ss:$2 sm:$0xff]
  %s332 = scalar_lea.vmem [#allocation2], 73
  %v333 = vld [vmem:[%s332] ss:$2 sm:$0xff]
  %s334 = scalar_lea.vmem [#allocation2], 97
  %v335 = vld [vmem:[%s334] ss:$2 sm:$0xff]
  %s336 = scalar_lea.vmem [#allocation2], 121
  %v337 = vld [vmem:[%s336] ss:$2 sm:$0xff]
  %s338 = scalar_lea.vmem [#allocation2], 145
  %v339 = vld [vmem:[%s338] ss:$2 sm:$0xff]
  %s340 = scalar_lea.vmem [#allocation2], 169
  %v341 = vld [vmem:[%s340] ss:$2 sm:$0xff]
  %s342 = scalar_lea.vmem [#allocation2], 193
  %v343 = vld [vmem:[%s342] ss:$2 sm:$0xff]
  %s344 = scalar_lea.vmem [#allocation2], 217
  %v345 = vld [vmem:[%s344] ss:$2 sm:$0xff]
  %s346 = scalar_lea.vmem [#allocation2], 241
  %v347 = vld [vmem:[%s346] ss:$2 sm:$0xff]
  %s348 = scalar_lea.vmem [#allocation2], 265
  %v349 = vld [vmem:[%s348] ss:$2 sm:$0xff]
  %s350 = scalar_lea.vmem [#allocation2], 289
  %v351 = vld [vmem:[%s350] ss:$2 sm:$0xff]
  %s352 = scalar_lea.vmem [#allocation2], 313
  %v353 = vld [vmem:[%s352] ss:$2 sm:$0xff]
  %s354 = scalar_lea.vmem [#allocation2], 337
  %v355 = vld [vmem:[%s354] ss:$2 sm:$0xff]
  %s356 = scalar_lea.vmem [#allocation2], 361
  %v357 = vld [vmem:[%s356] ss:$2 sm:$0xff]
  %s358 = scalar_lea.vmem [#allocation2], 385
  %v359 = vld [vmem:[%s358] ss:$2 sm:$0xff]
  %s360 = scalar_lea.vmem [#allocation2], 409
  %v361 = vld [vmem:[%s360] ss:$2 sm:$0xff]
  %s362 = scalar_lea.vmem [#allocation2], 433
  %v363 = vld [vmem:[%s362] ss:$2 sm:$0xff]
  %s364 = scalar_lea.vmem [#allocation2], 457
  %v365 = vld [vmem:[%s364] ss:$2 sm:$0xff]
  %s366 = scalar_lea.vmem [#allocation2], 481
  %v367 = vld [vmem:[%s366] ss:$2 sm:$0xff]
  %s368 = scalar_lea.vmem [#allocation2], 505
  %v369 = vld [vmem:[%s368] ss:$2 sm:$0xff]
  %s370 = scalar_lea.vmem [#allocation2], 529
  %v371 = vld [vmem:[%s370] ss:$2 sm:$0xff]
  %s372 = scalar_lea.vmem [#allocation2], 553
  %v373 = vld [vmem:[%s372] ss:$2 sm:$0xff]
  %s374 = scalar_lea.vmem [#allocation2], 577
  %v375 = vld [vmem:[%s374] ss:$2 sm:$0xff]
  %s376 = scalar_lea.vmem [#allocation2], 601
  %v377 = vld [vmem:[%s376] ss:$2 sm:$0xff]
  %s378 = scalar_lea.vmem [#allocation2], 625
  %v379 = vld [vmem:[%s378] ss:$2 sm:$0xff]
  %s380 = scalar_lea.vmem [#allocation2], 649
  %v381 = vld [vmem:[%s380] ss:$2 sm:$0xff]
  %s382 = scalar_lea.vmem [#allocation2], 673
  %v383 = vld [vmem:[%s382] ss:$2 sm:$0xff]
  %s384 = scalar_lea.vmem [#allocation2], 697
  %v385 = vld [vmem:[%s384] ss:$2 sm:$0xff]
  %s386 = scalar_lea.vmem [#allocation2], 721
  %v387 = vld [vmem:[%s386] ss:$2 sm:$0xff]
  %s388 = scalar_lea.vmem [#allocation2], 745
  %v389 = vld [vmem:[%s388] ss:$2 sm:$0xff]
  %s390 = scalar_lea.vmem [#allocation2], 769
  %v391 = vld [vmem:[%s390] ss:$2 sm:$0xff]
  %s392 = scalar_lea.vmem [#allocation2], 793
  %v393 = vld [vmem:[%s392] ss:$2 sm:$0xff]
  %s394 = scalar_lea.vmem [#allocation2], 817
  %v395 = vld [vmem:[%s394] ss:$2 sm:$0xff]
  %s396 = scalar_lea.vmem [#allocation2], 841
  %v397 = vld [vmem:[%s396] ss:$2 sm:$0xff]
  %s398 = scalar_lea.vmem [#allocation2], 2
  %v399 = vld [vmem:[%s398] ss:$2 sm:$0xff]
  %s400 = scalar_lea.vmem [#allocation2], 26
  %v401 = vld [vmem:[%s400] ss:$2 sm:$0xff]
  %s402 = scalar_lea.vmem [#allocation2], 50
  %v403 = vld [vmem:[%s402] ss:$2 sm:$0xff]
  %s404 = scalar_lea.vmem [#allocation2], 74
  %v405 = vld [vmem:[%s404] ss:$2 sm:$0xff]
  %s406 = scalar_lea.vmem [#allocation2], 98
  %v407 = vld [vmem:[%s406] ss:$2 sm:$0xff]
  %s408 = scalar_lea.vmem [#allocation2], 122
  %v409 = vld [vmem:[%s408] ss:$2 sm:$0xff]
  %s410 = scalar_lea.vmem [#allocation2], 146
  %v411 = vld [vmem:[%s410] ss:$2 sm:$0xff]
  %s412 = scalar_lea.vmem [#allocation2], 170
  %v413 = vld [vmem:[%s412] ss:$2 sm:$0xff]
  %s414 = scalar_lea.vmem [#allocation2], 194
  %v415 = vld [vmem:[%s414] ss:$2 sm:$0xff]
  %s416 = scalar_lea.vmem [#allocation2], 218
  %v417 = vld [vmem:[%s416] ss:$2 sm:$0xff]
  %s418 = scalar_lea.vmem [#allocation2], 242
  %v419 = vld [vmem:[%s418] ss:$2 sm:$0xff]
  %s420 = scalar_lea.vmem [#allocation2], 266
  %v421 = vld [vmem:[%s420] ss:$2 sm:$0xff]
  %s422 = scalar_lea.vmem [#allocation2], 290
  %v423 = vld [vmem:[%s422] ss:$2 sm:$0xff]
  %s424 = scalar_lea.vmem [#allocation2], 314
  %v425 = vld [vmem:[%s424] ss:$2 sm:$0xff]
  %s426 = scalar_lea.vmem [#allocation2], 338
  %v427 = vld [vmem:[%s426] ss:$2 sm:$0xff]
  %s428 = scalar_lea.vmem [#allocation2], 362
  %v429 = vld [vmem:[%s428] ss:$2 sm:$0xff]
  %s430 = scalar_lea.vmem [#allocation2], 386
  %v431 = vld [vmem:[%s430] ss:$2 sm:$0xff]
  %s432 = scalar_lea.vmem [#allocation2], 410
  %v433 = vld [vmem:[%s432] ss:$2 sm:$0xff]
  %s434 = scalar_lea.vmem [#allocation2], 434
  %v435 = vld [vmem:[%s434] ss:$2 sm:$0xff]
  %s436 = scalar_lea.vmem [#allocation2], 458
  %v437 = vld [vmem:[%s436] ss:$2 sm:$0xff]
  %s438 = scalar_lea.vmem [#allocation2], 482
  %v439 = vld [vmem:[%s438] ss:$2 sm:$0xff]
  %s440 = scalar_lea.vmem [#allocation2], 506
  %v441 = vld [vmem:[%s440] ss:$2 sm:$0xff]
  %s442 = scalar_lea.vmem [#allocation2], 530
  %v443 = vld [vmem:[%s442] ss:$2 sm:$0xff]
  %s444 = scalar_lea.vmem [#allocation2], 554
  %v445 = vld [vmem:[%s444] ss:$2 sm:$0xff]
  %s446 = scalar_lea.vmem [#allocation2], 578
  %v447 = vld [vmem:[%s446] ss:$2 sm:$0xff]
  %s448 = scalar_lea.vmem [#allocation2], 602
  %v449 = vld [vmem:[%s448] ss:$2 sm:$0xff]
  %s450 = scalar_lea.vmem [#allocation2], 626
  %v451 = vld [vmem:[%s450] ss:$2 sm:$0xff]
  %s452 = scalar_lea.vmem [#allocation2], 650
  %v453 = vld [vmem:[%s452] ss:$2 sm:$0xff]
  %s454 = scalar_lea.vmem [#allocation2], 674
  %v455 = vld [vmem:[%s454] ss:$2 sm:$0xff]
  %s456 = scalar_lea.vmem [#allocation2], 698
  %v457 = vld [vmem:[%s456] ss:$2 sm:$0xff]
  %s458 = scalar_lea.vmem [#allocation2], 722
  %v459 = vld [vmem:[%s458] ss:$2 sm:$0xff]
  %s460 = scalar_lea.vmem [#allocation2], 746
  %v461 = vld [vmem:[%s460] ss:$2 sm:$0xff]
  %s462 = scalar_lea.vmem [#allocation2], 770
  %v463 = vld [vmem:[%s462] ss:$2 sm:$0xff]
  %s464 = scalar_lea.vmem [#allocation2], 794
  %v465 = vld [vmem:[%s464] ss:$2 sm:$0xff]
  %s466 = scalar_lea.vmem [#allocation2], 818
  %v467 = vld [vmem:[%s466] ss:$2 sm:$0xff]
  %s468 = scalar_lea.vmem [#allocation2], 842
  %v469 = vld [vmem:[%s468] ss:$2 sm:$0xff]
  %s470 = scalar_lea.vmem [#allocation2], 3
  %v471 = vld [vmem:[%s470] ss:$2 sm:$0xff]
  %s472 = scalar_lea.vmem [#allocation2], 27
  %v473 = vld [vmem:[%s472] ss:$2 sm:$0xff]
  %s474 = scalar_lea.vmem [#allocation2], 51
  %v475 = vld [vmem:[%s474] ss:$2 sm:$0xff]
  %s476 = scalar_lea.vmem [#allocation2], 75
  %v477 = vld [vmem:[%s476] ss:$2 sm:$0xff]
  %s478 = scalar_lea.vmem [#allocation2], 99
  %v479 = vld [vmem:[%s478] ss:$2 sm:$0xff]
  %s480 = scalar_lea.vmem [#allocation2], 123
  %v481 = vld [vmem:[%s480] ss:$2 sm:$0xff]
  %s482 = scalar_lea.vmem [#allocation2], 147
  %v483 = vld [vmem:[%s482] ss:$2 sm:$0xff]
  %s484 = scalar_lea.vmem [#allocation2], 171
  %v485 = vld [vmem:[%s484] ss:$2 sm:$0xff]
  %s486 = scalar_lea.vmem [#allocation2], 195
  %v487 = vld [vmem:[%s486] ss:$2 sm:$0xff]
  %s488 = scalar_lea.vmem [#allocation2], 219
  %v489 = vld [vmem:[%s488] ss:$2 sm:$0xff]
  %s490 = scalar_lea.vmem [#allocation2], 243
  %v491 = vld [vmem:[%s490] ss:$2 sm:$0xff]
  %s492 = scalar_lea.vmem [#allocation2], 267
  %v493 = vld [vmem:[%s492] ss:$2 sm:$0xff]
  %s494 = scalar_lea.vmem [#allocation2], 291
  %v495 = vld [vmem:[%s494] ss:$2 sm:$0xff]
  %s496 = scalar_lea.vmem [#allocation2], 315
  %v497 = vld [vmem:[%s496] ss:$2 sm:$0xff]
  %s498 = scalar_lea.vmem [#allocation2], 339
  %v499 = vld [vmem:[%s498] ss:$2 sm:$0xff]
  %s500 = scalar_lea.vmem [#allocation2], 363
  %v501 = vld [vmem:[%s500] ss:$2 sm:$0xff]
  %s502 = scalar_lea.vmem [#allocation2], 387
  %v503 = vld [vmem:[%s502] ss:$2 sm:$0xff]
  %s504 = scalar_lea.vmem [#allocation2], 411
  %v505 = vld [vmem:[%s504] ss:$2 sm:$0xff]
  %s506 = scalar_lea.vmem [#allocation2], 435
  %v507 = vld [vmem:[%s506] ss:$2 sm:$0xff]
  %s508 = scalar_lea.vmem [#allocation2], 459
  %v509 = vld [vmem:[%s508] ss:$2 sm:$0xff]
  %s510 = scalar_lea.vmem [#allocation2], 483
  %v511 = vld [vmem:[%s510] ss:$2 sm:$0xff]
  %s512 = scalar_lea.vmem [#allocation2], 507
  %v513 = vld [vmem:[%s512] ss:$2 sm:$0xff]
  %s514 = scalar_lea.vmem [#allocation2], 531
  %v515 = vld [vmem:[%s514] ss:$2 sm:$0xff]
  %s516 = scalar_lea.vmem [#allocation2], 555
  %v517 = vld [vmem:[%s516] ss:$2 sm:$0xff]
  %s518 = scalar_lea.vmem [#allocation2], 579
  %v519 = vld [vmem:[%s518] ss:$2 sm:$0xff]
  %s520 = scalar_lea.vmem [#allocation2], 603
  %v521 = vld [vmem:[%s520] ss:$2 sm:$0xff]
  %s522 = scalar_lea.vmem [#allocation2], 627
  %v523 = vld [vmem:[%s522] ss:$2 sm:$0xff]
  %s524 = scalar_lea.vmem [#allocation2], 651
  %v525 = vld [vmem:[%s524] ss:$2 sm:$0xff]
  %s526 = scalar_lea.vmem [#allocation2], 675
  %v527 = vld [vmem:[%s526] ss:$2 sm:$0xff]
  %s528 = scalar_lea.vmem [#allocation2], 699
  %v529 = vld [vmem:[%s528] ss:$2 sm:$0xff]
  %s530 = scalar_lea.vmem [#allocation2], 723
  %v531 = vld [vmem:[%s530] ss:$2 sm:$0xff]
  %s532 = scalar_lea.vmem [#allocation2], 747
  %v533 = vld [vmem:[%s532] ss:$2 sm:$0xff]
  %s534 = scalar_lea.vmem [#allocation2], 771
  %v535 = vld [vmem:[%s534] ss:$2 sm:$0xff]
  %s536 = scalar_lea.vmem [#allocation2], 795
  %v537 = vld [vmem:[%s536] ss:$2 sm:$0xff]
  %s538 = scalar_lea.vmem [#allocation2], 819
  %v539 = vld [vmem:[%s538] ss:$2 sm:$0xff]
  %s540 = scalar_lea.vmem [#allocation2], 843
  %v541 = vld [vmem:[%s540] ss:$2 sm:$0xff]
  %558 = vrot.lane.b32.xlu0 %v327, 4
  %v559 = vpop.permute.xlu0 %558
  %560 = vrot.lane.b32.xlu0 %v331, 4
  %v561 = vpop.permute.xlu0 %560
  %562 = vrot.lane.b32.xlu0 %v335, 4
  %v563 = vpop.permute.xlu0 %562
  %564 = vrot.lane.b32.xlu0 %v339, 4
  %v565 = vpop.permute.xlu0 %564
  %566 = vrot.lane.b32.xlu0 %v343, 4
  %v567 = vpop.permute.xlu0 %566
  %568 = vrot.lane.b32.xlu0 %v347, 4
  %v569 = vpop.permute.xlu0 %568
  %570 = vrot.lane.b32.xlu0 %v351, 4
  %v571 = vpop.permute.xlu0 %570
  %572 = vrot.lane.b32.xlu0 %v355, 4
  %v573 = vpop.permute.xlu0 %572
  %574 = vrot.lane.b32.xlu0 %v363, 4
  %v575 = vpop.permute.xlu0 %574
  %576 = vrot.lane.b32.xlu0 %v367, 4
  %v577 = vpop.permute.xlu0 %576
  %578 = vrot.lane.b32.xlu0 %v371, 4
  %v579 = vpop.permute.xlu0 %578
  %580 = vrot.lane.b32.xlu0 %v375, 4
  %v581 = vpop.permute.xlu0 %580
  %582 = vrot.lane.b32.xlu0 %v379, 4
  %v583 = vpop.permute.xlu0 %582
  %584 = vrot.lane.b32.xlu0 %v383, 4
  %v585 = vpop.permute.xlu0 %584
  %586 = vrot.lane.b32.xlu0 %v387, 4
  %v587 = vpop.permute.xlu0 %586
  %588 = vrot.lane.b32.xlu0 %v391, 4
  %v589 = vpop.permute.xlu0 %588
  %622 = vrot.lane.b32.xlu0 %v399, 8
  %v623 = vpop.permute.xlu0 %622
  %624 = vrot.lane.b32.xlu0 %v403, 8
  %v625 = vpop.permute.xlu0 %624
  %626 = vrot.lane.b32.xlu0 %v407, 8
  %v627 = vpop.permute.xlu0 %626
  %628 = vrot.lane.b32.xlu0 %v411, 8
  %v629 = vpop.permute.xlu0 %628
  %630 = vrot.lane.b32.xlu0 %v415, 8
  %v631 = vpop.permute.xlu0 %630
  %632 = vrot.lane.b32.xlu0 %v419, 8
  %v633 = vpop.permute.xlu0 %632
  %634 = vrot.lane.b32.xlu0 %v423, 8
  %v635 = vpop.permute.xlu0 %634
  %636 = vrot.lane.b32.xlu0 %v427, 8
  %v637 = vpop.permute.xlu0 %636
  %638 = vrot.lane.b32.xlu0 %v435, 8
  %v639 = vpop.permute.xlu0 %638
  %640 = vrot.lane.b32.xlu0 %v439, 8
  %v641 = vpop.permute.xlu0 %640
  %642 = vrot.lane.b32.xlu0 %v443, 8
  %v643 = vpop.permute.xlu0 %642
  %644 = vrot.lane.b32.xlu0 %v447, 8
  %v645 = vpop.permute.xlu0 %644
  %646 = vrot.lane.b32.xlu0 %v451, 8
  %v647 = vpop.permute.xlu0 %646
  %648 = vrot.lane.b32.xlu0 %v455, 8
  %v649 = vpop.permute.xlu0 %648
  %650 = vrot.lane.b32.xlu0 %v459, 8
  %v651 = vpop.permute.xlu0 %650
  %652 = vrot.lane.b32.xlu0 %v463, 8
  %v653 = vpop.permute.xlu0 %652
  %686 = vrot.lane.b32.xlu0 %v471, 12
  %v687 = vpop.permute.xlu0 %686
  %688 = vrot.lane.b32.xlu0 %v475, 12
  %v689 = vpop.permute.xlu0 %688
  %690 = vrot.lane.b32.xlu0 %v479, 12
  %v691 = vpop.permute.xlu0 %690
  %692 = vrot.lane.b32.xlu0 %v483, 12
  %v693 = vpop.permute.xlu0 %692
  %694 = vrot.lane.b32.xlu0 %v487, 12
  %v695 = vpop.permute.xlu0 %694
  %696 = vrot.lane.b32.xlu0 %v491, 12
  %v697 = vpop.permute.xlu0 %696
  %698 = vrot.lane.b32.xlu0 %v495, 12
  %v699 = vpop.permute.xlu0 %698
  %700 = vrot.lane.b32.xlu0 %v499, 12
  %v701 = vpop.permute.xlu0 %700
  %702 = vrot.lane.b32.xlu0 %v507, 12
  %v703 = vpop.permute.xlu0 %702
  %704 = vrot.lane.b32.xlu0 %v511, 12
  %v705 = vpop.permute.xlu0 %704
  %706 = vrot.lane.b32.xlu0 %v515, 12
  %v707 = vpop.permute.xlu0 %706
  %708 = vrot.lane.b32.xlu0 %v519, 12
  %v709 = vpop.permute.xlu0 %708
  %710 = vrot.lane.b32.xlu0 %v523, 12
  %v711 = vpop.permute.xlu0 %710
  %712 = vrot.lane.b32.xlu0 %v527, 12
  %v713 = vpop.permute.xlu0 %712
  %714 = vrot.lane.b32.xlu0 %v531, 12
  %v715 = vpop.permute.xlu0 %714
  %716 = vrot.lane.b32.xlu0 %v535, 12
  %v717 = vpop.permute.xlu0 %716
  %750 = vrot.lane.b32.xlu0 %v257, 16
  %v751 = vpop.permute.xlu0 %750
  %752 = vrot.lane.b32.xlu0 %v261, 16
  %v753 = vpop.permute.xlu0 %752
  %754 = vrot.lane.b32.xlu0 %v265, 16
  %v755 = vpop.permute.xlu0 %754
  %756 = vrot.lane.b32.xlu0 %v269, 16
  %v757 = vpop.permute.xlu0 %756
  %758 = vrot.lane.b32.xlu0 %v273, 16
  %v759 = vpop.permute.xlu0 %758
  %760 = vrot.lane.b32.xlu0 %v277, 16
  %v761 = vpop.permute.xlu0 %760
  %762 = vrot.lane.b32.xlu0 %v281, 16
  %v763 = vpop.permute.xlu0 %762
  %764 = vrot.lane.b32.xlu0 %v285, 16
  %v765 = vpop.permute.xlu0 %764
  %766 = vrot.lane.b32.xlu0 %v293, 16
  %v767 = vpop.permute.xlu0 %766
  %768 = vrot.lane.b32.xlu0 %v297, 16
  %v769 = vpop.permute.xlu0 %768
  %770 = vrot.lane.b32.xlu0 %v301, 16
  %v771 = vpop.permute.xlu0 %770
  %772 = vrot.lane.b32.xlu0 %v305, 16
  %v773 = vpop.permute.xlu0 %772
  %774 = vrot.lane.b32.xlu0 %v309, 16
  %v775 = vpop.permute.xlu0 %774
  %776 = vrot.lane.b32.xlu0 %v313, 16
  %v777 = vpop.permute.xlu0 %776
  %778 = vrot.lane.b32.xlu0 %v317, 16
  %v779 = vpop.permute.xlu0 %778
  %780 = vrot.lane.b32.xlu0 %v321, 16
  %v781 = vpop.permute.xlu0 %780
  %814 = vrot.lane.b32.xlu0 %v329, 20
  %v815 = vpop.permute.xlu0 %814
  %816 = vrot.lane.b32.xlu0 %v333, 20
  %v817 = vpop.permute.xlu0 %816
  %818 = vrot.lane.b32.xlu0 %v337, 20
  %v819 = vpop.permute.xlu0 %818
  %820 = vrot.lane.b32.xlu0 %v341, 20
  %v821 = vpop.permute.xlu0 %820
  %822 = vrot.lane.b32.xlu0 %v345, 20
  %v823 = vpop.permute.xlu0 %822
  %824 = vrot.lane.b32.xlu0 %v349, 20
  %v825 = vpop.permute.xlu0 %824
  %826 = vrot.lane.b32.xlu0 %v353, 20
  %v827 = vpop.permute.xlu0 %826
  %828 = vrot.lane.b32.xlu0 %v357, 20
  %v829 = vpop.permute.xlu0 %828
  %830 = vrot.lane.b32.xlu0 %v365, 20
  %v831 = vpop.permute.xlu0 %830
  %832 = vrot.lane.b32.xlu0 %v369, 20
  %v833 = vpop.permute.xlu0 %832
  %834 = vrot.lane.b32.xlu0 %v373, 20
  %v835 = vpop.permute.xlu0 %834
  %836 = vrot.lane.b32.xlu0 %v377, 20
  %v837 = vpop.permute.xlu0 %836
  %838 = vrot.lane.b32.xlu0 %v381, 20
  %v839 = vpop.permute.xlu0 %838
  %840 = vrot.lane.b32.xlu0 %v385, 20
  %v841 = vpop.permute.xlu0 %840
  %842 = vrot.lane.b32.xlu0 %v389, 20
  %v843 = vpop.permute.xlu0 %842
  %844 = vrot.lane.b32.xlu0 %v393, 20
  %v845 = vpop.permute.xlu0 %844
  %878 = vrot.lane.b32.xlu0 %v401, 24
  %v879 = vpop.permute.xlu0 %878
  %880 = vrot.lane.b32.xlu0 %v405, 24
  %v881 = vpop.permute.xlu0 %880
  %882 = vrot.lane.b32.xlu0 %v409, 24
  %v883 = vpop.permute.xlu0 %882
  %884 = vrot.lane.b32.xlu0 %v413, 24
  %v885 = vpop.permute.xlu0 %884
  %886 = vrot.lane.b32.xlu0 %v417, 24
  %v887 = vpop.permute.xlu0 %886
  %888 = vrot.lane.b32.xlu0 %v421, 24
  %v889 = vpop.permute.xlu0 %888
  %890 = vrot.lane.b32.xlu0 %v425, 24
  %v891 = vpop.permute.xlu0 %890
  %892 = vrot.lane.b32.xlu0 %v429, 24
  %v893 = vpop.permute.xlu0 %892
  %894 = vrot.lane.b32.xlu0 %v437, 24
  %v895 = vpop.permute.xlu0 %894
  %896 = vrot.lane.b32.xlu0 %v441, 24
  %v897 = vpop.permute.xlu0 %896
  %898 = vrot.lane.b32.xlu0 %v445, 24
  %v899 = vpop.permute.xlu0 %898
  %900 = vrot.lane.b32.xlu0 %v449, 24
  %v901 = vpop.permute.xlu0 %900
  %902 = vrot.lane.b32.xlu0 %v453, 24
  %v903 = vpop.permute.xlu0 %902
  %904 = vrot.lane.b32.xlu0 %v457, 24
  %v905 = vpop.permute.xlu0 %904
  %906 = vrot.lane.b32.xlu0 %v461, 24
  %v907 = vpop.permute.xlu0 %906
  %908 = vrot.lane.b32.xlu0 %v465, 24
  %v909 = vpop.permute.xlu0 %908
  %942 = vrot.lane.b32.xlu0 %v473, 28
  %v943 = vpop.permute.xlu0 %942
  %944 = vrot.lane.b32.xlu0 %v477, 28
  %v945 = vpop.permute.xlu0 %944
  %946 = vrot.lane.b32.xlu0 %v481, 28
  %v947 = vpop.permute.xlu0 %946
  %948 = vrot.lane.b32.xlu0 %v485, 28
  %v949 = vpop.permute.xlu0 %948
  %950 = vrot.lane.b32.xlu0 %v489, 28
  %v951 = vpop.permute.xlu0 %950
  %952 = vrot.lane.b32.xlu0 %v493, 28
  %v953 = vpop.permute.xlu0 %952
  %954 = vrot.lane.b32.xlu0 %v497, 28
  %v955 = vpop.permute.xlu0 %954
  %956 = vrot.lane.b32.xlu0 %v501, 28
  %v957 = vpop.permute.xlu0 %956
  %958 = vrot.lane.b32.xlu0 %v509, 28
  %v959 = vpop.permute.xlu0 %958
  %960 = vrot.lane.b32.xlu0 %v513, 28
  %v961 = vpop.permute.xlu0 %960
  %962 = vrot.lane.b32.xlu0 %v517, 28
  %v963 = vpop.permute.xlu0 %962
  %964 = vrot.lane.b32.xlu0 %v521, 28
  %v965 = vpop.permute.xlu0 %964
  %966 = vrot.lane.b32.xlu0 %v525, 28
  %v967 = vpop.permute.xlu0 %966
  %968 = vrot.lane.b32.xlu0 %v529, 28
  %v969 = vpop.permute.xlu0 %968
  %970 = vrot.lane.b32.xlu0 %v533, 28
  %v971 = vpop.permute.xlu0 %970
  %972 = vrot.lane.b32.xlu0 %v537, 28
  %v973 = vpop.permute.xlu0 %972
  %1006 = vrot.lane.b32.xlu0 %v259, 32
  %v1007 = vpop.permute.xlu0 %1006
  %1008 = vrot.lane.b32.xlu0 %v263, 32
  %v1009 = vpop.permute.xlu0 %1008
  %1010 = vrot.lane.b32.xlu0 %v267, 32
  %v1011 = vpop.permute.xlu0 %1010
  %1012 = vrot.lane.b32.xlu0 %v271, 32
  %v1013 = vpop.permute.xlu0 %1012
  %1014 = vrot.lane.b32.xlu0 %v275, 32
  %v1015 = vpop.permute.xlu0 %1014
  %1016 = vrot.lane.b32.xlu0 %v279, 32
  %v1017 = vpop.permute.xlu0 %1016
  %1018 = vrot.lane.b32.xlu0 %v283, 32
  %v1019 = vpop.permute.xlu0 %1018
  %1020 = vrot.lane.b32.xlu0 %v287, 32
  %v1021 = vpop.permute.xlu0 %1020
  %1022 = vrot.lane.b32.xlu0 %v295, 32
  %v1023 = vpop.permute.xlu0 %1022
  %1024 = vrot.lane.b32.xlu0 %v299, 32
  %v1025 = vpop.permute.xlu0 %1024
  %1026 = vrot.lane.b32.xlu0 %v303, 32
  %v1027 = vpop.permute.xlu0 %1026
  %1028 = vrot.lane.b32.xlu0 %v307, 32
  %v1029 = vpop.permute.xlu0 %1028
  %1030 = vrot.lane.b32.xlu0 %v311, 32
  %v1031 = vpop.permute.xlu0 %1030
  %1032 = vrot.lane.b32.xlu0 %v315, 32
  %v1033 = vpop.permute.xlu0 %1032
  %1034 = vrot.lane.b32.xlu0 %v319, 32
  %v1035 = vpop.permute.xlu0 %1034
  %1036 = vrot.lane.b32.xlu0 %v323, 32
  %v1037 = vpop.permute.xlu0 %1036
  %1056 = vrot.lane.b32.xlu0 %v331, 36
  %v1057 = vpop.permute.xlu0 %1056
  %1058 = vrot.lane.b32.xlu0 %v335, 36
  %v1059 = vpop.permute.xlu0 %1058
  %1060 = vrot.lane.b32.xlu0 %v339, 36
  %v1061 = vpop.permute.xlu0 %1060
  %1062 = vrot.lane.b32.xlu0 %v343, 36
  %v1063 = vpop.permute.xlu0 %1062
  %1064 = vrot.lane.b32.xlu0 %v347, 36
  %v1065 = vpop.permute.xlu0 %1064
  %1066 = vrot.lane.b32.xlu0 %v351, 36
  %v1067 = vpop.permute.xlu0 %1066
  %1068 = vrot.lane.b32.xlu0 %v355, 36
  %v1069 = vpop.permute.xlu0 %1068
  %1070 = vrot.lane.b32.xlu0 %v359, 36
  %v1071 = vpop.permute.xlu0 %1070
  %1072 = vrot.lane.b32.xlu0 %v367, 36
  %v1073 = vpop.permute.xlu0 %1072
  %1074 = vrot.lane.b32.xlu0 %v371, 36
  %v1075 = vpop.permute.xlu0 %1074
  %1076 = vrot.lane.b32.xlu0 %v375, 36
  %v1077 = vpop.permute.xlu0 %1076
  %1078 = vrot.lane.b32.xlu0 %v379, 36
  %v1079 = vpop.permute.xlu0 %1078
  %1080 = vrot.lane.b32.xlu0 %v383, 36
  %v1081 = vpop.permute.xlu0 %1080
  %1082 = vrot.lane.b32.xlu0 %v387, 36
  %v1083 = vpop.permute.xlu0 %1082
  %1084 = vrot.lane.b32.xlu0 %v391, 36
  %v1085 = vpop.permute.xlu0 %1084
  %1086 = vrot.lane.b32.xlu0 %v395, 36
  %v1087 = vpop.permute.xlu0 %1086
  %1106 = vrot.lane.b32.xlu0 %v403, 40
  %v1107 = vpop.permute.xlu0 %1106
  %1108 = vrot.lane.b32.xlu0 %v407, 40
  %v1109 = vpop.permute.xlu0 %1108
  %1110 = vrot.lane.b32.xlu0 %v411, 40
  %v1111 = vpop.permute.xlu0 %1110
  %1112 = vrot.lane.b32.xlu0 %v415, 40
  %v1113 = vpop.permute.xlu0 %1112
  %1114 = vrot.lane.b32.xlu0 %v419, 40
  %v1115 = vpop.permute.xlu0 %1114
  %1116 = vrot.lane.b32.xlu0 %v423, 40
  %v1117 = vpop.permute.xlu0 %1116
  %1118 = vrot.lane.b32.xlu0 %v427, 40
  %v1119 = vpop.permute.xlu0 %1118
  %1120 = vrot.lane.b32.xlu0 %v431, 40
  %v1121 = vpop.permute.xlu0 %1120
  %1122 = vrot.lane.b32.xlu0 %v439, 40
  %v1123 = vpop.permute.xlu0 %1122
  %1124 = vrot.lane.b32.xlu0 %v443, 40
  %v1125 = vpop.permute.xlu0 %1124
  %1126 = vrot.lane.b32.xlu0 %v447, 40
  %v1127 = vpop.permute.xlu0 %1126
  %1128 = vrot.lane.b32.xlu0 %v451, 40
  %v1129 = vpop.permute.xlu0 %1128
  %1130 = vrot.lane.b32.xlu0 %v455, 40
  %v1131 = vpop.permute.xlu0 %1130
  %1132 = vrot.lane.b32.xlu0 %v459, 40
  %v1133 = vpop.permute.xlu0 %1132
  %1134 = vrot.lane.b32.xlu0 %v463, 40
  %v1135 = vpop.permute.xlu0 %1134
  %1136 = vrot.lane.b32.xlu0 %v467, 40
  %v1137 = vpop.permute.xlu0 %1136
  %1156 = vrot.lane.b32.xlu0 %v475, 44
  %v1157 = vpop.permute.xlu0 %1156
  %1158 = vrot.lane.b32.xlu0 %v479, 44
  %v1159 = vpop.permute.xlu0 %1158
  %1160 = vrot.lane.b32.xlu0 %v483, 44
  %v1161 = vpop.permute.xlu0 %1160
  %1162 = vrot.lane.b32.xlu0 %v487, 44
  %v1163 = vpop.permute.xlu0 %1162
  %1164 = vrot.lane.b32.xlu0 %v491, 44
  %v1165 = vpop.permute.xlu0 %1164
  %1166 = vrot.lane.b32.xlu0 %v495, 44
  %v1167 = vpop.permute.xlu0 %1166
  %1168 = vrot.lane.b32.xlu0 %v499, 44
  %v1169 = vpop.permute.xlu0 %1168
  %1170 = vrot.lane.b32.xlu0 %v503, 44
  %v1171 = vpop.permute.xlu0 %1170
  %1172 = vrot.lane.b32.xlu0 %v511, 44
  %v1173 = vpop.permute.xlu0 %1172
  %1174 = vrot.lane.b32.xlu0 %v515, 44
  %v1175 = vpop.permute.xlu0 %1174
  %1176 = vrot.lane.b32.xlu0 %v519, 44
  %v1177 = vpop.permute.xlu0 %1176
  %1178 = vrot.lane.b32.xlu0 %v523, 44
  %v1179 = vpop.permute.xlu0 %1178
  %1180 = vrot.lane.b32.xlu0 %v527, 44
  %v1181 = vpop.permute.xlu0 %1180
  %1182 = vrot.lane.b32.xlu0 %v531, 44
  %v1183 = vpop.permute.xlu0 %1182
  %1184 = vrot.lane.b32.xlu0 %v535, 44
  %v1185 = vpop.permute.xlu0 %1184
  %1186 = vrot.lane.b32.xlu0 %v539, 44
  %v1187 = vpop.permute.xlu0 %1186
  %1206 = vrot.lane.b32.xlu0 %v261, 48
  %v1207 = vpop.permute.xlu0 %1206
  %1208 = vrot.lane.b32.xlu0 %v265, 48
  %v1209 = vpop.permute.xlu0 %1208
  %1210 = vrot.lane.b32.xlu0 %v269, 48
  %v1211 = vpop.permute.xlu0 %1210
  %1212 = vrot.lane.b32.xlu0 %v273, 48
  %v1213 = vpop.permute.xlu0 %1212
  %1214 = vrot.lane.b32.xlu0 %v277, 48
  %v1215 = vpop.permute.xlu0 %1214
  %1216 = vrot.lane.b32.xlu0 %v281, 48
  %v1217 = vpop.permute.xlu0 %1216
  %1218 = vrot.lane.b32.xlu0 %v285, 48
  %v1219 = vpop.permute.xlu0 %1218
  %1220 = vrot.lane.b32.xlu0 %v289, 48
  %v1221 = vpop.permute.xlu0 %1220
  %1222 = vrot.lane.b32.xlu0 %v297, 48
  %v1223 = vpop.permute.xlu0 %1222
  %1224 = vrot.lane.b32.xlu0 %v301, 48
  %v1225 = vpop.permute.xlu0 %1224
  %1226 = vrot.lane.b32.xlu0 %v305, 48
  %v1227 = vpop.permute.xlu0 %1226
  %1228 = vrot.lane.b32.xlu0 %v309, 48
  %v1229 = vpop.permute.xlu0 %1228
  %1230 = vrot.lane.b32.xlu0 %v313, 48
  %v1231 = vpop.permute.xlu0 %1230
  %1232 = vrot.lane.b32.xlu0 %v317, 48
  %v1233 = vpop.permute.xlu0 %1232
  %1234 = vrot.lane.b32.xlu0 %v321, 48
  %v1235 = vpop.permute.xlu0 %1234
  %1236 = vrot.lane.b32.xlu0 %v325, 48
  %v1237 = vpop.permute.xlu0 %1236
  %1256 = vrot.lane.b32.xlu0 %v333, 52
  %v1257 = vpop.permute.xlu0 %1256
  %1258 = vrot.lane.b32.xlu0 %v337, 52
  %v1259 = vpop.permute.xlu0 %1258
  %1260 = vrot.lane.b32.xlu0 %v341, 52
  %v1261 = vpop.permute.xlu0 %1260
  %1262 = vrot.lane.b32.xlu0 %v345, 52
  %v1263 = vpop.permute.xlu0 %1262
  %1264 = vrot.lane.b32.xlu0 %v349, 52
  %v1265 = vpop.permute.xlu0 %1264
  %1266 = vrot.lane.b32.xlu0 %v353, 52
  %v1267 = vpop.permute.xlu0 %1266
  %1268 = vrot.lane.b32.xlu0 %v357, 52
  %v1269 = vpop.permute.xlu0 %1268
  %1270 = vrot.lane.b32.xlu0 %v361, 52
  %v1271 = vpop.permute.xlu0 %1270
  %1272 = vrot.lane.b32.xlu0 %v369, 52
  %v1273 = vpop.permute.xlu0 %1272
  %1274 = vrot.lane.b32.xlu0 %v373, 52
  %v1275 = vpop.permute.xlu0 %1274
  %1276 = vrot.lane.b32.xlu0 %v377, 52
  %v1277 = vpop.permute.xlu0 %1276
  %1278 = vrot.lane.b32.xlu0 %v381, 52
  %v1279 = vpop.permute.xlu0 %1278
  %1280 = vrot.lane.b32.xlu0 %v385, 52
  %v1281 = vpop.permute.xlu0 %1280
  %1282 = vrot.lane.b32.xlu0 %v389, 52
  %v1283 = vpop.permute.xlu0 %1282
  %1284 = vrot.lane.b32.xlu0 %v393, 52
  %v1285 = vpop.permute.xlu0 %1284
  %1286 = vrot.lane.b32.xlu0 %v397, 52
  %v1287 = vpop.permute.xlu0 %1286
  %1306 = vrot.lane.b32.xlu0 %v405, 56
  %v1307 = vpop.permute.xlu0 %1306
  %1308 = vrot.lane.b32.xlu0 %v409, 56
  %v1309 = vpop.permute.xlu0 %1308
  %1310 = vrot.lane.b32.xlu0 %v413, 56
  %v1311 = vpop.permute.xlu0 %1310
  %1312 = vrot.lane.b32.xlu0 %v417, 56
  %v1313 = vpop.permute.xlu0 %1312
  %1314 = vrot.lane.b32.xlu0 %v421, 56
  %v1315 = vpop.permute.xlu0 %1314
  %1316 = vrot.lane.b32.xlu0 %v425, 56
  %v1317 = vpop.permute.xlu0 %1316
  %1318 = vrot.lane.b32.xlu0 %v429, 56
  %v1319 = vpop.permute.xlu0 %1318
  %1320 = vrot.lane.b32.xlu0 %v433, 56
  %v1321 = vpop.permute.xlu0 %1320
  %1322 = vrot.lane.b32.xlu0 %v441, 56
  %v1323 = vpop.permute.xlu0 %1322
  %1324 = vrot.lane.b32.xlu0 %v445, 56
  %v1325 = vpop.permute.xlu0 %1324
  %1326 = vrot.lane.b32.xlu0 %v449, 56
  %v1327 = vpop.permute.xlu0 %1326
  %1328 = vrot.lane.b32.xlu0 %v453, 56
  %v1329 = vpop.permute.xlu0 %1328
  %1330 = vrot.lane.b32.xlu0 %v457, 56
  %v1331 = vpop.permute.xlu0 %1330
  %1332 = vrot.lane.b32.xlu0 %v461, 56
  %v1333 = vpop.permute.xlu0 %1332
  %1334 = vrot.lane.b32.xlu0 %v465, 56
  %v1335 = vpop.permute.xlu0 %1334
  %1336 = vrot.lane.b32.xlu0 %v469, 56
  %v1337 = vpop.permute.xlu0 %1336
  %1356 = vrot.lane.b32.xlu0 %v477, 60
  %v1357 = vpop.permute.xlu0 %1356
  %1358 = vrot.lane.b32.xlu0 %v481, 60
  %v1359 = vpop.permute.xlu0 %1358
  %1360 = vrot.lane.b32.xlu0 %v485, 60
  %v1361 = vpop.permute.xlu0 %1360
  %1362 = vrot.lane.b32.xlu0 %v489, 60
  %v1363 = vpop.permute.xlu0 %1362
  %1364 = vrot.lane.b32.xlu0 %v493, 60
  %v1365 = vpop.permute.xlu0 %1364
  %1366 = vrot.lane.b32.xlu0 %v497, 60
  %v1367 = vpop.permute.xlu0 %1366
  %1368 = vrot.lane.b32.xlu0 %v501, 60
  %v1369 = vpop.permute.xlu0 %1368
  %1370 = vrot.lane.b32.xlu0 %v505, 60
  %v1371 = vpop.permute.xlu0 %1370
  %1372 = vrot.lane.b32.xlu0 %v513, 60
  %v1373 = vpop.permute.xlu0 %1372
  %1374 = vrot.lane.b32.xlu0 %v517, 60
  %v1375 = vpop.permute.xlu0 %1374
  %1376 = vrot.lane.b32.xlu0 %v521, 60
  %v1377 = vpop.permute.xlu0 %1376
  %1378 = vrot.lane.b32.xlu0 %v525, 60
  %v1379 = vpop.permute.xlu0 %1378
  %1380 = vrot.lane.b32.xlu0 %v529, 60
  %v1381 = vpop.permute.xlu0 %1380
  %1382 = vrot.lane.b32.xlu0 %v533, 60
  %v1383 = vpop.permute.xlu0 %1382
  %1384 = vrot.lane.b32.xlu0 %v537, 60
  %v1385 = vpop.permute.xlu0 %1384
  %1386 = vrot.lane.b32.xlu0 %v541, 60
  %v1387 = vpop.permute.xlu0 %1386
  %v1404 = vsel %vm102, %v255, %v559
  %v1405 = vsel %vm102, %v259, %v561
  %v1406 = vsel %vm102, %v263, %v563
  %v1407 = vsel %vm102, %v267, %v565
  %v1408 = vsel %vm102, %v271, %v567
  %v1409 = vsel %vm102, %v275, %v569
  %v1410 = vsel %vm102, %v279, %v571
  %v1411 = vsel %vm102, %v283, %v573
  %v1412 = vsel %vm102, %v291, %v575
  %v1413 = vsel %vm102, %v295, %v577
  %v1414 = vsel %vm102, %v299, %v579
  %v1415 = vsel %vm102, %v303, %v581
  %v1416 = vsel %vm102, %v307, %v583
  %v1417 = vsel %vm102, %v311, %v585
  %v1418 = vsel %vm102, %v315, %v587
  %v1419 = vsel %vm102, %v319, %v589
  %vm1420 = vcmask 64512
  %v1421 = vsel %vm1420, %v1404, %v623
  %v1422 = vsel %vm1420, %v1405, %v625
  %v1423 = vsel %vm1420, %v1406, %v627
  %v1424 = vsel %vm1420, %v1407, %v629
  %v1425 = vsel %vm1420, %v1408, %v631
  %v1426 = vsel %vm1420, %v1409, %v633
  %v1427 = vsel %vm1420, %v1410, %v635
  %v1428 = vsel %vm1420, %v1411, %v637
  %v1429 = vsel %vm1420, %v1412, %v639
  %v1430 = vsel %vm1420, %v1413, %v641
  %v1431 = vsel %vm1420, %v1414, %v643
  %v1432 = vsel %vm1420, %v1415, %v645
  %v1433 = vsel %vm1420, %v1416, %v647
  %v1434 = vsel %vm1420, %v1417, %v649
  %v1435 = vsel %vm1420, %v1418, %v651
  %v1436 = vsel %vm1420, %v1419, %v653
  %vm1437 = vcmask 97280
  %v1438 = vsel %vm1437, %v1421, %v687
  %v1439 = vsel %vm1437, %v1422, %v689
  %v1440 = vsel %vm1437, %v1423, %v691
  %v1441 = vsel %vm1437, %v1424, %v693
  %v1442 = vsel %vm1437, %v1425, %v695
  %v1443 = vsel %vm1437, %v1426, %v697
  %v1444 = vsel %vm1437, %v1427, %v699
  %v1445 = vsel %vm1437, %v1428, %v701
  %v1446 = vsel %vm1437, %v1429, %v703
  %v1447 = vsel %vm1437, %v1430, %v705
  %v1448 = vsel %vm1437, %v1431, %v707
  %v1449 = vsel %vm1437, %v1432, %v709
  %v1450 = vsel %vm1437, %v1433, %v711
  %v1451 = vsel %vm1437, %v1434, %v713
  %v1452 = vsel %vm1437, %v1435, %v715
  %v1453 = vsel %vm1437, %v1436, %v717
  %vm1454 = vcmask 130048
  %v1455 = vsel %vm1454, %v1438, %v751
  %v1456 = vsel %vm1454, %v1439, %v753
  %v1457 = vsel %vm1454, %v1440, %v755
  %v1458 = vsel %vm1454, %v1441, %v757
  %v1459 = vsel %vm1454, %v1442, %v759
  %v1460 = vsel %vm1454, %v1443, %v761
  %v1461 = vsel %vm1454, %v1444, %v763
  %v1462 = vsel %vm1454, %v1445, %v765
  %v1463 = vsel %vm1454, %v1446, %v767
  %v1464 = vsel %vm1454, %v1447, %v769
  %v1465 = vsel %vm1454, %v1448, %v771
  %v1466 = vsel %vm1454, %v1449, %v773
  %v1467 = vsel %vm1454, %v1450, %v775
  %v1468 = vsel %vm1454, %v1451, %v777
  %v1469 = vsel %vm1454, %v1452, %v779
  %v1470 = vsel %vm1454, %v1453, %v781
  %vm1471 = vcmask 162816
  %v1472 = vsel %vm1471, %v1455, %v815
  %v1473 = vsel %vm1471, %v1456, %v817
  %v1474 = vsel %vm1471, %v1457, %v819
  %v1475 = vsel %vm1471, %v1458, %v821
  %v1476 = vsel %vm1471, %v1459, %v823
  %v1477 = vsel %vm1471, %v1460, %v825
  %v1478 = vsel %vm1471, %v1461, %v827
  %v1479 = vsel %vm1471, %v1462, %v829
  %v1480 = vsel %vm1471, %v1463, %v831
  %v1481 = vsel %vm1471, %v1464, %v833
  %v1482 = vsel %vm1471, %v1465, %v835
  %v1483 = vsel %vm1471, %v1466, %v837
  %v1484 = vsel %vm1471, %v1467, %v839
  %v1485 = vsel %vm1471, %v1468, %v841
  %v1486 = vsel %vm1471, %v1469, %v843
  %v1487 = vsel %vm1471, %v1470, %v845
  %vm1488 = vcmask 195584
  %v1489 = vsel %vm1488, %v1472, %v879
  %v1490 = vsel %vm1488, %v1473, %v881
  %v1491 = vsel %vm1488, %v1474, %v883
  %v1492 = vsel %vm1488, %v1475, %v885
  %v1493 = vsel %vm1488, %v1476, %v887
  %v1494 = vsel %vm1488, %v1477, %v889
  %v1495 = vsel %vm1488, %v1478, %v891
  %v1496 = vsel %vm1488, %v1479, %v893
  %v1497 = vsel %vm1488, %v1480, %v895
  %v1498 = vsel %vm1488, %v1481, %v897
  %v1499 = vsel %vm1488, %v1482, %v899
  %v1500 = vsel %vm1488, %v1483, %v901
  %v1501 = vsel %vm1488, %v1484, %v903
  %v1502 = vsel %vm1488, %v1485, %v905
  %v1503 = vsel %vm1488, %v1486, %v907
  %v1504 = vsel %vm1488, %v1487, %v909
  %vm1505 = vcmask 228352
  %v1506 = vsel %vm1505, %v1489, %v943
  %v1507 = vsel %vm1505, %v1490, %v945
  %v1508 = vsel %vm1505, %v1491, %v947
  %v1509 = vsel %vm1505, %v1492, %v949
  %v1510 = vsel %vm1505, %v1493, %v951
  %v1511 = vsel %vm1505, %v1494, %v953
  %v1512 = vsel %vm1505, %v1495, %v955
  %v1513 = vsel %vm1505, %v1496, %v957
  %v1514 = vsel %vm1505, %v1497, %v959
  %v1515 = vsel %vm1505, %v1498, %v961
  %v1516 = vsel %vm1505, %v1499, %v963
  %v1517 = vsel %vm1505, %v1500, %v965
  %v1518 = vsel %vm1505, %v1501, %v967
  %v1519 = vsel %vm1505, %v1502, %v969
  %v1520 = vsel %vm1505, %v1503, %v971
  %v1521 = vsel %vm1505, %v1504, %v973
  %vm1522 = vcmask 261120
  %v1523 = vsel %vm1522, %v1506, %v1007
  %v1524 = vsel %vm1522, %v1507, %v1009
  %v1525 = vsel %vm1522, %v1508, %v1011
  %v1526 = vsel %vm1522, %v1509, %v1013
  %v1527 = vsel %vm1522, %v1510, %v1015
  %v1528 = vsel %vm1522, %v1511, %v1017
  %v1529 = vsel %vm1522, %v1512, %v1019
  %v1530 = vsel %vm1522, %v1513, %v1021
  %v1531 = vsel %vm1522, %v1514, %v1023
  %v1532 = vsel %vm1522, %v1515, %v1025
  %v1533 = vsel %vm1522, %v1516, %v1027
  %v1534 = vsel %vm1522, %v1517, %v1029
  %v1535 = vsel %vm1522, %v1518, %v1031
  %v1536 = vsel %vm1522, %v1519, %v1033
  %v1537 = vsel %vm1522, %v1520, %v1035
  %v1538 = vsel %vm1522, %v1521, %v1037
  %vm1539 = vcmask 293888
  %v1540 = vsel %vm1539, %v1523, %v1057
  %v1541 = vsel %vm1539, %v1524, %v1059
  %v1542 = vsel %vm1539, %v1525, %v1061
  %v1543 = vsel %vm1539, %v1526, %v1063
  %v1544 = vsel %vm1539, %v1527, %v1065
  %v1545 = vsel %vm1539, %v1528, %v1067
  %v1546 = vsel %vm1539, %v1529, %v1069
  %v1547 = vsel %vm1539, %v1530, %v1071
  %v1548 = vsel %vm1539, %v1531, %v1073
  %v1549 = vsel %vm1539, %v1532, %v1075
  %v1550 = vsel %vm1539, %v1533, %v1077
  %v1551 = vsel %vm1539, %v1534, %v1079
  %v1552 = vsel %vm1539, %v1535, %v1081
  %v1553 = vsel %vm1539, %v1536, %v1083
  %v1554 = vsel %vm1539, %v1537, %v1085
  %v1555 = vsel %vm1539, %v1538, %v1087
  %vm1556 = vcmask 326656
  %v1557 = vsel %vm1556, %v1540, %v1107
  %v1558 = vsel %vm1556, %v1541, %v1109
  %v1559 = vsel %vm1556, %v1542, %v1111
  %v1560 = vsel %vm1556, %v1543, %v1113
  %v1561 = vsel %vm1556, %v1544, %v1115
  %v1562 = vsel %vm1556, %v1545, %v1117
  %v1563 = vsel %vm1556, %v1546, %v1119
  %v1564 = vsel %vm1556, %v1547, %v1121
  %v1565 = vsel %vm1556, %v1548, %v1123
  %v1566 = vsel %vm1556, %v1549, %v1125
  %v1567 = vsel %vm1556, %v1550, %v1127
  %v1568 = vsel %vm1556, %v1551, %v1129
  %v1569 = vsel %vm1556, %v1552, %v1131
  %v1570 = vsel %vm1556, %v1553, %v1133
  %v1571 = vsel %vm1556, %v1554, %v1135
  %v1572 = vsel %vm1556, %v1555, %v1137
  %vm1573 = vcmask 359424
  %v1574 = vsel %vm1573, %v1557, %v1157
  %v1575 = vsel %vm1573, %v1558, %v1159
  %v1576 = vsel %vm1573, %v1559, %v1161
  %v1577 = vsel %vm1573, %v1560, %v1163
  %v1578 = vsel %vm1573, %v1561, %v1165
  %v1579 = vsel %vm1573, %v1562, %v1167
  %v1580 = vsel %vm1573, %v1563, %v1169
  %v1581 = vsel %vm1573, %v1564, %v1171
  %v1582 = vsel %vm1573, %v1565, %v1173
  %v1583 = vsel %vm1573, %v1566, %v1175
  %v1584 = vsel %vm1573, %v1567, %v1177
  %v1585 = vsel %vm1573, %v1568, %v1179
  %v1586 = vsel %vm1573, %v1569, %v1181
  %v1587 = vsel %vm1573, %v1570, %v1183
  %v1588 = vsel %vm1573, %v1571, %v1185
  %v1589 = vsel %vm1573, %v1572, %v1187
  %vm1590 = vcmask 392192
  %v1591 = vsel %vm1590, %v1574, %v1207
  %v1592 = vsel %vm1590, %v1575, %v1209
  %v1593 = vsel %vm1590, %v1576, %v1211
  %v1594 = vsel %vm1590, %v1577, %v1213
  %v1595 = vsel %vm1590, %v1578, %v1215
  %v1596 = vsel %vm1590, %v1579, %v1217
  %v1597 = vsel %vm1590, %v1580, %v1219
  %v1598 = vsel %vm1590, %v1581, %v1221
  %v1599 = vsel %vm1590, %v1582, %v1223
  %v1600 = vsel %vm1590, %v1583, %v1225
  %v1601 = vsel %vm1590, %v1584, %v1227
  %v1602 = vsel %vm1590, %v1585, %v1229
  %v1603 = vsel %vm1590, %v1586, %v1231
  %v1604 = vsel %vm1590, %v1587, %v1233
  %v1605 = vsel %vm1590, %v1588, %v1235
  %v1606 = vsel %vm1590, %v1589, %v1237
  %vm1607 = vcmask 424960
  %v1608 = vsel %vm1607, %v1591, %v1257
  %v1609 = vsel %vm1607, %v1592, %v1259
  %v1610 = vsel %vm1607, %v1593, %v1261
  %v1611 = vsel %vm1607, %v1594, %v1263
  %v1612 = vsel %vm1607, %v1595, %v1265
  %v1613 = vsel %vm1607, %v1596, %v1267
  %v1614 = vsel %vm1607, %v1597, %v1269
  %v1615 = vsel %vm1607, %v1598, %v1271
  %v1616 = vsel %vm1607, %v1599, %v1273
  %v1617 = vsel %vm1607, %v1600, %v1275
  %v1618 = vsel %vm1607, %v1601, %v1277
  %v1619 = vsel %vm1607, %v1602, %v1279
  %v1620 = vsel %vm1607, %v1603, %v1281
  %v1621 = vsel %vm1607, %v1604, %v1283
  %v1622 = vsel %vm1607, %v1605, %v1285
  %v1623 = vsel %vm1607, %v1606, %v1287
  %vm1624 = vcmask 457728
  %v1625 = vsel %vm1624, %v1608, %v1307
  %v1626 = vsel %vm1624, %v1609, %v1309
  %v1627 = vsel %vm1624, %v1610, %v1311
  %v1628 = vsel %vm1624, %v1611, %v1313
  %v1629 = vsel %vm1624, %v1612, %v1315
  %v1630 = vsel %vm1624, %v1613, %v1317
  %v1631 = vsel %vm1624, %v1614, %v1319
  %v1632 = vsel %vm1624, %v1615, %v1321
  %v1633 = vsel %vm1624, %v1616, %v1323
  %v1634 = vsel %vm1624, %v1617, %v1325
  %v1635 = vsel %vm1624, %v1618, %v1327
  %v1636 = vsel %vm1624, %v1619, %v1329
  %v1637 = vsel %vm1624, %v1620, %v1331
  %v1638 = vsel %vm1624, %v1621, %v1333
  %v1639 = vsel %vm1624, %v1622, %v1335
  %v1640 = vsel %vm1624, %v1623, %v1337
  %vm1641 = vcmask 490496
  %v1642 = vsel %vm1641, %v1625, %v1357
  %v1643 = vsel %vm1641, %v1626, %v1359
  %v1644 = vsel %vm1641, %v1627, %v1361
  %v1645 = vsel %vm1641, %v1628, %v1363
  %v1646 = vsel %vm1641, %v1629, %v1365
  %v1647 = vsel %vm1641, %v1630, %v1367
  %v1648 = vsel %vm1641, %v1631, %v1369
  %v1649 = vsel %vm1641, %v1632, %v1371
  %v1650 = vsel %vm1641, %v1633, %v1373
  %v1651 = vsel %vm1641, %v1634, %v1375
  %v1652 = vsel %vm1641, %v1635, %v1377
  %v1653 = vsel %vm1641, %v1636, %v1379
  %v1654 = vsel %vm1641, %v1637, %v1381
  %v1655 = vsel %vm1641, %v1638, %v1383
  %v1656 = vsel %vm1641, %v1639, %v1385
  %v1657 = vsel %vm1641, %v1640, %v1387
  %v1658 = vld [vmem:[%s1] sm:$0xff]
  %v1659 = vld [vmem:[%s1 + $0x8] sm:$0xff]
  %v1660 = vld [vmem:[%s1 + $0x10] sm:$0xff]
  %v1661 = vld [vmem:[%s1 + $0x18] sm:$0xff]
  %v1662 = vld [vmem:[%s1 + $0x20] sm:$0xff]
  %v1663 = vld [vmem:[%s1 + $0x28] sm:$0xff]
  %v1664 = vld [vmem:[%s1 + $0x30] sm:$0xff]
  %v1665 = vld [vmem:[%s1 + $0x38] sm:$0xff]
  %v1666 = vld [vmem:[%s2] sm:$0x1]
  %v1668 = vlaneseq
  %v1669 = vshrl.u32 %v1668, 7
  %v1670 = vsub.s32 0, %v1669
  %v1671 = vrot.slane %v1666, %v1670
  %vm1673 = vcmask 523264
  %v1675 = vsel %vm1673, %v1642, 0
  %v1678 = vsel %vm1673, %v1643, 0
  %v1681 = vsel %vm1673, %v1644, 0
  %v1684 = vsel %vm1673, %v1645, 0
  %v1687 = vsel %vm1673, %v1646, 0
  %v1690 = vsel %vm1673, %v1647, 0
  %v1693 = vsel %vm1673, %v1648, 0
  %v1696 = vsel %vm1673, %v1649, 0
  %v1699 = vsel %vm1673, %v1650, 0
  %v1702 = vsel %vm1673, %v1651, 0
  %v1705 = vsel %vm1673, %v1652, 0
  %v1708 = vsel %vm1673, %v1653, 0
  %v1711 = vsel %vm1673, %v1654, 0
  %v1714 = vsel %vm1673, %v1655, 0
  %v1717 = vsel %vm1673, %v1656, 0
  %v1720 = vsel %vm1673, %v1657, 0
  %1722 = vmatprep.subr.mxu0 0.0
  %1723 = vmatpush1.msra.mxu0 0.0
  %1724 = vmatprep.subr.mxu0 0.0
  %1725 = vmatpush1.msra.mxu0 0.0
  %1726 = vmatprep.subr.mxu0 0.0
  %1727 = vmatpush1.msra.mxu0 0.0
  %1728 = vmatprep.subr.mxu0 0.0
  %1729 = vmatpush1.msra.mxu0 0.0
  %1730 = vmatprep.subr.mxu0 0.0
  %1731 = vmatpush1.msra.mxu0 0.0
  %1732 = vmatprep.subr.mxu0 0.0
  %1733 = vmatpush1.msra.mxu0 0.0
  %1734 = vmatprep.subr.mxu0 0.0
  %1735 = vmatpush1.msra.mxu0 0.0
  %1736 = vmatprep.subr.mxu0 0.0
  %1737 = vmatpush1.msra.mxu0 0.0
  %1738 = vmatprep.subr.mxu0 0.0
  %1739 = vmatpush1.msra.mxu0 %v1665
  %1740 = vmatprep.subr.mxu0 0.0
  %1741 = vmatpush1.msra.mxu0 %v1664
  %1742 = vmatprep.subr.mxu0 0.0
  %1743 = vmatpush1.msra.mxu0 %v1663
  %1744 = vmatprep.subr.mxu0 0.0
  %1745 = vmatpush1.msra.mxu0 %v1662
  %1746 = vmatprep.subr.mxu0 0.0
  %1747 = vmatpush1.msra.mxu0 %v1661
  %1748 = vmatprep.subr.mxu0 0.0
  %1749 = vmatpush1.msra.mxu0 %v1660
  %1750 = vmatprep.subr.mxu0 0.0
  %1751 = vmatpush1.msra.mxu0 %v1659
  %1752 = vmatprep.subr.mxu0 0.0
  %1753 = vmatpush1.msra.mxu0 %v1658
  %1754 = vmatprep.subr.mxu0 0.0
  %1755 = vmatpush2.msra.mxu0 0.0
  %1756 = vmatprep.subr.mxu0 0.0
  %1757 = vmatpush2.msra.mxu0 0.0
  %1758 = vmatprep.subr.mxu0 0.0
  %1759 = vmatpush2.msra.mxu0 0.0
  %1760 = vmatprep.subr.mxu0 0.0
  %1761 = vmatpush2.msra.mxu0 0.0
  %1762 = vmatprep.subr.mxu0 0.0
  %1763 = vmatpush2.msra.mxu0 0.0
  %1764 = vmatprep.subr.mxu0 0.0
  %1765 = vmatpush2.msra.mxu0 0.0
  %1766 = vmatprep.subr.mxu0 0.0
  %1767 = vmatpush2.msra.mxu0 0.0
  %1768 = vmatprep.subr.mxu0 0.0
  %1769 = vmatpush2.msra.mxu0 0.0
  %1770 = vmatprep.subr.mxu0 0.0
  %1771 = vmatpush2.msra.mxu0 0.0
  %1772 = vmatprep.subr.mxu0 0.0
  %1773 = vmatpush2.msra.mxu0 0.0
  %1774 = vmatprep.subr.mxu0 0.0
  %1775 = vmatpush2.msra.mxu0 0.0
  %1776 = vmatprep.subr.mxu0 0.0
  %1777 = vmatpush2.msra.mxu0 0.0
  %1778 = vmatprep.subr.mxu0 0.0
  %1779 = vmatpush2.msra.mxu0 0.0
  %1780 = vmatprep.subr.mxu0 0.0
  %1781 = vmatpush2.msra.mxu0 0.0
  %1782 = vmatprep.subr.mxu0 0.0
  %1783 = vmatpush2.msra.mxu0 0.0
  %1784 = vmatprep.subr.mxu0 0.0
  %1785 = vmatpush2.msra.mxu0 0.0
  %1786 = vmatprep.mubr.f32.mxu0 0.0
  %1787 = vmatmul.mubr.f32.gmra.mxu0 %v1675
  %v1788 = vpop.f32.mrf.mxu0
  %v1789 = vadd.f32 %v1671, %v1788
  %v1790 = vpop.f32.mrf.mxu0
  %1791 = vmatprep.mubr.f32.mxu0 0.0
  %1792 = vmatmul.mubr.f32.gmra.mxu0 %v1678
  %v1793 = vpop.f32.mrf.mxu0
  %v1794 = vadd.f32 %v1671, %v1793
  %v1795 = vpop.f32.mrf.mxu0
  %1796 = vmatprep.mubr.f32.mxu0 0.0
  %1797 = vmatmul.mubr.f32.gmra.mxu0 %v1681
  %v1798 = vpop.f32.mrf.mxu0
  %v1799 = vadd.f32 %v1671, %v1798
  %v1800 = vpop.f32.mrf.mxu0
  %1801 = vmatprep.mubr.f32.mxu0 0.0
  %1802 = vmatmul.mubr.f32.gmra.mxu0 %v1684
  %v1803 = vpop.f32.mrf.mxu0
  %v1804 = vadd.f32 %v1671, %v1803
  %v1805 = vpop.f32.mrf.mxu0
  %1806 = vmatprep.mubr.f32.mxu0 0.0
  %1807 = vmatmul.mubr.f32.gmra.mxu0 %v1687
  %v1808 = vpop.f32.mrf.mxu0
  %v1809 = vadd.f32 %v1671, %v1808
  %v1810 = vpop.f32.mrf.mxu0
  %1811 = vmatprep.mubr.f32.mxu0 0.0
  %1812 = vmatmul.mubr.f32.gmra.mxu0 %v1690
  %v1813 = vpop.f32.mrf.mxu0
  %v1814 = vadd.f32 %v1671, %v1813
  %v1815 = vpop.f32.mrf.mxu0
  %1816 = vmatprep.mubr.f32.mxu0 0.0
  %1817 = vmatmul.mubr.f32.gmra.mxu0 %v1693
  %v1818 = vpop.f32.mrf.mxu0
  %v1819 = vadd.f32 %v1671, %v1818
  %v1820 = vpop.f32.mrf.mxu0
  %1821 = vmatprep.mubr.f32.mxu0 0.0
  %1822 = vmatmul.mubr.f32.gmra.mxu0 %v1696
  %v1823 = vpop.f32.mrf.mxu0
  %v1824 = vadd.f32 %v1671, %v1823
  %v1825 = vpop.f32.mrf.mxu0
  %1826 = vmatprep.mubr.f32.mxu0 0.0
  %1827 = vmatmul.mubr.f32.gmra.mxu0 %v1699
  %v1828 = vpop.f32.mrf.mxu0
  %v1829 = vadd.f32 %v1671, %v1828
  %v1830 = vpop.f32.mrf.mxu0
  %1831 = vmatprep.mubr.f32.mxu0 0.0
  %1832 = vmatmul.mubr.f32.gmra.mxu0 %v1702
  %v1833 = vpop.f32.mrf.mxu0
  %v1834 = vadd.f32 %v1671, %v1833
  %v1835 = vpop.f32.mrf.mxu0
  %1836 = vmatprep.mubr.f32.mxu0 0.0
  %1837 = vmatmul.mubr.f32.gmra.mxu0 %v1705
  %v1838 = vpop.f32.mrf.mxu0
  %v1839 = vadd.f32 %v1671, %v1838
  %v1840 = vpop.f32.mrf.mxu0
  %1841 = vmatprep.mubr.f32.mxu0 0.0
  %1842 = vmatmul.mubr.f32.gmra.mxu0 %v1708
  %v1843 = vpop.f32.mrf.mxu0
  %v1844 = vadd.f32 %v1671, %v1843
  %v1845 = vpop.f32.mrf.mxu0
  %1846 = vmatprep.mubr.f32.mxu0 0.0
  %1847 = vmatmul.mubr.f32.gmra.mxu0 %v1711
  %v1848 = vpop.f32.mrf.mxu0
  %v1849 = vadd.f32 %v1671, %v1848
  %v1850 = vpop.f32.mrf.mxu0
  %1851 = vmatprep.mubr.f32.mxu0 0.0
  %1852 = vmatmul.mubr.f32.gmra.mxu0 %v1714
  %v1853 = vpop.f32.mrf.mxu0
  %v1854 = vadd.f32 %v1671, %v1853
  %v1855 = vpop.f32.mrf.mxu0
  %1856 = vmatprep.mubr.f32.mxu0 0.0
  %1857 = vmatmul.mubr.f32.gmra.mxu0 %v1717
  %v1858 = vpop.f32.mrf.mxu0
  %v1859 = vadd.f32 %v1671, %v1858
  %v1860 = vpop.f32.mrf.mxu0
  %1861 = vmatprep.mubr.f32.mxu0 0.0
  %1862 = vmatmul.mubr.f32.gmra.mxu0 %v1720
  %v1863 = vpop.f32.mrf.mxu0
  %v1864 = vadd.f32 %v1671, %v1863
  %v1865 = vpop.f32.mrf.mxu0
  %1866 = vdwg.mxu0
  %v1867 = vmax.f32 %v1789, 0.0
  %v1868 = vmax.f32 %v1794, 0.0
  %v1869 = vmax.f32 %v1799, 0.0
  %v1870 = vmax.f32 %v1804, 0.0
  %v1871 = vmax.f32 %v1809, 0.0
  %v1872 = vmax.f32 %v1814, 0.0
  %v1873 = vmax.f32 %v1819, 0.0
  %v1874 = vmax.f32 %v1824, 0.0
  %v1875 = vmax.f32 %v1829, 0.0
  %v1876 = vmax.f32 %v1834, 0.0
  %v1877 = vmax.f32 %v1839, 0.0
  %v1878 = vmax.f32 %v1844, 0.0
  %v1879 = vmax.f32 %v1849, 0.0
  %v1880 = vmax.f32 %v1854, 0.0
  %v1881 = vmax.f32 %v1859, 0.0
  %v1882 = vmax.f32 %v1864, 0.0
  %1883 = vst.msk [vmem:[#allocation3] sm:$0xff] %vm1420, 0.0
  %vm1884 = vcmask 58368
  %1885 = vst.msk [vmem:[#allocation3 + $0x8] sm:$0x3] %vm1884, 0.0
  %1886 = vst.msk [vmem:[#allocation3 + $0xa0] sm:$0xff] %vm1420, 0.0
  %1887 = vst.msk [vmem:[#allocation3 + $0xa8] sm:$0x3] %vm1884, 0.0
  %s1888 = scalar_lea.vmem [#allocation3], 144
  %1889 = vst.msk [vmem:[%s1888] sm:$0xff] %vm1420, 0.0
  %1890 = vst.msk [vmem:[%s1888 + $0x8] sm:$0x3] %vm1884, 0.0
  %1891 = vst.msk [vmem:[%s1888 + $0xa0] sm:$0xff] %vm1420, 0.0
  %1892 = vst.msk [vmem:[%s1888 + $0xa8] sm:$0x3] %vm1884, 0.0
  %vm1893 = vcmask 57344
  %1894 = vst.msk [vmem:[#allocation3] sm:$0x1] %vm1893, 0.0
  %1895 = vst.msk [vmem:[#allocation3 + $0x10] sm:$0x1] %vm1893, 0.0
  %1896 = vst.msk [vmem:[#allocation3 + $0x20] sm:$0x1] %vm1893, 0.0
  %1897 = vst.msk [vmem:[#allocation3 + $0x30] sm:$0x1] %vm1893, 0.0
  %1898 = vst.msk [vmem:[#allocation3 + $0x40] sm:$0x1] %vm1893, 0.0
  %1899 = vst.msk [vmem:[#allocation3 + $0x50] sm:$0x1] %vm1893, 0.0
  %1900 = vst.msk [vmem:[#allocation3 + $0x60] sm:$0x1] %vm1893, 0.0
  %1901 = vst.msk [vmem:[#allocation3 + $0x70] sm:$0x1] %vm1893, 0.0
  %1902 = vst.msk [vmem:[#allocation3 + $0x80] sm:$0x1] %vm1893, 0.0
  %1903 = vst.msk [vmem:[#allocation3 + $0x90] sm:$0x1] %vm1893, 0.0
  %1904 = vst.msk [vmem:[#allocation3 + $0xa0] sm:$0x1] %vm1893, 0.0
  %1905 = vst.msk [vmem:[#allocation3 + $0xb0] sm:$0x1] %vm1893, 0.0
  %1906 = vst.msk [vmem:[#allocation3 + $0xc0] sm:$0x1] %vm1893, 0.0
  %1907 = vst.msk [vmem:[#allocation3 + $0xd0] sm:$0x1] %vm1893, 0.0
  %1908 = vst.msk [vmem:[#allocation3 + $0xe0] sm:$0x1] %vm1893, 0.0
  %1909 = vst.msk [vmem:[#allocation3 + $0xf0] sm:$0x1] %vm1893, 0.0
  %1910 = vst.msk [vmem:[#allocation3 + $0x100] sm:$0x1] %vm1893, 0.0
  %1911 = vst.msk [vmem:[#allocation3 + $0x110] sm:$0x1] %vm1893, 0.0
  %1912 = vst.msk [vmem:[#allocation3 + $0x120] sm:$0x1] %vm1893, 0.0
  %1913 = vst.msk [vmem:[#allocation3 + $0x130] sm:$0x1] %vm1893, 0.0
  %1914 = vst.msk [vmem:[#allocation3 + $0x9] sm:$0x1] %vm1893, 0.0
  %1915 = vst.msk [vmem:[#allocation3 + $0x19] sm:$0x1] %vm1893, 0.0
  %1916 = vst.msk [vmem:[#allocation3 + $0x29] sm:$0x1] %vm1893, 0.0
  %1917 = vst.msk [vmem:[#allocation3 + $0x39] sm:$0x1] %vm1893, 0.0
  %1918 = vst.msk [vmem:[#allocation3 + $0x49] sm:$0x1] %vm1893, 0.0
  %1919 = vst.msk [vmem:[#allocation3 + $0x59] sm:$0x1] %vm1893, 0.0
  %1920 = vst.msk [vmem:[#allocation3 + $0x69] sm:$0x1] %vm1893, 0.0
  %1921 = vst.msk [vmem:[#allocation3 + $0x79] sm:$0x1] %vm1893, 0.0
  %1922 = vst.msk [vmem:[#allocation3 + $0x89] sm:$0x1] %vm1893, 0.0
  %1923 = vst.msk [vmem:[#allocation3 + $0x99] sm:$0x1] %vm1893, 0.0
  %1924 = vst.msk [vmem:[#allocation3 + $0xa9] sm:$0x1] %vm1893, 0.0
  %1925 = vst.msk [vmem:[#allocation3 + $0xb9] sm:$0x1] %vm1893, 0.0
  %1926 = vst.msk [vmem:[#allocation3 + $0xc9] sm:$0x1] %vm1893, 0.0
  %1927 = vst.msk [vmem:[#allocation3 + $0xd9] sm:$0x1] %vm1893, 0.0
  %1928 = vst.msk [vmem:[#allocation3 + $0xe9] sm:$0x1] %vm1893, 0.0
  %1929 = vst.msk [vmem:[#allocation3 + $0xf9] sm:$0x1] %vm1893, 0.0
  %1930 = vst.msk [vmem:[#allocation3 + $0x109] sm:$0x1] %vm1893, 0.0
  %1931 = vst.msk [vmem:[#allocation3 + $0x119] sm:$0x1] %vm1893, 0.0
  %1932 = vst.msk [vmem:[#allocation3 + $0x129] sm:$0x1] %vm1893, 0.0
  %1933 = vst.msk [vmem:[#allocation3 + $0x139] sm:$0x1] %vm1893, 0.0
  %s1934 = scalar_lea.vmem [#allocation3], 16
  %1935 = vst.msk [vmem:[%s1934 + $0x1] sm:$0xff] %vm1420, %v1867
  %1936 = vst.msk [vmem:[%s1934 + $0x11] sm:$0xff] %vm1420, %v1868
  %1937 = vst.msk [vmem:[%s1934 + $0x21] sm:$0xff] %vm1420, %v1869
  %1938 = vst.msk [vmem:[%s1934 + $0x31] sm:$0xff] %vm1420, %v1870
  %1939 = vst.msk [vmem:[%s1934 + $0x41] sm:$0xff] %vm1420, %v1871
  %1940 = vst.msk [vmem:[%s1934 + $0x51] sm:$0xff] %vm1420, %v1872
  %1941 = vst.msk [vmem:[%s1934 + $0x61] sm:$0xff] %vm1420, %v1873
  %1942 = vst.msk [vmem:[%s1934 + $0x71] sm:$0xff] %vm1420, %v1874
  %1943 = vst.msk [vmem:[%s1934 + $0xa1] sm:$0xff] %vm1420, %v1875
  %1944 = vst.msk [vmem:[%s1934 + $0xb1] sm:$0xff] %vm1420, %v1876
  %1945 = vst.msk [vmem:[%s1934 + $0xc1] sm:$0xff] %vm1420, %v1877
  %1946 = vst.msk [vmem:[%s1934 + $0xd1] sm:$0xff] %vm1420, %v1878
  %1947 = vst.msk [vmem:[%s1934 + $0xe1] sm:$0xff] %vm1420, %v1879
  %1948 = vst.msk [vmem:[%s1934 + $0xf1] sm:$0xff] %vm1420, %v1880
  %1949 = vst.msk [vmem:[%s1934 + $0x101] sm:$0xff] %vm1420, %v1881
  %1950 = vst.msk [vmem:[%s1934 + $0x111] sm:$0xff] %vm1420, %v1882
  %v1951 = vld [vmem:[#allocation3] ss:$2 sm:$0xf]
  %s1952 = scalar_lea.vmem [#allocation3], 16
  %v1953 = vld [vmem:[%s1952] ss:$2 sm:$0xf]
  %s1954 = scalar_lea.vmem [#allocation3], 32
  %v1955 = vld [vmem:[%s1954] ss:$2 sm:$0xf]
  %s1956 = scalar_lea.vmem [#allocation3], 48
  %v1957 = vld [vmem:[%s1956] ss:$2 sm:$0xf]
  %s1958 = scalar_lea.vmem [#allocation3], 64
  %v1959 = vld [vmem:[%s1958] ss:$2 sm:$0xf]
  %s1960 = scalar_lea.vmem [#allocation3], 80
  %v1961 = vld [vmem:[%s1960] ss:$2 sm:$0xf]
  %s1962 = scalar_lea.vmem [#allocation3], 96
  %v1963 = vld [vmem:[%s1962] ss:$2 sm:$0xf]
  %s1964 = scalar_lea.vmem [#allocation3], 112
  %v1965 = vld [vmem:[%s1964] ss:$2 sm:$0xf]
  %s1966 = scalar_lea.vmem [#allocation3], 128
  %v1967 = vld [vmem:[%s1966] ss:$2 sm:$0xf]
  %s1968 = scalar_lea.vmem [#allocation3], 144
  %v1969 = vld [vmem:[%s1968] ss:$2 sm:$0xf]
  %s1970 = scalar_lea.vmem [#allocation3], 160
  %v1971 = vld [vmem:[%s1970] ss:$2 sm:$0xf]
  %s1972 = scalar_lea.vmem [#allocation3], 176
  %v1973 = vld [vmem:[%s1972] ss:$2 sm:$0xf]
  %s1974 = scalar_lea.vmem [#allocation3], 192
  %v1975 = vld [vmem:[%s1974] ss:$2 sm:$0xf]
  %s1976 = scalar_lea.vmem [#allocation3], 208
  %v1977 = vld [vmem:[%s1976] ss:$2 sm:$0xf]
  %s1978 = scalar_lea.vmem [#allocation3], 224
  %v1979 = vld [vmem:[%s1978] ss:$2 sm:$0xf]
  %s1980 = scalar_lea.vmem [#allocation3], 240
  %v1981 = vld [vmem:[%s1980] ss:$2 sm:$0xf]
  %s1982 = scalar_lea.vmem [#allocation3], 256
  %v1983 = vld [vmem:[%s1982] ss:$2 sm:$0xf]
  %s1984 = scalar_lea.vmem [#allocation3], 272
  %v1985 = vld [vmem:[%s1984] ss:$2 sm:$0xf]
  %s1986 = scalar_lea.vmem [#allocation3], 288
  %v1987 = vld [vmem:[%s1986] ss:$2 sm:$0xf]
  %s1988 = scalar_lea.vmem [#allocation3], 304
  %v1989 = vld [vmem:[%s1988] ss:$2 sm:$0xf]
  %s1990 = scalar_lea.vmem [#allocation3], 1
  %v1991 = vld [vmem:[%s1990] ss:$2 sm:$0xf]
  %s1992 = scalar_lea.vmem [#allocation3], 17
  %v1993 = vld [vmem:[%s1992] ss:$2 sm:$0xf]
  %s1994 = scalar_lea.vmem [#allocation3], 33
  %v1995 = vld [vmem:[%s1994] ss:$2 sm:$0xf]
  %s1996 = scalar_lea.vmem [#allocation3], 49
  %v1997 = vld [vmem:[%s1996] ss:$2 sm:$0xf]
  %s1998 = scalar_lea.vmem [#allocation3], 65
  %v1999 = vld [vmem:[%s1998] ss:$2 sm:$0xf]
  %s2000 = scalar_lea.vmem [#allocation3], 81
  %v2001 = vld [vmem:[%s2000] ss:$2 sm:$0xf]
  %s2002 = scalar_lea.vmem [#allocation3], 97
  %v2003 = vld [vmem:[%s2002] ss:$2 sm:$0xf]
  %s2004 = scalar_lea.vmem [#allocation3], 113
  %v2005 = vld [vmem:[%s2004] ss:$2 sm:$0xf]
  %s2006 = scalar_lea.vmem [#allocation3], 129
  %v2007 = vld [vmem:[%s2006] ss:$2 sm:$0xf]
  %s2008 = scalar_lea.vmem [#allocation3], 145
  %v2009 = vld [vmem:[%s2008] ss:$2 sm:$0xf]
  %s2010 = scalar_lea.vmem [#allocation3], 161
  %v2011 = vld [vmem:[%s2010] ss:$2 sm:$0xf]
  %s2012 = scalar_lea.vmem [#allocation3], 177
  %v2013 = vld [vmem:[%s2012] ss:$2 sm:$0xf]
  %s2014 = scalar_lea.vmem [#allocation3], 193
  %v2015 = vld [vmem:[%s2014] ss:$2 sm:$0xf]
  %s2016 = scalar_lea.vmem [#allocation3], 209
  %v2017 = vld [vmem:[%s2016] ss:$2 sm:$0xf]
  %s2018 = scalar_lea.vmem [#allocation3], 225
  %v2019 = vld [vmem:[%s2018] ss:$2 sm:$0xf]
  %s2020 = scalar_lea.vmem [#allocation3], 241
  %v2021 = vld [vmem:[%s2020] ss:$2 sm:$0xf]
  %s2022 = scalar_lea.vmem [#allocation3], 257
  %v2023 = vld [vmem:[%s2022] ss:$2 sm:$0xf]
  %s2024 = scalar_lea.vmem [#allocation3], 273
  %v2025 = vld [vmem:[%s2024] ss:$2 sm:$0xf]
  %s2026 = scalar_lea.vmem [#allocation3], 289
  %v2027 = vld [vmem:[%s2026] ss:$2 sm:$0xf]
  %s2028 = scalar_lea.vmem [#allocation3], 305
  %v2029 = vld [vmem:[%s2028] ss:$2 sm:$0xf]
  %s2030 = scalar_lea.vmem [#allocation3], 2
  %v2031 = vld [vmem:[%s2030] ss:$2 sm:$0xf]
  %s2032 = scalar_lea.vmem [#allocation3], 18
  %v2033 = vld [vmem:[%s2032] ss:$2 sm:$0xf]
  %s2034 = scalar_lea.vmem [#allocation3], 34
  %v2035 = vld [vmem:[%s2034] ss:$2 sm:$0xf]
  %s2036 = scalar_lea.vmem [#allocation3], 50
  %v2037 = vld [vmem:[%s2036] ss:$2 sm:$0xf]
  %s2038 = scalar_lea.vmem [#allocation3], 66
  %v2039 = vld [vmem:[%s2038] ss:$2 sm:$0xf]
  %s2040 = scalar_lea.vmem [#allocation3], 82
  %v2041 = vld [vmem:[%s2040] ss:$2 sm:$0xf]
  %s2042 = scalar_lea.vmem [#allocation3], 98
  %v2043 = vld [vmem:[%s2042] ss:$2 sm:$0xf]
  %s2044 = scalar_lea.vmem [#allocation3], 114
  %v2045 = vld [vmem:[%s2044] ss:$2 sm:$0xf]
  %s2046 = scalar_lea.vmem [#allocation3], 130
  %v2047 = vld [vmem:[%s2046] ss:$2 sm:$0xf]
  %s2048 = scalar_lea.vmem [#allocation3], 146
  %v2049 = vld [vmem:[%s2048] ss:$2 sm:$0xf]
  %s2050 = scalar_lea.vmem [#allocation3], 162
  %v2051 = vld [vmem:[%s2050] ss:$2 sm:$0xf]
  %s2052 = scalar_lea.vmem [#allocation3], 178
  %v2053 = vld [vmem:[%s2052] ss:$2 sm:$0xf]
  %s2054 = scalar_lea.vmem [#allocation3], 194
  %v2055 = vld [vmem:[%s2054] ss:$2 sm:$0xf]
  %s2056 = scalar_lea.vmem [#allocation3], 210
  %v2057 = vld [vmem:[%s2056] ss:$2 sm:$0xf]
  %s2058 = scalar_lea.vmem [#allocation3], 226
  %v2059 = vld [vmem:[%s2058] ss:$2 sm:$0xf]
  %s2060 = scalar_lea.vmem [#allocation3], 242
  %v2061 = vld [vmem:[%s2060] ss:$2 sm:$0xf]
  %s2062 = scalar_lea.vmem [#allocation3], 258
  %v2063 = vld [vmem:[%s2062] ss:$2 sm:$0xf]
  %s2064 = scalar_lea.vmem [#allocation3], 274
  %v2065 = vld [vmem:[%s2064] ss:$2 sm:$0xf]
  %s2066 = scalar_lea.vmem [#allocation3], 290
  %v2067 = vld [vmem:[%s2066] ss:$2 sm:$0xf]
  %s2068 = scalar_lea.vmem [#allocation3], 306
  %v2069 = vld [vmem:[%s2068] ss:$2 sm:$0xf]
  %s2070 = scalar_lea.vmem [#allocation3], 3
  %v2071 = vld [vmem:[%s2070] ss:$2 sm:$0xf]
  %s2072 = scalar_lea.vmem [#allocation3], 19
  %v2073 = vld [vmem:[%s2072] ss:$2 sm:$0xf]
  %s2074 = scalar_lea.vmem [#allocation3], 35
  %v2075 = vld [vmem:[%s2074] ss:$2 sm:$0xf]
  %s2076 = scalar_lea.vmem [#allocation3], 51
  %v2077 = vld [vmem:[%s2076] ss:$2 sm:$0xf]
  %s2078 = scalar_lea.vmem [#allocation3], 67
  %v2079 = vld [vmem:[%s2078] ss:$2 sm:$0xf]
  %s2080 = scalar_lea.vmem [#allocation3], 83
  %v2081 = vld [vmem:[%s2080] ss:$2 sm:$0xf]
  %s2082 = scalar_lea.vmem [#allocation3], 99
  %v2083 = vld [vmem:[%s2082] ss:$2 sm:$0xf]
  %s2084 = scalar_lea.vmem [#allocation3], 115
  %v2085 = vld [vmem:[%s2084] ss:$2 sm:$0xf]
  %s2086 = scalar_lea.vmem [#allocation3], 131
  %v2087 = vld [vmem:[%s2086] ss:$2 sm:$0xf]
  %s2088 = scalar_lea.vmem [#allocation3], 147
  %v2089 = vld [vmem:[%s2088] ss:$2 sm:$0xf]
  %s2090 = scalar_lea.vmem [#allocation3], 163
  %v2091 = vld [vmem:[%s2090] ss:$2 sm:$0xf]
  %s2092 = scalar_lea.vmem [#allocation3], 179
  %v2093 = vld [vmem:[%s2092] ss:$2 sm:$0xf]
  %s2094 = scalar_lea.vmem [#allocation3], 195
  %v2095 = vld [vmem:[%s2094] ss:$2 sm:$0xf]
  %s2096 = scalar_lea.vmem [#allocation3], 211
  %v2097 = vld [vmem:[%s2096] ss:$2 sm:$0xf]
  %s2098 = scalar_lea.vmem [#allocation3], 227
  %v2099 = vld [vmem:[%s2098] ss:$2 sm:$0xf]
  %s2100 = scalar_lea.vmem [#allocation3], 243
  %v2101 = vld [vmem:[%s2100] ss:$2 sm:$0xf]
  %s2102 = scalar_lea.vmem [#allocation3], 259
  %v2103 = vld [vmem:[%s2102] ss:$2 sm:$0xf]
  %s2104 = scalar_lea.vmem [#allocation3], 275
  %v2105 = vld [vmem:[%s2104] ss:$2 sm:$0xf]
  %s2106 = scalar_lea.vmem [#allocation3], 291
  %v2107 = vld [vmem:[%s2106] ss:$2 sm:$0xf]
  %s2108 = scalar_lea.vmem [#allocation3], 307
  %v2109 = vld [vmem:[%s2108] ss:$2 sm:$0xf]
  %2118 = vrot.lane.b32.xlu0 %v1991, 8
  %v2119 = vpop.permute.xlu0 %2118
  %2120 = vrot.lane.b32.xlu0 %v1995, 8
  %v2121 = vpop.permute.xlu0 %2120
  %2122 = vrot.lane.b32.xlu0 %v1999, 8
  %v2123 = vpop.permute.xlu0 %2122
  %2124 = vrot.lane.b32.xlu0 %v2003, 8
  %v2125 = vpop.permute.xlu0 %2124
  %2126 = vrot.lane.b32.xlu0 %v2011, 8
  %v2127 = vpop.permute.xlu0 %2126
  %2128 = vrot.lane.b32.xlu0 %v2015, 8
  %v2129 = vpop.permute.xlu0 %2128
  %2130 = vrot.lane.b32.xlu0 %v2019, 8
  %v2131 = vpop.permute.xlu0 %2130
  %2132 = vrot.lane.b32.xlu0 %v2023, 8
  %v2133 = vpop.permute.xlu0 %2132
  %2150 = vrot.lane.b32.xlu0 %v2031, 16
  %v2151 = vpop.permute.xlu0 %2150
  %2152 = vrot.lane.b32.xlu0 %v2035, 16
  %v2153 = vpop.permute.xlu0 %2152
  %2154 = vrot.lane.b32.xlu0 %v2039, 16
  %v2155 = vpop.permute.xlu0 %2154
  %2156 = vrot.lane.b32.xlu0 %v2043, 16
  %v2157 = vpop.permute.xlu0 %2156
  %2158 = vrot.lane.b32.xlu0 %v2051, 16
  %v2159 = vpop.permute.xlu0 %2158
  %2160 = vrot.lane.b32.xlu0 %v2055, 16
  %v2161 = vpop.permute.xlu0 %2160
  %2162 = vrot.lane.b32.xlu0 %v2059, 16
  %v2163 = vpop.permute.xlu0 %2162
  %2164 = vrot.lane.b32.xlu0 %v2063, 16
  %v2165 = vpop.permute.xlu0 %2164
  %2182 = vrot.lane.b32.xlu0 %v2071, 24
  %v2183 = vpop.permute.xlu0 %2182
  %2184 = vrot.lane.b32.xlu0 %v2075, 24
  %v2185 = vpop.permute.xlu0 %2184
  %2186 = vrot.lane.b32.xlu0 %v2079, 24
  %v2187 = vpop.permute.xlu0 %2186
  %2188 = vrot.lane.b32.xlu0 %v2083, 24
  %v2189 = vpop.permute.xlu0 %2188
  %2190 = vrot.lane.b32.xlu0 %v2091, 24
  %v2191 = vpop.permute.xlu0 %2190
  %2192 = vrot.lane.b32.xlu0 %v2095, 24
  %v2193 = vpop.permute.xlu0 %2192
  %2194 = vrot.lane.b32.xlu0 %v2099, 24
  %v2195 = vpop.permute.xlu0 %2194
  %2196 = vrot.lane.b32.xlu0 %v2103, 24
  %v2197 = vpop.permute.xlu0 %2196
  %2214 = vrot.lane.b32.xlu0 %v1953, 32
  %v2215 = vpop.permute.xlu0 %2214
  %2216 = vrot.lane.b32.xlu0 %v1957, 32
  %v2217 = vpop.permute.xlu0 %2216
  %2218 = vrot.lane.b32.xlu0 %v1961, 32
  %v2219 = vpop.permute.xlu0 %2218
  %2220 = vrot.lane.b32.xlu0 %v1965, 32
  %v2221 = vpop.permute.xlu0 %2220
  %2222 = vrot.lane.b32.xlu0 %v1973, 32
  %v2223 = vpop.permute.xlu0 %2222
  %2224 = vrot.lane.b32.xlu0 %v1977, 32
  %v2225 = vpop.permute.xlu0 %2224
  %2226 = vrot.lane.b32.xlu0 %v1981, 32
  %v2227 = vpop.permute.xlu0 %2226
  %2228 = vrot.lane.b32.xlu0 %v1985, 32
  %v2229 = vpop.permute.xlu0 %2228
  %2246 = vrot.lane.b32.xlu0 %v1993, 40
  %v2247 = vpop.permute.xlu0 %2246
  %2248 = vrot.lane.b32.xlu0 %v1997, 40
  %v2249 = vpop.permute.xlu0 %2248
  %2250 = vrot.lane.b32.xlu0 %v2001, 40
  %v2251 = vpop.permute.xlu0 %2250
  %2252 = vrot.lane.b32.xlu0 %v2005, 40
  %v2253 = vpop.permute.xlu0 %2252
  %2254 = vrot.lane.b32.xlu0 %v2013, 40
  %v2255 = vpop.permute.xlu0 %2254
  %2256 = vrot.lane.b32.xlu0 %v2017, 40
  %v2257 = vpop.permute.xlu0 %2256
  %2258 = vrot.lane.b32.xlu0 %v2021, 40
  %v2259 = vpop.permute.xlu0 %2258
  %2260 = vrot.lane.b32.xlu0 %v2025, 40
  %v2261 = vpop.permute.xlu0 %2260
  %2278 = vrot.lane.b32.xlu0 %v2033, 48
  %v2279 = vpop.permute.xlu0 %2278
  %2280 = vrot.lane.b32.xlu0 %v2037, 48
  %v2281 = vpop.permute.xlu0 %2280
  %2282 = vrot.lane.b32.xlu0 %v2041, 48
  %v2283 = vpop.permute.xlu0 %2282
  %2284 = vrot.lane.b32.xlu0 %v2045, 48
  %v2285 = vpop.permute.xlu0 %2284
  %2286 = vrot.lane.b32.xlu0 %v2053, 48
  %v2287 = vpop.permute.xlu0 %2286
  %2288 = vrot.lane.b32.xlu0 %v2057, 48
  %v2289 = vpop.permute.xlu0 %2288
  %2290 = vrot.lane.b32.xlu0 %v2061, 48
  %v2291 = vpop.permute.xlu0 %2290
  %2292 = vrot.lane.b32.xlu0 %v2065, 48
  %v2293 = vpop.permute.xlu0 %2292
  %2310 = vrot.lane.b32.xlu0 %v2073, 56
  %v2311 = vpop.permute.xlu0 %2310
  %2312 = vrot.lane.b32.xlu0 %v2077, 56
  %v2313 = vpop.permute.xlu0 %2312
  %2314 = vrot.lane.b32.xlu0 %v2081, 56
  %v2315 = vpop.permute.xlu0 %2314
  %2316 = vrot.lane.b32.xlu0 %v2085, 56
  %v2317 = vpop.permute.xlu0 %2316
  %2318 = vrot.lane.b32.xlu0 %v2093, 56
  %v2319 = vpop.permute.xlu0 %2318
  %2320 = vrot.lane.b32.xlu0 %v2097, 56
  %v2321 = vpop.permute.xlu0 %2320
  %2322 = vrot.lane.b32.xlu0 %v2101, 56
  %v2323 = vpop.permute.xlu0 %2322
  %2324 = vrot.lane.b32.xlu0 %v2105, 56
  %v2325 = vpop.permute.xlu0 %2324
  %2342 = vrot.lane.b32.xlu0 %v1955, 64
  %v2343 = vpop.permute.xlu0 %2342
  %2344 = vrot.lane.b32.xlu0 %v1959, 64
  %v2345 = vpop.permute.xlu0 %2344
  %2346 = vrot.lane.b32.xlu0 %v1963, 64
  %v2347 = vpop.permute.xlu0 %2346
  %2348 = vrot.lane.b32.xlu0 %v1967, 64
  %v2349 = vpop.permute.xlu0 %2348
  %2350 = vrot.lane.b32.xlu0 %v1975, 64
  %v2351 = vpop.permute.xlu0 %2350
  %2352 = vrot.lane.b32.xlu0 %v1979, 64
  %v2353 = vpop.permute.xlu0 %2352
  %2354 = vrot.lane.b32.xlu0 %v1983, 64
  %v2355 = vpop.permute.xlu0 %2354
  %2356 = vrot.lane.b32.xlu0 %v1987, 64
  %v2357 = vpop.permute.xlu0 %2356
  %2368 = vrot.lane.b32.xlu0 %v1995, 72
  %v2369 = vpop.permute.xlu0 %2368
  %2370 = vrot.lane.b32.xlu0 %v1999, 72
  %v2371 = vpop.permute.xlu0 %2370
  %2372 = vrot.lane.b32.xlu0 %v2003, 72
  %v2373 = vpop.permute.xlu0 %2372
  %2374 = vrot.lane.b32.xlu0 %v2007, 72
  %v2375 = vpop.permute.xlu0 %2374
  %2376 = vrot.lane.b32.xlu0 %v2015, 72
  %v2377 = vpop.permute.xlu0 %2376
  %2378 = vrot.lane.b32.xlu0 %v2019, 72
  %v2379 = vpop.permute.xlu0 %2378
  %2380 = vrot.lane.b32.xlu0 %v2023, 72
  %v2381 = vpop.permute.xlu0 %2380
  %2382 = vrot.lane.b32.xlu0 %v2027, 72
  %v2383 = vpop.permute.xlu0 %2382
  %2394 = vrot.lane.b32.xlu0 %v2035, 80
  %v2395 = vpop.permute.xlu0 %2394
  %2396 = vrot.lane.b32.xlu0 %v2039, 80
  %v2397 = vpop.permute.xlu0 %2396
  %2398 = vrot.lane.b32.xlu0 %v2043, 80
  %v2399 = vpop.permute.xlu0 %2398
  %2400 = vrot.lane.b32.xlu0 %v2047, 80
  %v2401 = vpop.permute.xlu0 %2400
  %2402 = vrot.lane.b32.xlu0 %v2055, 80
  %v2403 = vpop.permute.xlu0 %2402
  %2404 = vrot.lane.b32.xlu0 %v2059, 80
  %v2405 = vpop.permute.xlu0 %2404
  %2406 = vrot.lane.b32.xlu0 %v2063, 80
  %v2407 = vpop.permute.xlu0 %2406
  %2408 = vrot.lane.b32.xlu0 %v2067, 80
  %v2409 = vpop.permute.xlu0 %2408
  %2420 = vrot.lane.b32.xlu0 %v2075, 88
  %v2421 = vpop.permute.xlu0 %2420
  %2422 = vrot.lane.b32.xlu0 %v2079, 88
  %v2423 = vpop.permute.xlu0 %2422
  %2424 = vrot.lane.b32.xlu0 %v2083, 88
  %v2425 = vpop.permute.xlu0 %2424
  %2426 = vrot.lane.b32.xlu0 %v2087, 88
  %v2427 = vpop.permute.xlu0 %2426
  %2428 = vrot.lane.b32.xlu0 %v2095, 88
  %v2429 = vpop.permute.xlu0 %2428
  %2430 = vrot.lane.b32.xlu0 %v2099, 88
  %v2431 = vpop.permute.xlu0 %2430
  %2432 = vrot.lane.b32.xlu0 %v2103, 88
  %v2433 = vpop.permute.xlu0 %2432
  %2434 = vrot.lane.b32.xlu0 %v2107, 88
  %v2435 = vpop.permute.xlu0 %2434
  %2446 = vrot.lane.b32.xlu0 %v1957, 96
  %v2447 = vpop.permute.xlu0 %2446
  %2448 = vrot.lane.b32.xlu0 %v1961, 96
  %v2449 = vpop.permute.xlu0 %2448
  %2450 = vrot.lane.b32.xlu0 %v1965, 96
  %v2451 = vpop.permute.xlu0 %2450
  %2452 = vrot.lane.b32.xlu0 %v1969, 96
  %v2453 = vpop.permute.xlu0 %2452
  %2454 = vrot.lane.b32.xlu0 %v1977, 96
  %v2455 = vpop.permute.xlu0 %2454
  %2456 = vrot.lane.b32.xlu0 %v1981, 96
  %v2457 = vpop.permute.xlu0 %2456
  %2458 = vrot.lane.b32.xlu0 %v1985, 96
  %v2459 = vpop.permute.xlu0 %2458
  %2460 = vrot.lane.b32.xlu0 %v1989, 96
  %v2461 = vpop.permute.xlu0 %2460
  %2472 = vrot.lane.b32.xlu0 %v1997, 104
  %v2473 = vpop.permute.xlu0 %2472
  %2474 = vrot.lane.b32.xlu0 %v2001, 104
  %v2475 = vpop.permute.xlu0 %2474
  %2476 = vrot.lane.b32.xlu0 %v2005, 104
  %v2477 = vpop.permute.xlu0 %2476
  %2478 = vrot.lane.b32.xlu0 %v2009, 104
  %v2479 = vpop.permute.xlu0 %2478
  %2480 = vrot.lane.b32.xlu0 %v2017, 104
  %v2481 = vpop.permute.xlu0 %2480
  %2482 = vrot.lane.b32.xlu0 %v2021, 104
  %v2483 = vpop.permute.xlu0 %2482
  %2484 = vrot.lane.b32.xlu0 %v2025, 104
  %v2485 = vpop.permute.xlu0 %2484
  %2486 = vrot.lane.b32.xlu0 %v2029, 104
  %v2487 = vpop.permute.xlu0 %2486
  %2498 = vrot.lane.b32.xlu0 %v2037, 112
  %v2499 = vpop.permute.xlu0 %2498
  %2500 = vrot.lane.b32.xlu0 %v2041, 112
  %v2501 = vpop.permute.xlu0 %2500
  %2502 = vrot.lane.b32.xlu0 %v2045, 112
  %v2503 = vpop.permute.xlu0 %2502
  %2504 = vrot.lane.b32.xlu0 %v2049, 112
  %v2505 = vpop.permute.xlu0 %2504
  %2506 = vrot.lane.b32.xlu0 %v2057, 112
  %v2507 = vpop.permute.xlu0 %2506
  %2508 = vrot.lane.b32.xlu0 %v2061, 112
  %v2509 = vpop.permute.xlu0 %2508
  %2510 = vrot.lane.b32.xlu0 %v2065, 112
  %v2511 = vpop.permute.xlu0 %2510
  %2512 = vrot.lane.b32.xlu0 %v2069, 112
  %v2513 = vpop.permute.xlu0 %2512
  %2524 = vrot.lane.b32.xlu0 %v2077, 120
  %v2525 = vpop.permute.xlu0 %2524
  %2526 = vrot.lane.b32.xlu0 %v2081, 120
  %v2527 = vpop.permute.xlu0 %2526
  %2528 = vrot.lane.b32.xlu0 %v2085, 120
  %v2529 = vpop.permute.xlu0 %2528
  %2530 = vrot.lane.b32.xlu0 %v2089, 120
  %v2531 = vpop.permute.xlu0 %2530
  %2532 = vrot.lane.b32.xlu0 %v2097, 120
  %v2533 = vpop.permute.xlu0 %2532
  %2534 = vrot.lane.b32.xlu0 %v2101, 120
  %v2535 = vpop.permute.xlu0 %2534
  %2536 = vrot.lane.b32.xlu0 %v2105, 120
  %v2537 = vpop.permute.xlu0 %2536
  %2538 = vrot.lane.b32.xlu0 %v2109, 120
  %v2539 = vpop.permute.xlu0 %2538
  %v2548 = vsel %vm1420, %v1951, %v2119
  %v2549 = vsel %vm1420, %v1955, %v2121
  %v2550 = vsel %vm1420, %v1959, %v2123
  %v2551 = vsel %vm1420, %v1963, %v2125
  %v2552 = vsel %vm1420, %v1971, %v2127
  %v2553 = vsel %vm1420, %v1975, %v2129
  %v2554 = vsel %vm1420, %v1979, %v2131
  %v2555 = vsel %vm1420, %v1983, %v2133
  %v2556 = vsel %vm1454, %v2548, %v2151
  %v2557 = vsel %vm1454, %v2549, %v2153
  %v2558 = vsel %vm1454, %v2550, %v2155
  %v2559 = vsel %vm1454, %v2551, %v2157
  %v2560 = vsel %vm1454, %v2552, %v2159
  %v2561 = vsel %vm1454, %v2553, %v2161
  %v2562 = vsel %vm1454, %v2554, %v2163
  %v2563 = vsel %vm1454, %v2555, %v2165
  %v2564 = vsel %vm1488, %v2556, %v2183
  %v2565 = vsel %vm1488, %v2557, %v2185
  %v2566 = vsel %vm1488, %v2558, %v2187
  %v2567 = vsel %vm1488, %v2559, %v2189
  %v2568 = vsel %vm1488, %v2560, %v2191
  %v2569 = vsel %vm1488, %v2561, %v2193
  %v2570 = vsel %vm1488, %v2562, %v2195
  %v2571 = vsel %vm1488, %v2563, %v2197
  %v2572 = vsel %vm1522, %v2564, %v2215
  %v2573 = vsel %vm1522, %v2565, %v2217
  %v2574 = vsel %vm1522, %v2566, %v2219
  %v2575 = vsel %vm1522, %v2567, %v2221
  %v2576 = vsel %vm1522, %v2568, %v2223
  %v2577 = vsel %vm1522, %v2569, %v2225
  %v2578 = vsel %vm1522, %v2570, %v2227
  %v2579 = vsel %vm1522, %v2571, %v2229
  %v2580 = vsel %vm1556, %v2572, %v2247
  %v2581 = vsel %vm1556, %v2573, %v2249
  %v2582 = vsel %vm1556, %v2574, %v2251
  %v2583 = vsel %vm1556, %v2575, %v2253
  %v2584 = vsel %vm1556, %v2576, %v2255
  %v2585 = vsel %vm1556, %v2577, %v2257
  %v2586 = vsel %vm1556, %v2578, %v2259
  %v2587 = vsel %vm1556, %v2579, %v2261
  %v2588 = vsel %vm1590, %v2580, %v2279
  %v2589 = vsel %vm1590, %v2581, %v2281
  %v2590 = vsel %vm1590, %v2582, %v2283
  %v2591 = vsel %vm1590, %v2583, %v2285
  %v2592 = vsel %vm1590, %v2584, %v2287
  %v2593 = vsel %vm1590, %v2585, %v2289
  %v2594 = vsel %vm1590, %v2586, %v2291
  %v2595 = vsel %vm1590, %v2587, %v2293
  %v2596 = vsel %vm1624, %v2588, %v2311
  %v2597 = vsel %vm1624, %v2589, %v2313
  %v2598 = vsel %vm1624, %v2590, %v2315
  %v2599 = vsel %vm1624, %v2591, %v2317
  %v2600 = vsel %vm1624, %v2592, %v2319
  %v2601 = vsel %vm1624, %v2593, %v2321
  %v2602 = vsel %vm1624, %v2594, %v2323
  %v2603 = vsel %vm1624, %v2595, %v2325
  %v2604 = vsel %vm1673, %v2596, %v2343
  %v2605 = vsel %vm1673, %v2597, %v2345
  %v2606 = vsel %vm1673, %v2598, %v2347
  %v2607 = vsel %vm1673, %v2599, %v2349
  %v2608 = vsel %vm1673, %v2600, %v2351
  %v2609 = vsel %vm1673, %v2601, %v2353
  %v2610 = vsel %vm1673, %v2602, %v2355
  %v2611 = vsel %vm1673, %v2603, %v2357
  %vm2612 = vcmask 588800
  %v2613 = vsel %vm2612, %v2604, %v2369
  %v2614 = vsel %vm2612, %v2605, %v2371
  %v2615 = vsel %vm2612, %v2606, %v2373
  %v2616 = vsel %vm2612, %v2607, %v2375
  %v2617 = vsel %vm2612, %v2608, %v2377
  %v2618 = vsel %vm2612, %v2609, %v2379
  %v2619 = vsel %vm2612, %v2610, %v2381
  %v2620 = vsel %vm2612, %v2611, %v2383
  %vm2621 = vcmask 654336
  %v2622 = vsel %vm2621, %v2613, %v2395
  %v2623 = vsel %vm2621, %v2614, %v2397
  %v2624 = vsel %vm2621, %v2615, %v2399
  %v2625 = vsel %vm2621, %v2616, %v2401
  %v2626 = vsel %vm2621, %v2617, %v2403
  %v2627 = vsel %vm2621, %v2618, %v2405
  %v2628 = vsel %vm2621, %v2619, %v2407
  %v2629 = vsel %vm2621, %v2620, %v2409
  %vm2630 = vcmask 719872
  %v2631 = vsel %vm2630, %v2622, %v2421
  %v2632 = vsel %vm2630, %v2623, %v2423
  %v2633 = vsel %vm2630, %v2624, %v2425
  %v2634 = vsel %vm2630, %v2625, %v2427
  %v2635 = vsel %vm2630, %v2626, %v2429
  %v2636 = vsel %vm2630, %v2627, %v2431
  %v2637 = vsel %vm2630, %v2628, %v2433
  %v2638 = vsel %vm2630, %v2629, %v2435
  %vm2639 = vcmask 785408
  %v2640 = vsel %vm2639, %v2631, %v2447
  %v2641 = vsel %vm2639, %v2632, %v2449
  %v2642 = vsel %vm2639, %v2633, %v2451
  %v2643 = vsel %vm2639, %v2634, %v2453
  %v2644 = vsel %vm2639, %v2635, %v2455
  %v2645 = vsel %vm2639, %v2636, %v2457
  %v2646 = vsel %vm2639, %v2637, %v2459
  %v2647 = vsel %vm2639, %v2638, %v2461
  %vm2648 = vcmask 850944
  %v2649 = vsel %vm2648, %v2640, %v2473
  %v2650 = vsel %vm2648, %v2641, %v2475
  %v2651 = vsel %vm2648, %v2642, %v2477
  %v2652 = vsel %vm2648, %v2643, %v2479
  %v2653 = vsel %vm2648, %v2644, %v2481
  %v2654 = vsel %vm2648, %v2645, %v2483
  %v2655 = vsel %vm2648, %v2646, %v2485
  %v2656 = vsel %vm2648, %v2647, %v2487
  %vm2657 = vcmask 916480
  %v2658 = vsel %vm2657, %v2649, %v2499
  %v2659 = vsel %vm2657, %v2650, %v2501
  %v2660 = vsel %vm2657, %v2651, %v2503
  %v2661 = vsel %vm2657, %v2652, %v2505
  %v2662 = vsel %vm2657, %v2653, %v2507
  %v2663 = vsel %vm2657, %v2654, %v2509
  %v2664 = vsel %vm2657, %v2655, %v2511
  %v2665 = vsel %vm2657, %v2656, %v2513
  %vm2666 = vcmask 982016
  %v2667 = vsel %vm2666, %v2658, %v2525
  %v2668 = vsel %vm2666, %v2659, %v2527
  %v2669 = vsel %vm2666, %v2660, %v2529
  %v2670 = vsel %vm2666, %v2661, %v2531
  %v2671 = vsel %vm2666, %v2662, %v2533
  %v2672 = vsel %vm2666, %v2663, %v2535
  %v2673 = vsel %vm2666, %v2664, %v2537
  %v2674 = vsel %vm2666, %v2665, %v2539
  %v2675 = vld [vmem:[%s3] sm:$0xff]
  %v2676 = vld [vmem:[%s3 + $0x8] sm:$0xff]
  %v2677 = vld [vmem:[%s3 + $0x10] sm:$0xff]
  %v2678 = vld [vmem:[%s3 + $0x18] sm:$0xff]
  %v2679 = vld [vmem:[%s3 + $0x20] sm:$0xff]
  %v2680 = vld [vmem:[%s3 + $0x28] sm:$0xff]
  %v2681 = vld [vmem:[%s3 + $0x30] sm:$0xff]
  %v2682 = vld [vmem:[%s3 + $0x38] sm:$0xff]
  %v2683 = vld [vmem:[%s3 + $0x40] sm:$0xff]
  %v2684 = vld [vmem:[%s3 + $0x48] sm:$0xff]
  %v2685 = vld [vmem:[%s3 + $0x50] sm:$0xff]
  %v2686 = vld [vmem:[%s3 + $0x58] sm:$0xff]
  %v2687 = vld [vmem:[%s3 + $0x60] sm:$0xff]
  %v2688 = vld [vmem:[%s3 + $0x68] sm:$0xff]
  %v2689 = vld [vmem:[%s3 + $0x70] sm:$0xff]
  %v2690 = vld [vmem:[%s3 + $0x78] sm:$0xff]
  %v2691 = vld [vmem:[%s4] sm:$0x1]
  %v2693 = vlaneseq
  %v2694 = vshrl.u32 %v2693, 7
  %v2695 = vsub.s32 0, %v2694
  %v2696 = vrot.slane %v2691, %v2695
  %v2706 = vcombine.low %v2667, %v2668
  %v2707 = vcombine.low %v2669, %v2670
  %v2708 = vcombine.low %v2671, %v2672
  %v2709 = vcombine.low %v2673, %v2674
  %2714 = vmatprep.subr.mxu0 0.0
  %2715 = vmatpush1.msra.mxu0 %v2690
  %2716 = vmatprep.subr.mxu0 0.0
  %2717 = vmatpush1.msra.mxu0 %v2689
  %2718 = vmatprep.subr.mxu0 0.0
  %2719 = vmatpush1.msra.mxu0 %v2688
  %2720 = vmatprep.subr.mxu0 0.0
  %2721 = vmatpush1.msra.mxu0 %v2687
  %2722 = vmatprep.subr.mxu0 0.0
  %2723 = vmatpush1.msra.mxu0 %v2686
  %2724 = vmatprep.subr.mxu0 0.0
  %2725 = vmatpush1.msra.mxu0 %v2685
  %2726 = vmatprep.subr.mxu0 0.0
  %2727 = vmatpush1.msra.mxu0 %v2684
  %2728 = vmatprep.subr.mxu0 0.0
  %2729 = vmatpush1.msra.mxu0 %v2683
  %2730 = vmatprep.subr.mxu0 0.0
  %2731 = vmatpush1.msra.mxu0 %v2682
  %2732 = vmatprep.subr.mxu0 0.0
  %2733 = vmatpush1.msra.mxu0 %v2681
  %2734 = vmatprep.subr.mxu0 0.0
  %2735 = vmatpush1.msra.mxu0 %v2680
  %2736 = vmatprep.subr.mxu0 0.0
  %2737 = vmatpush1.msra.mxu0 %v2679
  %2738 = vmatprep.subr.mxu0 0.0
  %2739 = vmatpush1.msra.mxu0 %v2678
  %2740 = vmatprep.subr.mxu0 0.0
  %2741 = vmatpush1.msra.mxu0 %v2677
  %2742 = vmatprep.subr.mxu0 0.0
  %2743 = vmatpush1.msra.mxu0 %v2676
  %2744 = vmatprep.subr.mxu0 0.0
  %2745 = vmatpush1.msra.mxu0 %v2675
  %2746 = vmatprep.subr.mxu0 0.0
  %2747 = vmatpush2.msra.mxu0 0.0
  %2748 = vmatprep.subr.mxu0 0.0
  %2749 = vmatpush2.msra.mxu0 0.0
  %2750 = vmatprep.subr.mxu0 0.0
  %2751 = vmatpush2.msra.mxu0 0.0
  %2752 = vmatprep.subr.mxu0 0.0
  %2753 = vmatpush2.msra.mxu0 0.0
  %2754 = vmatprep.subr.mxu0 0.0
  %2755 = vmatpush2.msra.mxu0 0.0
  %2756 = vmatprep.subr.mxu0 0.0
  %2757 = vmatpush2.msra.mxu0 0.0
  %2758 = vmatprep.subr.mxu0 0.0
  %2759 = vmatpush2.msra.mxu0 0.0
  %2760 = vmatprep.subr.mxu0 0.0
  %2761 = vmatpush2.msra.mxu0 0.0
  %2762 = vmatprep.subr.mxu0 0.0
  %2763 = vmatpush2.msra.mxu0 0.0
  %2764 = vmatprep.subr.mxu0 0.0
  %2765 = vmatpush2.msra.mxu0 0.0
  %2766 = vmatprep.subr.mxu0 0.0
  %2767 = vmatpush2.msra.mxu0 0.0
  %2768 = vmatprep.subr.mxu0 0.0
  %2769 = vmatpush2.msra.mxu0 0.0
  %2770 = vmatprep.subr.mxu0 0.0
  %2771 = vmatpush2.msra.mxu0 0.0
  %2772 = vmatprep.subr.mxu0 0.0
  %2773 = vmatpush2.msra.mxu0 0.0
  %2774 = vmatprep.subr.mxu0 0.0
  %2775 = vmatpush2.msra.mxu0 0.0
  %2776 = vmatprep.subr.mxu0 0.0
  %2777 = vmatpush2.msra.mxu0 0.0
  %2778 = vmatprep.mubr.f32.mxu0 0.0
  %2779 = vmatmul.mubr.f32.gmra.mxu0 %v2706
  %v2780 = vpop.f32.mrf.mxu0
  %v2781 = vadd.f32 %v2696, %v2780
  %v2782 = vpop.f32.mrf.mxu0
  %2783 = vmatprep.mubr.f32.mxu0 0.0
  %2784 = vmatmul.mubr.f32.gmra.mxu0 %v2707
  %v2785 = vpop.f32.mrf.mxu0
  %v2786 = vadd.f32 %v2696, %v2785
  %v2787 = vpop.f32.mrf.mxu0
  %2788 = vmatprep.mubr.f32.mxu0 0.0
  %2789 = vmatmul.mubr.f32.gmra.mxu0 %v2708
  %v2790 = vpop.f32.mrf.mxu0
  %v2791 = vadd.f32 %v2696, %v2790
  %v2792 = vpop.f32.mrf.mxu0
  %2793 = vmatprep.mubr.f32.mxu0 0.0
  %2794 = vmatmul.mubr.f32.gmra.mxu0 %v2709
  %v2795 = vpop.f32.mrf.mxu0
  %v2796 = vadd.f32 %v2696, %v2795
  %v2797 = vpop.f32.mrf.mxu0
  %2798 = vdwg.mxu0
  %v2799 = vmax.f32 %v2781, 0.0
  %v2800 = vmax.f32 %v2786, 0.0
  %v2801 = vmax.f32 %v2791, 0.0
  %v2802 = vmax.f32 %v2796, 0.0
  %v2803 = vld [vmem:[%s5] sm:$0xff]
  %v2804 = vld [vmem:[%s5 + $0x8] sm:$0xff]
  %v2805 = vld [vmem:[%s6] sm:$0x1]
  %v2807 = vlaneseq
  %v2808 = vshrl.u32 %v2807, 7
  %v2809 = vsub.s32 0, %v2808
  %v2810 = vrot.slane %v2805, %v2809
  %v2813 = vsel %vm1454, %v2799, 0
  %v2816 = vsel %vm1454, %v2800, 0
  %v2819 = vsel %vm1454, %v2801, 0
  %v2822 = vsel %vm1454, %v2802, 0
  %2824 = vmatprep.subr.mxu0 0.0
  %2825 = vmatpush1.msra.mxu0 0.0
  %2826 = vmatprep.subr.mxu0 0.0
  %2827 = vmatpush1.msra.mxu0 0.0
  %2828 = vmatprep.subr.mxu0 0.0
  %2829 = vmatpush1.msra.mxu0 0.0
  %2830 = vmatprep.subr.mxu0 0.0
  %2831 = vmatpush1.msra.mxu0 0.0
  %2832 = vmatprep.subr.mxu0 0.0
  %2833 = vmatpush1.msra.mxu0 0.0
  %2834 = vmatprep.subr.mxu0 0.0
  %2835 = vmatpush1.msra.mxu0 0.0
  %2836 = vmatprep.subr.mxu0 0.0
  %2837 = vmatpush1.msra.mxu0 0.0
  %2838 = vmatprep.subr.mxu0 0.0
  %2839 = vmatpush1.msra.mxu0 0.0
  %2840 = vmatprep.subr.mxu0 0.0
  %2841 = vmatpush1.msra.mxu0 0.0
  %2842 = vmatprep.subr.mxu0 0.0
  %2843 = vmatpush1.msra.mxu0 0.0
  %2844 = vmatprep.subr.mxu0 0.0
  %2845 = vmatpush1.msra.mxu0 0.0
  %2846 = vmatprep.subr.mxu0 0.0
  %2847 = vmatpush1.msra.mxu0 0.0
  %2848 = vmatprep.subr.mxu0 0.0
  %2849 = vmatpush1.msra.mxu0 0.0
  %2850 = vmatprep.subr.mxu0 0.0
  %2851 = vmatpush1.msra.mxu0 0.0
  %2852 = vmatprep.subr.mxu0 0.0
  %2853 = vmatpush1.msra.mxu0 %v2804
  %2854 = vmatprep.subr.mxu0 0.0
  %2855 = vmatpush1.msra.mxu0 %v2803
  %2856 = vmatprep.subr.mxu0 0.0
  %2857 = vmatpush2.msra.mxu0 0.0
  %2858 = vmatprep.subr.mxu0 0.0
  %2859 = vmatpush2.msra.mxu0 0.0
  %2860 = vmatprep.subr.mxu0 0.0
  %2861 = vmatpush2.msra.mxu0 0.0
  %2862 = vmatprep.subr.mxu0 0.0
  %2863 = vmatpush2.msra.mxu0 0.0
  %2864 = vmatprep.subr.mxu0 0.0
  %2865 = vmatpush2.msra.mxu0 0.0
  %2866 = vmatprep.subr.mxu0 0.0
  %2867 = vmatpush2.msra.mxu0 0.0
  %2868 = vmatprep.subr.mxu0 0.0
  %2869 = vmatpush2.msra.mxu0 0.0
  %2870 = vmatprep.subr.mxu0 0.0
  %2871 = vmatpush2.msra.mxu0 0.0
  %2872 = vmatprep.subr.mxu0 0.0
  %2873 = vmatpush2.msra.mxu0 0.0
  %2874 = vmatprep.subr.mxu0 0.0
  %2875 = vmatpush2.msra.mxu0 0.0
  %2876 = vmatprep.subr.mxu0 0.0
  %2877 = vmatpush2.msra.mxu0 0.0
  %2878 = vmatprep.subr.mxu0 0.0
  %2879 = vmatpush2.msra.mxu0 0.0
  %2880 = vmatprep.subr.mxu0 0.0
  %2881 = vmatpush2.msra.mxu0 0.0
  %2882 = vmatprep.subr.mxu0 0.0
  %2883 = vmatpush2.msra.mxu0 0.0
  %2884 = vmatprep.subr.mxu0 0.0
  %2885 = vmatpush2.msra.mxu0 0.0
  %2886 = vmatprep.subr.mxu0 0.0
  %2887 = vmatpush2.msra.mxu0 0.0
  %2888 = vmatprep.mubr.f32.mxu0 0.0
  %2889 = vmatmul.mubr.f32.gmra.mxu0 %v2813
  %v2890 = vpop.f32.mrf.mxu0
  %v2891 = vadd.f32 %v2810, %v2890
  %v2892 = vpop.f32.mrf.mxu0
  %2893 = vmatprep.mubr.f32.mxu0 0.0
  %2894 = vmatmul.mubr.f32.gmra.mxu0 %v2816
  %v2895 = vpop.f32.mrf.mxu0
  %v2896 = vadd.f32 %v2810, %v2895
  %v2897 = vpop.f32.mrf.mxu0
  %2898 = vmatprep.mubr.f32.mxu0 0.0
  %2899 = vmatmul.mubr.f32.gmra.mxu0 %v2819
  %v2900 = vpop.f32.mrf.mxu0
  %v2901 = vadd.f32 %v2810, %v2900
  %v2902 = vpop.f32.mrf.mxu0
  %2903 = vmatprep.mubr.f32.mxu0 0.0
  %2904 = vmatmul.mubr.f32.gmra.mxu0 %v2822
  %v2905 = vpop.f32.mrf.mxu0
  %v2906 = vadd.f32 %v2810, %v2905
  %v2907 = vpop.f32.mrf.mxu0
  %2908 = vdwg.mxu0
  %v2913 = vcombine.high %v2891, %v2891
  %v2914 = vcombine.high %v2896, %v2896
  %v2915 = vcombine.high %v2901, %v2901
  %v2916 = vcombine.high %v2906, %v2906
  %vm2921 = vcmask 128000
  %2922 = vst.msk [vmem:[#allocation4] sm:$0x3f] %vm2921, 0.0
  %2923 = vst.msk [vmem:[#allocation4 + $0x30] sm:$0x3f] %vm2921, 0.0
  %s2924 = scalar_lea.vmem [#allocation4], 40
  %2925 = vst.msk [vmem:[%s2924] sm:$0x3f] %vm2921, 0.0
  %2926 = vst.msk [vmem:[%s2924 + $0x30] sm:$0x3f] %vm2921, 0.0
  %vm2927 = vcmask 122880
  %2928 = vst.msk [vmem:[#allocation4] sm:$0x1] %vm2927, 0.0
  %2929 = vst.msk [vmem:[#allocation4 + $0x8] sm:$0x1] %vm2927, 0.0
  %2930 = vst.msk [vmem:[#allocation4 + $0x10] sm:$0x1] %vm2927, 0.0
  %2931 = vst.msk [vmem:[#allocation4 + $0x18] sm:$0x1] %vm2927, 0.0
  %2932 = vst.msk [vmem:[#allocation4 + $0x20] sm:$0x1] %vm2927, 0.0
  %2933 = vst.msk [vmem:[#allocation4 + $0x28] sm:$0x1] %vm2927, 0.0
  %2934 = vst.msk [vmem:[#allocation4 + $0x30] sm:$0x1] %vm2927, 0.0
  %2935 = vst.msk [vmem:[#allocation4 + $0x38] sm:$0x1] %vm2927, 0.0
  %2936 = vst.msk [vmem:[#allocation4 + $0x40] sm:$0x1] %vm2927, 0.0
  %2937 = vst.msk [vmem:[#allocation4 + $0x48] sm:$0x1] %vm2927, 0.0
  %2938 = vst.msk [vmem:[#allocation4 + $0x50] sm:$0x1] %vm2927, 0.0
  %2939 = vst.msk [vmem:[#allocation4 + $0x58] sm:$0x1] %vm2927, 0.0
  %2940 = vst.msk [vmem:[#allocation4 + $0x5] sm:$0x1] %vm2927, 0.0
  %2941 = vst.msk [vmem:[#allocation4 + $0xd] sm:$0x1] %vm2927, 0.0
  %2942 = vst.msk [vmem:[#allocation4 + $0x15] sm:$0x1] %vm2927, 0.0
  %2943 = vst.msk [vmem:[#allocation4 + $0x1d] sm:$0x1] %vm2927, 0.0
  %2944 = vst.msk [vmem:[#allocation4 + $0x25] sm:$0x1] %vm2927, 0.0
  %2945 = vst.msk [vmem:[#allocation4 + $0x2d] sm:$0x1] %vm2927, 0.0
  %2946 = vst.msk [vmem:[#allocation4 + $0x35] sm:$0x1] %vm2927, 0.0
  %2947 = vst.msk [vmem:[#allocation4 + $0x3d] sm:$0x1] %vm2927, 0.0
  %2948 = vst.msk [vmem:[#allocation4 + $0x45] sm:$0x1] %vm2927, 0.0
  %2949 = vst.msk [vmem:[#allocation4 + $0x4d] sm:$0x1] %vm2927, 0.0
  %2950 = vst.msk [vmem:[#allocation4 + $0x55] sm:$0x1] %vm2927, 0.0
  %2951 = vst.msk [vmem:[#allocation4 + $0x5d] sm:$0x1] %vm2927, 0.0
  %s2952 = scalar_lea.vmem [#allocation4], 8
  %vm2953 = vcmask 125952
  %2954 = vst.msk [vmem:[%s2952 + $0x1] sm:$0xf] %vm2953, %v2891
  %2955 = vst.msk [vmem:[%s2952 + $0x9] sm:$0xf] %vm2953, %v2913
  %2956 = vst.msk [vmem:[%s2952 + $0x11] sm:$0xf] %vm2953, %v2896
  %2957 = vst.msk [vmem:[%s2952 + $0x19] sm:$0xf] %vm2953, %v2914
  %2958 = vst.msk [vmem:[%s2952 + $0x31] sm:$0xf] %vm2953, %v2901
  %2959 = vst.msk [vmem:[%s2952 + $0x39] sm:$0xf] %vm2953, %v2915
  %2960 = vst.msk [vmem:[%s2952 + $0x41] sm:$0xf] %vm2953, %v2906
  %2961 = vst.msk [vmem:[%s2952 + $0x49] sm:$0xf] %vm2953, %v2916
  %v2962 = vld [vmem:[#allocation4] sm:$0xf]
  %v2963 = vld [vmem:[#allocation4 + $0x8] sm:$0xf]
  %v2964 = vld [vmem:[#allocation4 + $0x10] sm:$0xf]
  %v2965 = vld [vmem:[#allocation4 + $0x18] sm:$0xf]
  %v2966 = vld [vmem:[#allocation4 + $0x30] sm:$0xf]
  %v2967 = vld [vmem:[#allocation4 + $0x38] sm:$0xf]
  %v2968 = vld [vmem:[#allocation4 + $0x40] sm:$0xf]
  %v2969 = vld [vmem:[#allocation4 + $0x48] sm:$0xf]
  %v2970 = vld [vmem:[#allocation4 + $0x1] sm:$0xf]
  %v2971 = vld [vmem:[#allocation4 + $0x9] sm:$0xf]
  %v2972 = vld [vmem:[#allocation4 + $0x11] sm:$0xf]
  %v2973 = vld [vmem:[#allocation4 + $0x19] sm:$0xf]
  %v2974 = vld [vmem:[#allocation4 + $0x31] sm:$0xf]
  %v2975 = vld [vmem:[#allocation4 + $0x39] sm:$0xf]
  %v2976 = vld [vmem:[#allocation4 + $0x41] sm:$0xf]
  %v2977 = vld [vmem:[#allocation4 + $0x49] sm:$0xf]
  %v2978 = vld [vmem:[#allocation4 + $0x2] sm:$0xf]
  %v2979 = vld [vmem:[#allocation4 + $0xa] sm:$0xf]
  %v2980 = vld [vmem:[#allocation4 + $0x12] sm:$0xf]
  %v2981 = vld [vmem:[#allocation4 + $0x1a] sm:$0xf]
  %v2982 = vld [vmem:[#allocation4 + $0x32] sm:$0xf]
  %v2983 = vld [vmem:[#allocation4 + $0x3a] sm:$0xf]
  %v2984 = vld [vmem:[#allocation4 + $0x42] sm:$0xf]
  %v2985 = vld [vmem:[#allocation4 + $0x4a] sm:$0xf]
  %v2986 = vld [vmem:[%s2952] sm:$0xf]
  %v2987 = vld [vmem:[%s2952 + $0x8] sm:$0xf]
  %v2988 = vld [vmem:[%s2952 + $0x10] sm:$0xf]
  %v2989 = vld [vmem:[%s2952 + $0x18] sm:$0xf]
  %v2990 = vld [vmem:[%s2952 + $0x30] sm:$0xf]
  %v2991 = vld [vmem:[%s2952 + $0x38] sm:$0xf]
  %v2992 = vld [vmem:[%s2952 + $0x40] sm:$0xf]
  %v2993 = vld [vmem:[%s2952 + $0x48] sm:$0xf]
  %v2994 = vld [vmem:[%s2952 + $0x1] sm:$0xf]
  %v2995 = vld [vmem:[%s2952 + $0x9] sm:$0xf]
  %v2996 = vld [vmem:[%s2952 + $0x11] sm:$0xf]
  %v2997 = vld [vmem:[%s2952 + $0x19] sm:$0xf]
  %v2998 = vld [vmem:[%s2952 + $0x31] sm:$0xf]
  %v2999 = vld [vmem:[%s2952 + $0x39] sm:$0xf]
  %v3000 = vld [vmem:[%s2952 + $0x41] sm:$0xf]
  %v3001 = vld [vmem:[%s2952 + $0x49] sm:$0xf]
  %v3002 = vld [vmem:[%s2952 + $0x2] sm:$0xf]
  %v3003 = vld [vmem:[%s2952 + $0xa] sm:$0xf]
  %v3004 = vld [vmem:[%s2952 + $0x12] sm:$0xf]
  %v3005 = vld [vmem:[%s2952 + $0x1a] sm:$0xf]
  %v3006 = vld [vmem:[%s2952 + $0x32] sm:$0xf]
  %v3007 = vld [vmem:[%s2952 + $0x3a] sm:$0xf]
  %v3008 = vld [vmem:[%s2952 + $0x42] sm:$0xf]
  %v3009 = vld [vmem:[%s2952 + $0x4a] sm:$0xf]
  %s3010 = scalar_lea.vmem [#allocation4], 16
  %v3011 = vld [vmem:[%s3010] sm:$0xf]
  %v3012 = vld [vmem:[%s3010 + $0x8] sm:$0xf]
  %v3013 = vld [vmem:[%s3010 + $0x10] sm:$0xf]
  %v3014 = vld [vmem:[%s3010 + $0x18] sm:$0xf]
  %v3015 = vld [vmem:[%s3010 + $0x30] sm:$0xf]
  %v3016 = vld [vmem:[%s3010 + $0x38] sm:$0xf]
  %v3017 = vld [vmem:[%s3010 + $0x40] sm:$0xf]
  %v3018 = vld [vmem:[%s3010 + $0x48] sm:$0xf]
  %v3019 = vld [vmem:[%s3010 + $0x1] sm:$0xf]
  %v3020 = vld [vmem:[%s3010 + $0x9] sm:$0xf]
  %v3021 = vld [vmem:[%s3010 + $0x11] sm:$0xf]
  %v3022 = vld [vmem:[%s3010 + $0x19] sm:$0xf]
  %v3023 = vld [vmem:[%s3010 + $0x31] sm:$0xf]
  %v3024 = vld [vmem:[%s3010 + $0x39] sm:$0xf]
  %v3025 = vld [vmem:[%s3010 + $0x41] sm:$0xf]
  %v3026 = vld [vmem:[%s3010 + $0x49] sm:$0xf]
  %v3027 = vld [vmem:[%s3010 + $0x2] sm:$0xf]
  %v3028 = vld [vmem:[%s3010 + $0xa] sm:$0xf]
  %v3029 = vld [vmem:[%s3010 + $0x12] sm:$0xf]
  %v3030 = vld [vmem:[%s3010 + $0x1a] sm:$0xf]
  %v3031 = vld [vmem:[%s3010 + $0x32] sm:$0xf]
  %v3032 = vld [vmem:[%s3010 + $0x3a] sm:$0xf]
  %v3033 = vld [vmem:[%s3010 + $0x42] sm:$0xf]
  %v3034 = vld [vmem:[%s3010 + $0x4a] sm:$0xf]
  %3043 = vrot.lane.b32.xlu0 %v2970, 16
  %v3044 = vpop.permute.xlu0 %3043
  %3045 = vrot.lane.b32.xlu0 %v2971, 16
  %v3046 = vpop.permute.xlu0 %3045
  %3047 = vrot.lane.b32.xlu0 %v2972, 16
  %v3048 = vpop.permute.xlu0 %3047
  %3049 = vrot.lane.b32.xlu0 %v2973, 16
  %v3050 = vpop.permute.xlu0 %3049
  %3051 = vrot.lane.b32.xlu0 %v2974, 16
  %v3052 = vpop.permute.xlu0 %3051
  %3053 = vrot.lane.b32.xlu0 %v2975, 16
  %v3054 = vpop.permute.xlu0 %3053
  %3055 = vrot.lane.b32.xlu0 %v2976, 16
  %v3056 = vpop.permute.xlu0 %3055
  %3057 = vrot.lane.b32.xlu0 %v2977, 16
  %v3058 = vpop.permute.xlu0 %3057
  %3075 = vrot.lane.b32.xlu0 %v2978, 32
  %v3076 = vpop.permute.xlu0 %3075
  %3077 = vrot.lane.b32.xlu0 %v2979, 32
  %v3078 = vpop.permute.xlu0 %3077
  %3079 = vrot.lane.b32.xlu0 %v2980, 32
  %v3080 = vpop.permute.xlu0 %3079
  %3081 = vrot.lane.b32.xlu0 %v2981, 32
  %v3082 = vpop.permute.xlu0 %3081
  %3083 = vrot.lane.b32.xlu0 %v2982, 32
  %v3084 = vpop.permute.xlu0 %3083
  %3085 = vrot.lane.b32.xlu0 %v2983, 32
  %v3086 = vpop.permute.xlu0 %3085
  %3087 = vrot.lane.b32.xlu0 %v2984, 32
  %v3088 = vpop.permute.xlu0 %3087
  %3089 = vrot.lane.b32.xlu0 %v2985, 32
  %v3090 = vpop.permute.xlu0 %3089
  %3107 = vrot.lane.b32.xlu0 %v2986, 48
  %v3108 = vpop.permute.xlu0 %3107
  %3109 = vrot.lane.b32.xlu0 %v2987, 48
  %v3110 = vpop.permute.xlu0 %3109
  %3111 = vrot.lane.b32.xlu0 %v2988, 48
  %v3112 = vpop.permute.xlu0 %3111
  %3113 = vrot.lane.b32.xlu0 %v2989, 48
  %v3114 = vpop.permute.xlu0 %3113
  %3115 = vrot.lane.b32.xlu0 %v2990, 48
  %v3116 = vpop.permute.xlu0 %3115
  %3117 = vrot.lane.b32.xlu0 %v2991, 48
  %v3118 = vpop.permute.xlu0 %3117
  %3119 = vrot.lane.b32.xlu0 %v2992, 48
  %v3120 = vpop.permute.xlu0 %3119
  %3121 = vrot.lane.b32.xlu0 %v2993, 48
  %v3122 = vpop.permute.xlu0 %3121
  %3139 = vrot.lane.b32.xlu0 %v2994, 64
  %v3140 = vpop.permute.xlu0 %3139
  %3141 = vrot.lane.b32.xlu0 %v2995, 64
  %v3142 = vpop.permute.xlu0 %3141
  %3143 = vrot.lane.b32.xlu0 %v2996, 64
  %v3144 = vpop.permute.xlu0 %3143
  %3145 = vrot.lane.b32.xlu0 %v2997, 64
  %v3146 = vpop.permute.xlu0 %3145
  %3147 = vrot.lane.b32.xlu0 %v2998, 64
  %v3148 = vpop.permute.xlu0 %3147
  %3149 = vrot.lane.b32.xlu0 %v2999, 64
  %v3150 = vpop.permute.xlu0 %3149
  %3151 = vrot.lane.b32.xlu0 %v3000, 64
  %v3152 = vpop.permute.xlu0 %3151
  %3153 = vrot.lane.b32.xlu0 %v3001, 64
  %v3154 = vpop.permute.xlu0 %3153
  %3171 = vrot.lane.b32.xlu0 %v3002, 80
  %v3172 = vpop.permute.xlu0 %3171
  %3173 = vrot.lane.b32.xlu0 %v3003, 80
  %v3174 = vpop.permute.xlu0 %3173
  %3175 = vrot.lane.b32.xlu0 %v3004, 80
  %v3176 = vpop.permute.xlu0 %3175
  %3177 = vrot.lane.b32.xlu0 %v3005, 80
  %v3178 = vpop.permute.xlu0 %3177
  %3179 = vrot.lane.b32.xlu0 %v3006, 80
  %v3180 = vpop.permute.xlu0 %3179
  %3181 = vrot.lane.b32.xlu0 %v3007, 80
  %v3182 = vpop.permute.xlu0 %3181
  %3183 = vrot.lane.b32.xlu0 %v3008, 80
  %v3184 = vpop.permute.xlu0 %3183
  %3185 = vrot.lane.b32.xlu0 %v3009, 80
  %v3186 = vpop.permute.xlu0 %3185
  %3203 = vrot.lane.b32.xlu0 %v3011, 96
  %v3204 = vpop.permute.xlu0 %3203
  %3205 = vrot.lane.b32.xlu0 %v3012, 96
  %v3206 = vpop.permute.xlu0 %3205
  %3207 = vrot.lane.b32.xlu0 %v3013, 96
  %v3208 = vpop.permute.xlu0 %3207
  %3209 = vrot.lane.b32.xlu0 %v3014, 96
  %v3210 = vpop.permute.xlu0 %3209
  %3211 = vrot.lane.b32.xlu0 %v3015, 96
  %v3212 = vpop.permute.xlu0 %3211
  %3213 = vrot.lane.b32.xlu0 %v3016, 96
  %v3214 = vpop.permute.xlu0 %3213
  %3215 = vrot.lane.b32.xlu0 %v3017, 96
  %v3216 = vpop.permute.xlu0 %3215
  %3217 = vrot.lane.b32.xlu0 %v3018, 96
  %v3218 = vpop.permute.xlu0 %3217
  %3235 = vrot.lane.b32.xlu0 %v3019, 112
  %v3236 = vpop.permute.xlu0 %3235
  %3237 = vrot.lane.b32.xlu0 %v3020, 112
  %v3238 = vpop.permute.xlu0 %3237
  %3239 = vrot.lane.b32.xlu0 %v3021, 112
  %v3240 = vpop.permute.xlu0 %3239
  %3241 = vrot.lane.b32.xlu0 %v3022, 112
  %v3242 = vpop.permute.xlu0 %3241
  %3243 = vrot.lane.b32.xlu0 %v3023, 112
  %v3244 = vpop.permute.xlu0 %3243
  %3245 = vrot.lane.b32.xlu0 %v3024, 112
  %v3246 = vpop.permute.xlu0 %3245
  %3247 = vrot.lane.b32.xlu0 %v3025, 112
  %v3248 = vpop.permute.xlu0 %3247
  %3249 = vrot.lane.b32.xlu0 %v3026, 112
  %v3250 = vpop.permute.xlu0 %3249
  %v3259 = vsel %vm1454, %v2962, %v3044
  %v3260 = vsel %vm1454, %v2963, %v3046
  %v3261 = vsel %vm1454, %v2964, %v3048
  %v3262 = vsel %vm1454, %v2965, %v3050
  %v3263 = vsel %vm1454, %v2966, %v3052
  %v3264 = vsel %vm1454, %v2967, %v3054
  %v3265 = vsel %vm1454, %v2968, %v3056
  %v3266 = vsel %vm1454, %v2969, %v3058
  %v3267 = vsel %vm1522, %v3259, %v3076
  %v3268 = vsel %vm1522, %v3260, %v3078
  %v3269 = vsel %vm1522, %v3261, %v3080
  %v3270 = vsel %vm1522, %v3262, %v3082
  %v3271 = vsel %vm1522, %v3263, %v3084
  %v3272 = vsel %vm1522, %v3264, %v3086
  %v3273 = vsel %vm1522, %v3265, %v3088
  %v3274 = vsel %vm1522, %v3266, %v3090
  %v3275 = vsel %vm1590, %v3267, %v3108
  %v3276 = vsel %vm1590, %v3268, %v3110
  %v3277 = vsel %vm1590, %v3269, %v3112
  %v3278 = vsel %vm1590, %v3270, %v3114
  %v3279 = vsel %vm1590, %v3271, %v3116
  %v3280 = vsel %vm1590, %v3272, %v3118
  %v3281 = vsel %vm1590, %v3273, %v3120
  %v3282 = vsel %vm1590, %v3274, %v3122
  %v3283 = vsel %vm1673, %v3275, %v3140
  %v3284 = vsel %vm1673, %v3276, %v3142
  %v3285 = vsel %vm1673, %v3277, %v3144
  %v3286 = vsel %vm1673, %v3278, %v3146
  %v3287 = vsel %vm1673, %v3279, %v3148
  %v3288 = vsel %vm1673, %v3280, %v3150
  %v3289 = vsel %vm1673, %v3281, %v3152
  %v3290 = vsel %vm1673, %v3282, %v3154
  %v3291 = vsel %vm2621, %v3283, %v3172
  %v3292 = vsel %vm2621, %v3284, %v3174
  %v3293 = vsel %vm2621, %v3285, %v3176
  %v3294 = vsel %vm2621, %v3286, %v3178
  %v3295 = vsel %vm2621, %v3287, %v3180
  %v3296 = vsel %vm2621, %v3288, %v3182
  %v3297 = vsel %vm2621, %v3289, %v3184
  %v3298 = vsel %vm2621, %v3290, %v3186
  %v3299 = vsel %vm2639, %v3291, %v3204
  %v3300 = vsel %vm2639, %v3292, %v3206
  %v3301 = vsel %vm2639, %v3293, %v3208
  %v3302 = vsel %vm2639, %v3294, %v3210
  %v3303 = vsel %vm2639, %v3295, %v3212
  %v3304 = vsel %vm2639, %v3296, %v3214
  %v3305 = vsel %vm2639, %v3297, %v3216
  %v3306 = vsel %vm2639, %v3298, %v3218
  %v3307 = vsel %vm2657, %v3299, %v3236
  %v3308 = vsel %vm2657, %v3300, %v3238
  %v3309 = vsel %vm2657, %v3301, %v3240
  %v3310 = vsel %vm2657, %v3302, %v3242
  %v3311 = vsel %vm2657, %v3303, %v3244
  %v3312 = vsel %vm2657, %v3304, %v3246
  %v3313 = vsel %vm2657, %v3305, %v3248
  %v3314 = vsel %vm2657, %v3306, %v3250
  %v3331 = vcombine.low %v3307, %v3027
  %v3332 = vcombine.low %v3308, %v3028
  %v3333 = vcombine.low %v3309, %v3029
  %v3334 = vcombine.low %v3310, %v3030
  %v3335 = vcombine.low %v3311, %v3031
  %v3336 = vcombine.low %v3312, %v3032
  %v3337 = vcombine.low %v3313, %v3033
  %v3338 = vcombine.low %v3314, %v3034
  %v3339 = vld [vmem:[%s7] sm:$0xff]
  %v3340 = vld [vmem:[%s7 + $0x8] sm:$0xff]
  %v3341 = vld [vmem:[%s7 + $0x10] sm:$0xff]
  %v3342 = vld [vmem:[%s7 + $0x18] sm:$0xff]
  %v3343 = vld [vmem:[%s7 + $0x20] sm:$0xff]
  %v3344 = vld [vmem:[%s7 + $0x28] sm:$0xff]
  %v3345 = vld [vmem:[%s7 + $0x30] sm:$0xff]
  %v3346 = vld [vmem:[%s7 + $0x38] sm:$0xff]
  %v3347 = vld [vmem:[%s7 + $0x40] sm:$0xff]
  %v3348 = vld [vmem:[%s7 + $0x48] sm:$0xff]
  %v3349 = vld [vmem:[%s7 + $0x50] sm:$0xff]
  %v3350 = vld [vmem:[%s7 + $0x58] sm:$0xff]
  %v3351 = vld [vmem:[%s7 + $0x60] sm:$0xff]
  %v3352 = vld [vmem:[%s7 + $0x68] sm:$0xff]
  %v3353 = vld [vmem:[%s7 + $0x70] sm:$0xff]
  %v3354 = vld [vmem:[%s7 + $0x78] sm:$0xff]
  %v3355 = vld [vmem:[%s7 + $0x80] sm:$0xff]
  %v3356 = vld [vmem:[%s7 + $0x88] sm:$0xff]
  %v3357 = vld [vmem:[%s8] sm:$0x1]
  %v3359 = vlaneseq
  %v3360 = vshrl.u32 %v3359, 7
  %v3361 = vsub.s32 0, %v3360
  %v3362 = vrot.slane %v3357, %v3361
  %v3364 = vcombine.low %v3331, %v3332
  %v3365 = vcombine.high %v3331, %v3332
  %v3366 = vcombine.low %v3333, %v3334
  %v3367 = vcombine.high %v3333, %v3334
  %v3368 = vcombine.low %v3335, %v3336
  %v3369 = vcombine.high %v3335, %v3336
  %v3370 = vcombine.low %v3337, %v3338
  %v3371 = vcombine.high %v3337, %v3338
  %v3376 = vsel %vm1454, %v3365, 0
  %v3378 = vsel %vm1454, %v3367, 0
  %v3380 = vsel %vm1454, %v3369, 0
  %v3382 = vsel %vm1454, %v3371, 0
  %3384 = vmatprep.subr.mxu0 0.0
  %3385 = vmatpush1.msra.mxu0 %v3354
  %3386 = vmatprep.subr.mxu0 0.0
  %3387 = vmatpush1.msra.mxu0 %v3353
  %3388 = vmatprep.subr.mxu0 0.0
  %3389 = vmatpush1.msra.mxu0 %v3352
  %3390 = vmatprep.subr.mxu0 0.0
  %3391 = vmatpush1.msra.mxu0 %v3351
  %3392 = vmatprep.subr.mxu0 0.0
  %3393 = vmatpush1.msra.mxu0 %v3350
  %3394 = vmatprep.subr.mxu0 0.0
  %3395 = vmatpush1.msra.mxu0 %v3349
  %3396 = vmatprep.subr.mxu0 0.0
  %3397 = vmatpush1.msra.mxu0 %v3348
  %3398 = vmatprep.subr.mxu0 0.0
  %3399 = vmatpush1.msra.mxu0 %v3347
  %3400 = vmatprep.subr.mxu0 0.0
  %3401 = vmatpush1.msra.mxu0 %v3346
  %3402 = vmatprep.subr.mxu0 0.0
  %3403 = vmatpush1.msra.mxu0 %v3345
  %3404 = vmatprep.subr.mxu0 0.0
  %3405 = vmatpush1.msra.mxu0 %v3344
  %3406 = vmatprep.subr.mxu0 0.0
  %3407 = vmatpush1.msra.mxu0 %v3343
  %3408 = vmatprep.subr.mxu0 0.0
  %3409 = vmatpush1.msra.mxu0 %v3342
  %3410 = vmatprep.subr.mxu0 0.0
  %3411 = vmatpush1.msra.mxu0 %v3341
  %3412 = vmatprep.subr.mxu0 0.0
  %3413 = vmatpush1.msra.mxu0 %v3340
  %3414 = vmatprep.subr.mxu0 0.0
  %3415 = vmatpush1.msra.mxu0 %v3339
  %3416 = vmatprep.subr.mxu0 0.0
  %3417 = vmatpush2.msra.mxu0 0.0
  %3418 = vmatprep.subr.mxu0 0.0
  %3419 = vmatpush2.msra.mxu0 0.0
  %3420 = vmatprep.subr.mxu0 0.0
  %3421 = vmatpush2.msra.mxu0 0.0
  %3422 = vmatprep.subr.mxu0 0.0
  %3423 = vmatpush2.msra.mxu0 0.0
  %3424 = vmatprep.subr.mxu0 0.0
  %3425 = vmatpush2.msra.mxu0 0.0
  %3426 = vmatprep.subr.mxu0 0.0
  %3427 = vmatpush2.msra.mxu0 0.0
  %3428 = vmatprep.subr.mxu0 0.0
  %3429 = vmatpush2.msra.mxu0 0.0
  %3430 = vmatprep.subr.mxu0 0.0
  %3431 = vmatpush2.msra.mxu0 0.0
  %3432 = vmatprep.subr.mxu0 0.0
  %3433 = vmatpush2.msra.mxu0 0.0
  %3434 = vmatprep.subr.mxu0 0.0
  %3435 = vmatpush2.msra.mxu0 0.0
  %3436 = vmatprep.subr.mxu0 0.0
  %3437 = vmatpush2.msra.mxu0 0.0
  %3438 = vmatprep.subr.mxu0 0.0
  %3439 = vmatpush2.msra.mxu0 0.0
  %3440 = vmatprep.subr.mxu0 0.0
  %3441 = vmatpush2.msra.mxu0 0.0
  %3442 = vmatprep.subr.mxu0 0.0
  %3443 = vmatpush2.msra.mxu0 0.0
  %3444 = vmatprep.subr.mxu0 0.0
  %3445 = vmatpush2.msra.mxu0 %v3356
  %3446 = vmatprep.subr.mxu0 0.0
  %3447 = vmatpush2.msra.mxu0 %v3355
  %3448 = vmatprep.mubr.f32.mxu0 %v3376
  %3449 = vmatmul.mubr.f32.gmra.mxu0 %v3364
  %v3450 = vpop.f32.mrf.mxu0
  %v3451 = vadd.f32 %v3362, %v3450
  %v3452 = vpop.f32.mrf.mxu0
  %3453 = vmatprep.mubr.f32.mxu0 %v3378
  %3454 = vmatmul.mubr.f32.gmra.mxu0 %v3366
  %v3455 = vpop.f32.mrf.mxu0
  %v3456 = vadd.f32 %v3362, %v3455
  %v3457 = vpop.f32.mrf.mxu0
  %3458 = vmatprep.mubr.f32.mxu0 %v3380
  %3459 = vmatmul.mubr.f32.gmra.mxu0 %v3368
  %v3460 = vpop.f32.mrf.mxu0
  %v3461 = vadd.f32 %v3362, %v3460
  %v3462 = vpop.f32.mrf.mxu0
  %3463 = vmatprep.mubr.f32.mxu0 %v3382
  %3464 = vmatmul.mubr.f32.gmra.mxu0 %v3370
  %v3465 = vpop.f32.mrf.mxu0
  %v3466 = vadd.f32 %v3362, %v3465
  %v3467 = vpop.f32.mrf.mxu0
  %3468 = vdwg.mxu0
  %v3469 = vtanh.pop %v3451
  %v3470 = vtanh.pop %v3456
  %v3471 = vtanh.pop %v3461
  %v3472 = vtanh.pop %v3466
  %v3477 = vcombine.high %v3469, %v3469
  %v3478 = vcombine.high %v3470, %v3470
  %v3479 = vcombine.high %v3471, %v3471
  %v3480 = vcombine.high %v3472, %v3472
  %vm3485 = vcmask 62464
  %3486 = vst.msk [vmem:[#allocation5] sm:$0x3f] %vm3485, 0.0
  %3487 = vst.msk [vmem:[#allocation5 + $0x30] sm:$0x3f] %vm3485, 0.0
  %s3488 = scalar_lea.vmem [#allocation5], 40
  %3489 = vst.msk [vmem:[%s3488] sm:$0x3f] %vm3485, 0.0
  %3490 = vst.msk [vmem:[%s3488 + $0x30] sm:$0x3f] %vm3485, 0.0
  %3491 = vst.msk [vmem:[#allocation5] sm:$0x1] %vm1893, 0.0
  %3492 = vst.msk [vmem:[#allocation5 + $0x8] sm:$0x1] %vm1893, 0.0
  %3493 = vst.msk [vmem:[#allocation5 + $0x10] sm:$0x1] %vm1893, 0.0
  %3494 = vst.msk [vmem:[#allocation5 + $0x18] sm:$0x1] %vm1893, 0.0
  %3495 = vst.msk [vmem:[#allocation5 + $0x20] sm:$0x1] %vm1893, 0.0
  %3496 = vst.msk [vmem:[#allocation5 + $0x28] sm:$0x1] %vm1893, 0.0
  %3497 = vst.msk [vmem:[#allocation5 + $0x30] sm:$0x1] %vm1893, 0.0
  %3498 = vst.msk [vmem:[#allocation5 + $0x38] sm:$0x1] %vm1893, 0.0
  %3499 = vst.msk [vmem:[#allocation5 + $0x40] sm:$0x1] %vm1893, 0.0
  %3500 = vst.msk [vmem:[#allocation5 + $0x48] sm:$0x1] %vm1893, 0.0
  %3501 = vst.msk [vmem:[#allocation5 + $0x50] sm:$0x1] %vm1893, 0.0
  %3502 = vst.msk [vmem:[#allocation5 + $0x58] sm:$0x1] %vm1893, 0.0
  %3503 = vst.msk [vmem:[#allocation5 + $0x5] sm:$0x1] %vm1893, 0.0
  %3504 = vst.msk [vmem:[#allocation5 + $0xd] sm:$0x1] %vm1893, 0.0
  %3505 = vst.msk [vmem:[#allocation5 + $0x15] sm:$0x1] %vm1893, 0.0
  %3506 = vst.msk [vmem:[#allocation5 + $0x1d] sm:$0x1] %vm1893, 0.0
  %3507 = vst.msk [vmem:[#allocation5 + $0x25] sm:$0x1] %vm1893, 0.0
  %3508 = vst.msk [vmem:[#allocation5 + $0x2d] sm:$0x1] %vm1893, 0.0
  %3509 = vst.msk [vmem:[#allocation5 + $0x35] sm:$0x1] %vm1893, 0.0
  %3510 = vst.msk [vmem:[#allocation5 + $0x3d] sm:$0x1] %vm1893, 0.0
  %3511 = vst.msk [vmem:[#allocation5 + $0x45] sm:$0x1] %vm1893, 0.0
  %3512 = vst.msk [vmem:[#allocation5 + $0x4d] sm:$0x1] %vm1893, 0.0
  %3513 = vst.msk [vmem:[#allocation5 + $0x55] sm:$0x1] %vm1893, 0.0
  %3514 = vst.msk [vmem:[#allocation5 + $0x5d] sm:$0x1] %vm1893, 0.0
  %s3515 = scalar_lea.vmem [#allocation5], 8
  %vm3516 = vcmask 60416
  %3517 = vst.msk [vmem:[%s3515 + $0x1] sm:$0xf] %vm3516, %v3469
  %3518 = vst.msk [vmem:[%s3515 + $0x9] sm:$0xf] %vm3516, %v3477
  %3519 = vst.msk [vmem:[%s3515 + $0x11] sm:$0xf] %vm3516, %v3470
  %3520 = vst.msk [vmem:[%s3515 + $0x19] sm:$0xf] %vm3516, %v3478
  %3521 = vst.msk [vmem:[%s3515 + $0x31] sm:$0xf] %vm3516, %v3471
  %3522 = vst.msk [vmem:[%s3515 + $0x39] sm:$0xf] %vm3516, %v3479
  %3523 = vst.msk [vmem:[%s3515 + $0x41] sm:$0xf] %vm3516, %v3472
  %3524 = vst.msk [vmem:[%s3515 + $0x49] sm:$0xf] %vm3516, %v3480
  %v3525 = vld [vmem:[#allocation5] sm:$0xf]
  %v3526 = vld [vmem:[#allocation5 + $0x8] sm:$0xf]
  %v3527 = vld [vmem:[#allocation5 + $0x10] sm:$0xf]
  %v3528 = vld [vmem:[#allocation5 + $0x18] sm:$0xf]
  %v3529 = vld [vmem:[#allocation5 + $0x30] sm:$0xf]
  %v3530 = vld [vmem:[#allocation5 + $0x38] sm:$0xf]
  %v3531 = vld [vmem:[#allocation5 + $0x40] sm:$0xf]
  %v3532 = vld [vmem:[#allocation5 + $0x48] sm:$0xf]
  %v3533 = vld [vmem:[#allocation5 + $0x1] sm:$0xf]
  %v3534 = vld [vmem:[#allocation5 + $0x9] sm:$0xf]
  %v3535 = vld [vmem:[#allocation5 + $0x11] sm:$0xf]
  %v3536 = vld [vmem:[#allocation5 + $0x19] sm:$0xf]
  %v3537 = vld [vmem:[#allocation5 + $0x31] sm:$0xf]
  %v3538 = vld [vmem:[#allocation5 + $0x39] sm:$0xf]
  %v3539 = vld [vmem:[#allocation5 + $0x41] sm:$0xf]
  %v3540 = vld [vmem:[#allocation5 + $0x49] sm:$0xf]
  %v3541 = vld [vmem:[#allocation5 + $0x2] sm:$0xf]
  %v3542 = vld [vmem:[#allocation5 + $0xa] sm:$0xf]
  %v3543 = vld [vmem:[#allocation5 + $0x12] sm:$0xf]
  %v3544 = vld [vmem:[#allocation5 + $0x1a] sm:$0xf]
  %v3545 = vld [vmem:[#allocation5 + $0x32] sm:$0xf]
  %v3546 = vld [vmem:[#allocation5 + $0x3a] sm:$0xf]
  %v3547 = vld [vmem:[#allocation5 + $0x42] sm:$0xf]
  %v3548 = vld [vmem:[#allocation5 + $0x4a] sm:$0xf]
  %v3549 = vld [vmem:[%s3515] sm:$0xf]
  %v3550 = vld [vmem:[%s3515 + $0x8] sm:$0xf]
  %v3551 = vld [vmem:[%s3515 + $0x10] sm:$0xf]
  %v3552 = vld [vmem:[%s3515 + $0x18] sm:$0xf]
  %v3553 = vld [vmem:[%s3515 + $0x30] sm:$0xf]
  %v3554 = vld [vmem:[%s3515 + $0x38] sm:$0xf]
  %v3555 = vld [vmem:[%s3515 + $0x40] sm:$0xf]
  %v3556 = vld [vmem:[%s3515 + $0x48] sm:$0xf]
  %v3557 = vld [vmem:[%s3515 + $0x1] sm:$0xf]
  %v3558 = vld [vmem:[%s3515 + $0x9] sm:$0xf]
  %v3559 = vld [vmem:[%s3515 + $0x11] sm:$0xf]
  %v3560 = vld [vmem:[%s3515 + $0x19] sm:$0xf]
  %v3561 = vld [vmem:[%s3515 + $0x31] sm:$0xf]
  %v3562 = vld [vmem:[%s3515 + $0x39] sm:$0xf]
  %v3563 = vld [vmem:[%s3515 + $0x41] sm:$0xf]
  %v3564 = vld [vmem:[%s3515 + $0x49] sm:$0xf]
  %v3565 = vld [vmem:[%s3515 + $0x2] sm:$0xf]
  %v3566 = vld [vmem:[%s3515 + $0xa] sm:$0xf]
  %v3567 = vld [vmem:[%s3515 + $0x12] sm:$0xf]
  %v3568 = vld [vmem:[%s3515 + $0x1a] sm:$0xf]
  %v3569 = vld [vmem:[%s3515 + $0x32] sm:$0xf]
  %v3570 = vld [vmem:[%s3515 + $0x3a] sm:$0xf]
  %v3571 = vld [vmem:[%s3515 + $0x42] sm:$0xf]
  %v3572 = vld [vmem:[%s3515 + $0x4a] sm:$0xf]
  %s3573 = scalar_lea.vmem [#allocation5], 16
  %v3574 = vld [vmem:[%s3573] sm:$0xf]
  %v3575 = vld [vmem:[%s3573 + $0x8] sm:$0xf]
  %v3576 = vld [vmem:[%s3573 + $0x10] sm:$0xf]
  %v3577 = vld [vmem:[%s3573 + $0x18] sm:$0xf]
  %v3578 = vld [vmem:[%s3573 + $0x30] sm:$0xf]
  %v3579 = vld [vmem:[%s3573 + $0x38] sm:$0xf]
  %v3580 = vld [vmem:[%s3573 + $0x40] sm:$0xf]
  %v3581 = vld [vmem:[%s3573 + $0x48] sm:$0xf]
  %v3582 = vld [vmem:[%s3573 + $0x1] sm:$0xf]
  %v3583 = vld [vmem:[%s3573 + $0x9] sm:$0xf]
  %v3584 = vld [vmem:[%s3573 + $0x11] sm:$0xf]
  %v3585 = vld [vmem:[%s3573 + $0x19] sm:$0xf]
  %v3586 = vld [vmem:[%s3573 + $0x31] sm:$0xf]
  %v3587 = vld [vmem:[%s3573 + $0x39] sm:$0xf]
  %v3588 = vld [vmem:[%s3573 + $0x41] sm:$0xf]
  %v3589 = vld [vmem:[%s3573 + $0x49] sm:$0xf]
  %v3590 = vld [vmem:[%s3573 + $0x2] sm:$0xf]
  %v3591 = vld [vmem:[%s3573 + $0xa] sm:$0xf]
  %v3592 = vld [vmem:[%s3573 + $0x12] sm:$0xf]
  %v3593 = vld [vmem:[%s3573 + $0x1a] sm:$0xf]
  %v3594 = vld [vmem:[%s3573 + $0x32] sm:$0xf]
  %v3595 = vld [vmem:[%s3573 + $0x3a] sm:$0xf]
  %v3596 = vld [vmem:[%s3573 + $0x42] sm:$0xf]
  %v3597 = vld [vmem:[%s3573 + $0x4a] sm:$0xf]
  %3606 = vrot.lane.b32.xlu0 %v3533, 8
  %v3607 = vpop.permute.xlu0 %3606
  %3608 = vrot.lane.b32.xlu0 %v3534, 8
  %v3609 = vpop.permute.xlu0 %3608
  %3610 = vrot.lane.b32.xlu0 %v3535, 8
  %v3611 = vpop.permute.xlu0 %3610
  %3612 = vrot.lane.b32.xlu0 %v3536, 8
  %v3613 = vpop.permute.xlu0 %3612
  %3614 = vrot.lane.b32.xlu0 %v3537, 8
  %v3615 = vpop.permute.xlu0 %3614
  %3616 = vrot.lane.b32.xlu0 %v3538, 8
  %v3617 = vpop.permute.xlu0 %3616
  %3618 = vrot.lane.b32.xlu0 %v3539, 8
  %v3619 = vpop.permute.xlu0 %3618
  %3620 = vrot.lane.b32.xlu0 %v3540, 8
  %v3621 = vpop.permute.xlu0 %3620
  %3638 = vrot.lane.b32.xlu0 %v3541, 16
  %v3639 = vpop.permute.xlu0 %3638
  %3640 = vrot.lane.b32.xlu0 %v3542, 16
  %v3641 = vpop.permute.xlu0 %3640
  %3642 = vrot.lane.b32.xlu0 %v3543, 16
  %v3643 = vpop.permute.xlu0 %3642
  %3644 = vrot.lane.b32.xlu0 %v3544, 16
  %v3645 = vpop.permute.xlu0 %3644
  %3646 = vrot.lane.b32.xlu0 %v3545, 16
  %v3647 = vpop.permute.xlu0 %3646
  %3648 = vrot.lane.b32.xlu0 %v3546, 16
  %v3649 = vpop.permute.xlu0 %3648
  %3650 = vrot.lane.b32.xlu0 %v3547, 16
  %v3651 = vpop.permute.xlu0 %3650
  %3652 = vrot.lane.b32.xlu0 %v3548, 16
  %v3653 = vpop.permute.xlu0 %3652
  %3670 = vrot.lane.b32.xlu0 %v3549, 24
  %v3671 = vpop.permute.xlu0 %3670
  %3672 = vrot.lane.b32.xlu0 %v3550, 24
  %v3673 = vpop.permute.xlu0 %3672
  %3674 = vrot.lane.b32.xlu0 %v3551, 24
  %v3675 = vpop.permute.xlu0 %3674
  %3676 = vrot.lane.b32.xlu0 %v3552, 24
  %v3677 = vpop.permute.xlu0 %3676
  %3678 = vrot.lane.b32.xlu0 %v3553, 24
  %v3679 = vpop.permute.xlu0 %3678
  %3680 = vrot.lane.b32.xlu0 %v3554, 24
  %v3681 = vpop.permute.xlu0 %3680
  %3682 = vrot.lane.b32.xlu0 %v3555, 24
  %v3683 = vpop.permute.xlu0 %3682
  %3684 = vrot.lane.b32.xlu0 %v3556, 24
  %v3685 = vpop.permute.xlu0 %3684
  %3702 = vrot.lane.b32.xlu0 %v3557, 32
  %v3703 = vpop.permute.xlu0 %3702
  %3704 = vrot.lane.b32.xlu0 %v3558, 32
  %v3705 = vpop.permute.xlu0 %3704
  %3706 = vrot.lane.b32.xlu0 %v3559, 32
  %v3707 = vpop.permute.xlu0 %3706
  %3708 = vrot.lane.b32.xlu0 %v3560, 32
  %v3709 = vpop.permute.xlu0 %3708
  %3710 = vrot.lane.b32.xlu0 %v3561, 32
  %v3711 = vpop.permute.xlu0 %3710
  %3712 = vrot.lane.b32.xlu0 %v3562, 32
  %v3713 = vpop.permute.xlu0 %3712
  %3714 = vrot.lane.b32.xlu0 %v3563, 32
  %v3715 = vpop.permute.xlu0 %3714
  %3716 = vrot.lane.b32.xlu0 %v3564, 32
  %v3717 = vpop.permute.xlu0 %3716
  %3734 = vrot.lane.b32.xlu0 %v3565, 40
  %v3735 = vpop.permute.xlu0 %3734
  %3736 = vrot.lane.b32.xlu0 %v3566, 40
  %v3737 = vpop.permute.xlu0 %3736
  %3738 = vrot.lane.b32.xlu0 %v3567, 40
  %v3739 = vpop.permute.xlu0 %3738
  %3740 = vrot.lane.b32.xlu0 %v3568, 40
  %v3741 = vpop.permute.xlu0 %3740
  %3742 = vrot.lane.b32.xlu0 %v3569, 40
  %v3743 = vpop.permute.xlu0 %3742
  %3744 = vrot.lane.b32.xlu0 %v3570, 40
  %v3745 = vpop.permute.xlu0 %3744
  %3746 = vrot.lane.b32.xlu0 %v3571, 40
  %v3747 = vpop.permute.xlu0 %3746
  %3748 = vrot.lane.b32.xlu0 %v3572, 40
  %v3749 = vpop.permute.xlu0 %3748
  %3766 = vrot.lane.b32.xlu0 %v3574, 48
  %v3767 = vpop.permute.xlu0 %3766
  %3768 = vrot.lane.b32.xlu0 %v3575, 48
  %v3769 = vpop.permute.xlu0 %3768
  %3770 = vrot.lane.b32.xlu0 %v3576, 48
  %v3771 = vpop.permute.xlu0 %3770
  %3772 = vrot.lane.b32.xlu0 %v3577, 48
  %v3773 = vpop.permute.xlu0 %3772
  %3774 = vrot.lane.b32.xlu0 %v3578, 48
  %v3775 = vpop.permute.xlu0 %3774
  %3776 = vrot.lane.b32.xlu0 %v3579, 48
  %v3777 = vpop.permute.xlu0 %3776
  %3778 = vrot.lane.b32.xlu0 %v3580, 48
  %v3779 = vpop.permute.xlu0 %3778
  %3780 = vrot.lane.b32.xlu0 %v3581, 48
  %v3781 = vpop.permute.xlu0 %3780
  %3798 = vrot.lane.b32.xlu0 %v3582, 56
  %v3799 = vpop.permute.xlu0 %3798
  %3800 = vrot.lane.b32.xlu0 %v3583, 56
  %v3801 = vpop.permute.xlu0 %3800
  %3802 = vrot.lane.b32.xlu0 %v3584, 56
  %v3803 = vpop.permute.xlu0 %3802
  %3804 = vrot.lane.b32.xlu0 %v3585, 56
  %v3805 = vpop.permute.xlu0 %3804
  %3806 = vrot.lane.b32.xlu0 %v3586, 56
  %v3807 = vpop.permute.xlu0 %3806
  %3808 = vrot.lane.b32.xlu0 %v3587, 56
  %v3809 = vpop.permute.xlu0 %3808
  %3810 = vrot.lane.b32.xlu0 %v3588, 56
  %v3811 = vpop.permute.xlu0 %3810
  %3812 = vrot.lane.b32.xlu0 %v3589, 56
  %v3813 = vpop.permute.xlu0 %3812
  %3830 = vrot.lane.b32.xlu0 %v3590, 64
  %v3831 = vpop.permute.xlu0 %3830
  %3832 = vrot.lane.b32.xlu0 %v3591, 64
  %v3833 = vpop.permute.xlu0 %3832
  %3834 = vrot.lane.b32.xlu0 %v3592, 64
  %v3835 = vpop.permute.xlu0 %3834
  %3836 = vrot.lane.b32.xlu0 %v3593, 64
  %v3837 = vpop.permute.xlu0 %3836
  %3838 = vrot.lane.b32.xlu0 %v3594, 64
  %v3839 = vpop.permute.xlu0 %3838
  %3840 = vrot.lane.b32.xlu0 %v3595, 64
  %v3841 = vpop.permute.xlu0 %3840
  %3842 = vrot.lane.b32.xlu0 %v3596, 64
  %v3843 = vpop.permute.xlu0 %3842
  %3844 = vrot.lane.b32.xlu0 %v3597, 64
  %v3845 = vpop.permute.xlu0 %3844
  %v3854 = vsel %vm1420, %v3525, %v3607
  %v3855 = vsel %vm1420, %v3526, %v3609
  %v3856 = vsel %vm1420, %v3527, %v3611
  %v3857 = vsel %vm1420, %v3528, %v3613
  %v3858 = vsel %vm1420, %v3529, %v3615
  %v3859 = vsel %vm1420, %v3530, %v3617
  %v3860 = vsel %vm1420, %v3531, %v3619
  %v3861 = vsel %vm1420, %v3532, %v3621
  %v3862 = vsel %vm1454, %v3854, %v3639
  %v3863 = vsel %vm1454, %v3855, %v3641
  %v3864 = vsel %vm1454, %v3856, %v3643
  %v3865 = vsel %vm1454, %v3857, %v3645
  %v3866 = vsel %vm1454, %v3858, %v3647
  %v3867 = vsel %vm1454, %v3859, %v3649
  %v3868 = vsel %vm1454, %v3860, %v3651
  %v3869 = vsel %vm1454, %v3861, %v3653
  %v3870 = vsel %vm1488, %v3862, %v3671
  %v3871 = vsel %vm1488, %v3863, %v3673
  %v3872 = vsel %vm1488, %v3864, %v3675
  %v3873 = vsel %vm1488, %v3865, %v3677
  %v3874 = vsel %vm1488, %v3866, %v3679
  %v3875 = vsel %vm1488, %v3867, %v3681
  %v3876 = vsel %vm1488, %v3868, %v3683
  %v3877 = vsel %vm1488, %v3869, %v3685
  %v3878 = vsel %vm1522, %v3870, %v3703
  %v3879 = vsel %vm1522, %v3871, %v3705
  %v3880 = vsel %vm1522, %v3872, %v3707
  %v3881 = vsel %vm1522, %v3873, %v3709
  %v3882 = vsel %vm1522, %v3874, %v3711
  %v3883 = vsel %vm1522, %v3875, %v3713
  %v3884 = vsel %vm1522, %v3876, %v3715
  %v3885 = vsel %vm1522, %v3877, %v3717
  %v3886 = vsel %vm1556, %v3878, %v3735
  %v3887 = vsel %vm1556, %v3879, %v3737
  %v3888 = vsel %vm1556, %v3880, %v3739
  %v3889 = vsel %vm1556, %v3881, %v3741
  %v3890 = vsel %vm1556, %v3882, %v3743
  %v3891 = vsel %vm1556, %v3883, %v3745
  %v3892 = vsel %vm1556, %v3884, %v3747
  %v3893 = vsel %vm1556, %v3885, %v3749
  %v3894 = vsel %vm1590, %v3886, %v3767
  %v3895 = vsel %vm1590, %v3887, %v3769
  %v3896 = vsel %vm1590, %v3888, %v3771
  %v3897 = vsel %vm1590, %v3889, %v3773
  %v3898 = vsel %vm1590, %v3890, %v3775
  %v3899 = vsel %vm1590, %v3891, %v3777
  %v3900 = vsel %vm1590, %v3892, %v3779
  %v3901 = vsel %vm1590, %v3893, %v3781
  %v3902 = vsel %vm1624, %v3894, %v3799
  %v3903 = vsel %vm1624, %v3895, %v3801
  %v3904 = vsel %vm1624, %v3896, %v3803
  %v3905 = vsel %vm1624, %v3897, %v3805
  %v3906 = vsel %vm1624, %v3898, %v3807
  %v3907 = vsel %vm1624, %v3899, %v3809
  %v3908 = vsel %vm1624, %v3900, %v3811
  %v3909 = vsel %vm1624, %v3901, %v3813
  %v3910 = vsel %vm1673, %v3902, %v3831
  %v3911 = vsel %vm1673, %v3903, %v3833
  %v3912 = vsel %vm1673, %v3904, %v3835
  %v3913 = vsel %vm1673, %v3905, %v3837
  %v3914 = vsel %vm1673, %v3906, %v3839
  %v3915 = vsel %vm1673, %v3907, %v3841
  %v3916 = vsel %vm1673, %v3908, %v3843
  %v3917 = vsel %vm1673, %v3909, %v3845
  %v3918 = vld [vmem:[%s9] sm:$0xff]
  %v3919 = vld [vmem:[%s9 + $0x8] sm:$0xff]
  %v3920 = vld [vmem:[%s9 + $0x10] sm:$0xff]
  %v3921 = vld [vmem:[%s9 + $0x18] sm:$0xff]
  %v3922 = vld [vmem:[%s9 + $0x20] sm:$0xff]
  %v3923 = vld [vmem:[%s9 + $0x28] sm:$0xff]
  %v3924 = vld [vmem:[%s9 + $0x30] sm:$0xff]
  %v3925 = vld [vmem:[%s9 + $0x38] sm:$0xff]
  %v3926 = vld [vmem:[%s9 + $0x40] sm:$0xff]
  %v3927 = vld [vmem:[%s10] sm:$0x1]
  %v3929 = vlaneseq
  %v3930 = vshrl.u32 %v3929, 7
  %v3931 = vsub.s32 0, %v3930
  %v3932 = vrot.slane %v3927, %v3931
  %v3942 = vcombine.low %v3910, %v3911
  %v3943 = vcombine.low %v3912, %v3913
  %v3944 = vcombine.low %v3914, %v3915
  %v3945 = vcombine.low %v3916, %v3917
  %v3946 = vsel %vm2612, %v3942, 0
  %v3948 = vsel %vm2612, %v3943, 0
  %v3950 = vsel %vm2612, %v3944, 0
  %v3952 = vsel %vm2612, %v3945, 0
  %3954 = vmatprep.subr.mxu0 0.0
  %3955 = vmatpush1.msra.mxu0 0.0
  %3956 = vmatprep.subr.mxu0 0.0
  %3957 = vmatpush1.msra.mxu0 0.0
  %3958 = vmatprep.subr.mxu0 0.0
  %3959 = vmatpush1.msra.mxu0 0.0
  %3960 = vmatprep.subr.mxu0 0.0
  %3961 = vmatpush1.msra.mxu0 0.0
  %3962 = vmatprep.subr.mxu0 0.0
  %3963 = vmatpush1.msra.mxu0 0.0
  %3964 = vmatprep.subr.mxu0 0.0
  %3965 = vmatpush1.msra.mxu0 0.0
  %3966 = vmatprep.subr.mxu0 0.0
  %3967 = vmatpush1.msra.mxu0 0.0
  %3968 = vmatprep.subr.mxu0 0.0
  %3969 = vmatpush1.msra.mxu0 %v3926
  %3970 = vmatprep.subr.mxu0 0.0
  %3971 = vmatpush1.msra.mxu0 %v3925
  %3972 = vmatprep.subr.mxu0 0.0
  %3973 = vmatpush1.msra.mxu0 %v3924
  %3974 = vmatprep.subr.mxu0 0.0
  %3975 = vmatpush1.msra.mxu0 %v3923
  %3976 = vmatprep.subr.mxu0 0.0
  %3977 = vmatpush1.msra.mxu0 %v3922
  %3978 = vmatprep.subr.mxu0 0.0
  %3979 = vmatpush1.msra.mxu0 %v3921
  %3980 = vmatprep.subr.mxu0 0.0
  %3981 = vmatpush1.msra.mxu0 %v3920
  %3982 = vmatprep.subr.mxu0 0.0
  %3983 = vmatpush1.msra.mxu0 %v3919
  %3984 = vmatprep.subr.mxu0 0.0
  %3985 = vmatpush1.msra.mxu0 %v3918
  %3986 = vmatprep.subr.mxu0 0.0
  %3987 = vmatpush2.msra.mxu0 0.0
  %3988 = vmatprep.subr.mxu0 0.0
  %3989 = vmatpush2.msra.mxu0 0.0
  %3990 = vmatprep.subr.mxu0 0.0
  %3991 = vmatpush2.msra.mxu0 0.0
  %3992 = vmatprep.subr.mxu0 0.0
  %3993 = vmatpush2.msra.mxu0 0.0
  %3994 = vmatprep.subr.mxu0 0.0
  %3995 = vmatpush2.msra.mxu0 0.0
  %3996 = vmatprep.subr.mxu0 0.0
  %3997 = vmatpush2.msra.mxu0 0.0
  %3998 = vmatprep.subr.mxu0 0.0
  %3999 = vmatpush2.msra.mxu0 0.0
  %4000 = vmatprep.subr.mxu0 0.0
  %4001 = vmatpush2.msra.mxu0 0.0
  %4002 = vmatprep.subr.mxu0 0.0
  %4003 = vmatpush2.msra.mxu0 0.0
  %4004 = vmatprep.subr.mxu0 0.0
  %4005 = vmatpush2.msra.mxu0 0.0
  %4006 = vmatprep.subr.mxu0 0.0
  %4007 = vmatpush2.msra.mxu0 0.0
  %4008 = vmatprep.subr.mxu0 0.0
  %4009 = vmatpush2.msra.mxu0 0.0
  %4010 = vmatprep.subr.mxu0 0.0
  %4011 = vmatpush2.msra.mxu0 0.0
  %4012 = vmatprep.subr.mxu0 0.0
  %4013 = vmatpush2.msra.mxu0 0.0
  %4014 = vmatprep.subr.mxu0 0.0
  %4015 = vmatpush2.msra.mxu0 0.0
  %4016 = vmatprep.subr.mxu0 0.0
  %4017 = vmatpush2.msra.mxu0 0.0
  %4018 = vmatprep.mubr.f32.mxu0 0.0
  %4019 = vmatmul.mubr.f32.gmra.mxu0 %v3946
  %v4020 = vpop.f32.mrf.mxu0
  %v4021 = vadd.f32 %v3932, %v4020
  %v4022 = vpop.f32.mrf.mxu0
  %4023 = vmatprep.mubr.f32.mxu0 0.0
  %4024 = vmatmul.mubr.f32.gmra.mxu0 %v3948
  %v4025 = vpop.f32.mrf.mxu0
  %v4026 = vadd.f32 %v3932, %v4025
  %v4027 = vpop.f32.mrf.mxu0
  %4028 = vmatprep.mubr.f32.mxu0 0.0
  %4029 = vmatmul.mubr.f32.gmra.mxu0 %v3950
  %v4030 = vpop.f32.mrf.mxu0
  %v4031 = vadd.f32 %v3932, %v4030
  %v4032 = vpop.f32.mrf.mxu0
  %4033 = vmatprep.mubr.f32.mxu0 0.0
  %4034 = vmatmul.mubr.f32.gmra.mxu0 %v3952
  %v4035 = vpop.f32.mrf.mxu0
  %v4036 = vadd.f32 %v3932, %v4035
  %v4037 = vpop.f32.mrf.mxu0
  %4038 = vdwg.mxu0
  %v4039 = vtanh.pop %v4021
  %v4040 = vtanh.pop %v4026
  %v4041 = vtanh.pop %v4031
  %v4042 = vtanh.pop %v4036
  %v4047 = vcombine.high %v4039, %v4039
  %v4048 = vcombine.high %v4040, %v4040
  %v4049 = vcombine.high %v4041, %v4041
  %v4050 = vcombine.high %v4042, %v4042
  %vm4055 = vcmask 27648
  %4056 = vst.msk [vmem:[%s11] sm:$0xf] %vm4055, %v4039
  %4057 = vst.msk [vmem:[%s11 + $0x4] sm:$0xf] %vm4055, %v4047
  %4058 = vst.msk [vmem:[%s11 + $0x8] sm:$0xf] %vm4055, %v4040
  %4059 = vst.msk [vmem:[%s11 + $0xc] sm:$0xf] %vm4055, %v4048
  %4060 = vst.msk [vmem:[%s11 + $0x10] sm:$0xf] %vm4055, %v4041
  %4061 = vst.msk [vmem:[%s11 + $0x14] sm:$0xf] %vm4055, %v4049
  %4062 = vst.msk [vmem:[%s11 + $0x18] sm:$0xf] %vm4055, %v4042
  %4063 = vst.msk [vmem:[%s11 + $0x1c] sm:$0xf] %vm4055, %v4050
  // Predicated region
  $region46: #{_lambda_.1} parent=0 // pred_check
    _
  $region47: #{_lambda_.1} parent=0 // pred_check_branch
    %4065 = sbr.rel (0) target = $region49
  $region48: #{_lambda_.1} parent=0 // pred_region
    _
  $region49: #{_lambda_.1} parent=0 // pred_fallthru
    _
  // Predicated region
  $region50: #{_lambda_.1} parent=0 // pred_check
    _
  $region51: #{_lambda_.1} parent=0 // pred_check_branch
    %4067 = sbr.rel (0) target = $region53
  $region52: #{_lambda_.1} parent=0 // pred_region
    _
  $region53: #{_lambda_.1} parent=0 // pred_fallthru
    _

</llo_original>
